<compile_context>
chip_gen: v7x
topology: tpu7x:2x2x1
jax: 0.10.0
libtpu: 0.0.40
codegen_flags: <defaults>
</compile_context>

<pallas_src>
import functools

import jax
import jax.numpy as jnp
from jax import lax
from jax.experimental import pallas as pl
from jax.experimental.pallas import tpu as pltpu

KS = 3          # kernel size
PAD = 1         # conv padding
EPS = 1e-5      # BatchNorm2d eps


def _conv_tile(x_ref, w_ref, edge_ref, *, W, HW, Cout):
    """Conv2d(ks=3, st=1, pad=1) for one image tile -> [Cout, HW] f32 accumulator.

    x_ref   : [1, Cin, L] bf16, L = (H+2)*W + 2 (rows zero-padded, spatial dims
              flattened, one extra zero front/back so tap (kh, kw) is the
              contiguous lane slice starting at kh*W + kw).
    w_ref   : [KS*KS, Cout, Cin] bf16 (tap-major).
    edge_ref: [2, HW] bf16 0/1 masks removing the row-wrap contributions of the
              left (kw=0) / right (kw=2) taps at the width edges.
    """
    not_left = edge_ref[0:1, :]                     # [1, HW]
    not_right = edge_ref[1:2, :]
    acc = jnp.zeros((Cout, HW), jnp.float32)
    for kh in range(KS):
        for kw in range(KS):
            s = kh * W + kw
            sl = x_ref[0, :, s:s + HW]              # [Cin, HW] bf16 lane slice
            if kw == 0:
                sl = sl * not_left                  # zero the j == 0 wrap reads
            elif kw == KS - 1:
                sl = sl * not_right                 # zero the j == W-1 wrap reads
            # K = Cin matmul on the MXU, f32 accumulation.  Conv bias omitted:
            # it cancels exactly under training-mode BatchNorm.
            acc = acc + jnp.dot(w_ref[kh * KS + kw], sl,
                                preferred_element_type=jnp.float32)
    return acc


def _stats_kernel(x_ref, w_ref, edge_ref, sum_ref, sumsq_ref, *, W, HW, Cout):
    acc = _conv_tile(x_ref, w_ref, edge_ref, W=W, HW=HW, Cout=Cout)
    # One-pass BatchNorm statistics: sum and sum-of-squares in a single sweep.
    sum_ref[0] = jnp.sum(acc, axis=1, keepdims=True)
    sumsq_ref[0] = jnp.sum(acc * acc, axis=1, keepdims=True)


def _apply_kernel(x_ref, w_ref, edge_ref, scale_ref, shift_ref, o_ref, *, W, HW, Cout):
    acc = _conv_tile(x_ref, w_ref, edge_ref, W=W, HW=HW, Cout=Cout)
    # Fused BN(train) scale/shift + ReLU, streamed lane-dense store.
    o_ref[0] = jnp.maximum(acc * scale_ref[...] + shift_ref[...], 0.0)


@jax.jit
def conv2dt_forward(x_nchw, weight_hwio, bias, gamma, beta):
    """Conv2dT forward: nearest-x2 upsample, then two-pass fused conv/BN/ReLU."""
    del bias  # mathematically redundant before training-mode BatchNorm (cancels)
    N, Cin, Hin, Win = x_nchw.shape
    KH, KW, _, Cout = weight_hwio.shape
    H, W = 2 * Hin, 2 * Win
    HW = H * W
    L = (H + 2) * W + 2
    M = N * HW

    # bf16 at the top; nearest-x2 upsample via broadcast + reshape (no repeats).
    x = x_nchw.astype(jnp.bfloat16)
    x_up = jnp.broadcast_to(x[:, :, :, None, :, None],
                            (N, Cin, Hin, 2, Win, 2)).reshape(N, Cin, H, W)
    # Zero-pad rows only, flatten spatial, add one zero element front/back so each
    # tap (kh, kw) is the contiguous lane slice [kh*W + kw : kh*W + kw + HW].
    x_hp = jnp.pad(x_up, ((0, 0), (0, 0), (PAD, PAD), (0, 0)))
    x_flat = jnp.pad(x_hp.reshape(N, Cin, (H + 2) * W), ((0, 0), (0, 0), (1, 1)))

    # Weights tap-major [KS*KS, Cout, Cin]; width-edge masks for the kw=0/2 taps.
    w_taps = weight_hwio.transpose(0, 1, 3, 2).reshape(KH * KW, Cout, Cin)
    w_taps = w_taps.astype(jnp.bfloat16)
    j = jnp.arange(HW, dtype=jnp.int32) % W
    edge = jnp.stack([(j != 0), (j != W - 1)]).astype(jnp.bfloat16)     # [2, HW]

    x_spec = pl.BlockSpec((1, Cin, L), lambda n: (n, 0, 0))
    w_spec = pl.BlockSpec((KH * KW, Cout, Cin), lambda n: (0, 0, 0))    # resident
    e_spec = pl.BlockSpec((2, HW), lambda n: (0, 0))                    # resident
    v_spec = pl.BlockSpec((Cout, 1), lambda n: (0, 0))                  # resident
    params = pltpu.CompilerParams(dimension_semantics=("parallel",))

    # Pass 1: conv -> per-image (sum, sum of squares).  'parallel' grid is legal
    # because the global reduction happens below in the wrapper.
    kern1 = functools.partial(_stats_kernel, W=W, HW=HW, Cout=Cout)
    sums, sumsqs = pl.pallas_call(
        kern1,
        out_shape=(jax.ShapeDtypeStruct((N, Cout, 1), jnp.float32),
                   jax.ShapeDtypeStruct((N, Cout, 1), jnp.float32)),
        grid=(N,),
        in_specs=[x_spec, w_spec, e_spec],
        out_specs=(pl.BlockSpec((1, Cout, 1), lambda n: (n, 0, 0)),
                   pl.BlockSpec((1, Cout, 1), lambda n: (n, 0, 0))),
        compiler_params=params,
    )(x_flat, w_taps, edge)

    # Global BatchNorm(train) stats -> fused scale / shift (tiny XLA ops).
    mean = jnp.sum(sums, axis=0) / M                                    # [Cout, 1]
    var = jnp.maximum(jnp.sum(sumsqs, axis=0) / M - mean * mean, 0.0)   # one-pass
    scale = gamma.reshape(Cout, 1).astype(jnp.float32) * lax.rsqrt(var + EPS)
    shift = beta.reshape(Cout, 1).astype(jnp.float32) - mean * scale

    # Pass 2: conv recomputed + fused BN/ReLU; lane-dense [n, Cout, HW] output.
    kern2 = functools.partial(_apply_kernel, W=W, HW=HW, Cout=Cout)
    y = pl.pallas_call(
        kern2,
        out_shape=jax.ShapeDtypeStruct((N, Cout, HW), jnp.float32),
        grid=(N,),
        in_specs=[x_spec, w_spec, e_spec, v_spec, v_spec],
        out_specs=pl.BlockSpec((1, Cout, HW), lambda n: (n, 0, 0)),
        compiler_params=params,
    )(x_flat, w_taps, edge, scale, shift)

    # [N, Cout, H*W] -> [N, Cout, H, W]: pure reshape, NCHW-native (no transpose).
    return y.reshape(N, Cout, H, W)


def conv2dt_reference(x_nchw, weight_hwio, bias, gamma, beta):
    """Plain-JAX reference of the module's forward pass.

    Conv operands are rounded to bf16 to match the kernel's MXU input precision
    (accumulation stays f32).  The conv bias IS applied here (module semantics);
    it cancels under training-mode BN, which the assertion below verifies.
    """
    x_up = jnp.repeat(jnp.repeat(x_nchw.astype(jnp.float32), 2, axis=2), 2, axis=3)
    x_nhwc = jnp.transpose(x_up, (0, 2, 3, 1))
    x_bf = x_nhwc.astype(jnp.bfloat16).astype(jnp.float32)
    w_bf = weight_hwio.astype(jnp.bfloat16).astype(jnp.float32)
    y = lax.conv_general_dilated(
        x_bf, w_bf, window_strides=(1, 1),
        padding=((PAD, PAD), (PAD, PAD)),
        dimension_numbers=('NHWC', 'HWIO', 'NHWC')) + bias
    mean = y.mean(axis=(0, 1, 2))
    var = ((y - mean) ** 2).mean(axis=(0, 1, 2))
    y = (y - mean) / jnp.sqrt(var + EPS) * gamma + beta
    y = jnp.maximum(y, 0.0)
    return jnp.transpose(y, (0, 3, 1, 2))


if __name__ == "__main__":
    # Module defaults: nin=8, nout=11, ks=3, padding=1 (stride 1 inside Conv2dT).
    N, Cin, Cout, Hin, Win = 2, 8, 11, 16, 16

    key = jax.random.PRNGKey(0)
    kx, kw, kb = jax.random.split(key, 3)

    x = jax.random.normal(kx, (N, Cin, Hin, Win), jnp.float32)
    weight = jax.random.normal(kw, (KS, KS, Cin, Cout), jnp.float32) * 0.1
    bias = jax.random.normal(kb, (Cout,), jnp.float32) * 0.1
    gamma = jnp.ones((Cout,), jnp.float32)    # nn.BatchNorm2d default init
    beta = jnp.zeros((Cout,), jnp.float32)

    out = conv2dt_forward(x, weight, bias, gamma, beta)
    out = jax.block_until_ready(out)

    ref = conv2dt_reference(x, weight, bias, gamma, beta)
    assert out.shape == (N, Cout, 2 * Hin, 2 * Win), out.shape
    max_err = float(jnp.max(jnp.abs(out - ref)))
    assert jnp.allclose(out, ref, atol=1e-3, rtol=1e-3), max_err

    print("KERNEL_OK")
</pallas_src>

<mosaic_0001>
module attributes {stable_mosaic.version = 11 : i64} {
  func.func @_stats_kernel(%arg0: i32, %arg1: memref<1x8x1090xbf16, #tpu.memory_space<vmem>>, %arg2: memref<9x11x8xbf16, #tpu.memory_space<vmem>>, %arg3: memref<2x1024xbf16, #tpu.memory_space<vmem>>, %arg4: memref<1x11x1xf32, #tpu.memory_space<vmem>>, %arg5: memref<1x11x1xf32, #tpu.memory_space<vmem>>) attributes {dimension_semantics = [#tpu.dimension_semantics<parallel>], iteration_bounds = array<i64: 2>, scalar_prefetch = 0 : i64, scratch_operands = 0 : i64, tpu.core_type = #tpu.core_type<tc>, window_params = [{transform_indices = @transform_0, window_bounds = array<i64: 1, 8, 1090>}, {pipeline_mode = #tpu.pipeline_mode<synchronous>, transform_indices = @transform_1, window_bounds = array<i64: 9, 11, 8>}, {pipeline_mode = #tpu.pipeline_mode<synchronous>, transform_indices = @transform_2, window_bounds = array<i64: 2, 1024>}, {transform_indices = @transform_3, window_bounds = array<i64: 1, 11, 1>}, {transform_indices = @transform_4, window_bounds = array<i64: 1, 11, 1>}]} {
    %c0 = arith.constant 0 : index
    %c0_0 = arith.constant 0 : index
    %0 = vector.load %arg3[%c0, %c0_0] : memref<2x1024xbf16, #tpu.memory_space<vmem>>, vector<1x1024xbf16>
    %c1 = arith.constant 1 : index
    %c0_1 = arith.constant 0 : index
    %1 = vector.load %arg3[%c1, %c0_1] : memref<2x1024xbf16, #tpu.memory_space<vmem>>, vector<1x1024xbf16>
    %cst = arith.constant 0.000000e+00 : f32
    %2 = vector.broadcast %cst : f32 to vector<11x1024xf32>
    %c0_2 = arith.constant 0 : index
    %c0_3 = arith.constant 0 : index
    %c0_4 = arith.constant 0 : index
    %3 = vector.load %arg1[%c0_2, %c0_3, %c0_4] : memref<1x8x1090xbf16, #tpu.memory_space<vmem>>, vector<1x8x1024xbf16>
    %4 = vector.shape_cast %3 : vector<1x8x1024xbf16> to vector<8x1024xbf16>
    %5 = vector.broadcast %0 : vector<1x1024xbf16> to vector<8x1024xbf16>
    %6 = arith.mulf %4, %5 : vector<8x1024xbf16>
    %c0_5 = arith.constant 0 : index
    %c0_6 = arith.constant 0 : index
    %c0_7 = arith.constant 0 : index
    %7 = vector.load %arg2[%c0_5, %c0_6, %c0_7] : memref<9x11x8xbf16, #tpu.memory_space<vmem>>, vector<1x11x8xbf16>
    %8 = vector.shape_cast %7 : vector<1x11x8xbf16> to vector<11x8xbf16>
    %cst_8 = arith.constant dense<0.000000e+00> : vector<11x1024xf32>
    %9 = tpu.matmul %8, %6, %cst_8 {dimension_numbers = #tpu.dot_dimension_numbers<[1], [0], [0], [1], [0, 0, 1, 1], [], []>} : vector<11x8xbf16>, vector<8x1024xbf16>, vector<11x1024xf32> -> vector<11x1024xf32>
    %10 = arith.addf %2, %9 : vector<11x1024xf32>
    %c0_9 = arith.constant 0 : index
    %c0_10 = arith.constant 0 : index
    %c1_11 = arith.constant 1 : index
    %11 = vector.load %arg1[%c0_9, %c0_10, %c1_11] : memref<1x8x1090xbf16, #tpu.memory_space<vmem>>, vector<1x8x1024xbf16>
    %12 = vector.shape_cast %11 : vector<1x8x1024xbf16> to vector<8x1024xbf16>
    %c1_12 = arith.constant 1 : index
    %c0_13 = arith.constant 0 : index
    %c0_14 = arith.constant 0 : index
    %13 = vector.load %arg2[%c1_12, %c0_13, %c0_14] : memref<9x11x8xbf16, #tpu.memory_space<vmem>>, vector<1x11x8xbf16>
    %14 = vector.shape_cast %13 : vector<1x11x8xbf16> to vector<11x8xbf16>
    %cst_15 = arith.constant dense<0.000000e+00> : vector<11x1024xf32>
    %15 = tpu.matmul %14, %12, %cst_15 {dimension_numbers = #tpu.dot_dimension_numbers<[1], [0], [0], [1], [0, 0, 1, 1], [], []>} : vector<11x8xbf16>, vector<8x1024xbf16>, vector<11x1024xf32> -> vector<11x1024xf32>
    %16 = arith.addf %10, %15 : vector<11x1024xf32>
    %c0_16 = arith.constant 0 : index
    %c0_17 = arith.constant 0 : index
    %c2 = arith.constant 2 : index
    %17 = vector.load %arg1[%c0_16, %c0_17, %c2] : memref<1x8x1090xbf16, #tpu.memory_space<vmem>>, vector<1x8x1024xbf16>
    %18 = vector.shape_cast %17 : vector<1x8x1024xbf16> to vector<8x1024xbf16>
    %19 = vector.broadcast %1 : vector<1x1024xbf16> to vector<8x1024xbf16>
    %20 = arith.mulf %18, %19 : vector<8x1024xbf16>
    %c2_18 = arith.constant 2 : index
    %c0_19 = arith.constant 0 : index
    %c0_20 = arith.constant 0 : index
    %21 = vector.load %arg2[%c2_18, %c0_19, %c0_20] : memref<9x11x8xbf16, #tpu.memory_space<vmem>>, vector<1x11x8xbf16>
    %22 = vector.shape_cast %21 : vector<1x11x8xbf16> to vector<11x8xbf16>
    %cst_21 = arith.constant dense<0.000000e+00> : vector<11x1024xf32>
    %23 = tpu.matmul %22, %20, %cst_21 {dimension_numbers = #tpu.dot_dimension_numbers<[1], [0], [0], [1], [0, 0, 1, 1], [], []>} : vector<11x8xbf16>, vector<8x1024xbf16>, vector<11x1024xf32> -> vector<11x1024xf32>
    %24 = arith.addf %16, %23 : vector<11x1024xf32>
    %c0_22 = arith.constant 0 : index
    %c0_23 = arith.constant 0 : index
    %c32 = arith.constant 32 : index
    %25 = vector.load %arg1[%c0_22, %c0_23, %c32] : memref<1x8x1090xbf16, #tpu.memory_space<vmem>>, vector<1x8x1024xbf16>
    %26 = vector.shape_cast %25 : vector<1x8x1024xbf16> to vector<8x1024xbf16>
    %27 = vector.broadcast %0 : vector<1x1024xbf16> to vector<8x1024xbf16>
    %28 = arith.mulf %26, %27 : vector<8x1024xbf16>
    %c3 = arith.constant 3 : index
    %c0_24 = arith.constant 0 : index
    %c0_25 = arith.constant 0 : index
    %29 = vector.load %arg2[%c3, %c0_24, %c0_25] : memref<9x11x8xbf16, #tpu.memory_space<vmem>>, vector<1x11x8xbf16>
    %30 = vector.shape_cast %29 : vector<1x11x8xbf16> to vector<11x8xbf16>
    %cst_26 = arith.constant dense<0.000000e+00> : vector<11x1024xf32>
    %31 = tpu.matmul %30, %28, %cst_26 {dimension_numbers = #tpu.dot_dimension_numbers<[1], [0], [0], [1], [0, 0, 1, 1], [], []>} : vector<11x8xbf16>, vector<8x1024xbf16>, vector<11x1024xf32> -> vector<11x1024xf32>
    %32 = arith.addf %24, %31 : vector<11x1024xf32>
    %c0_27 = arith.constant 0 : index
    %c0_28 = arith.constant 0 : index
    %c33 = arith.constant 33 : index
    %33 = vector.load %arg1[%c0_27, %c0_28, %c33] : memref<1x8x1090xbf16, #tpu.memory_space<vmem>>, vector<1x8x1024xbf16>
    %34 = vector.shape_cast %33 : vector<1x8x1024xbf16> to vector<8x1024xbf16>
    %c4 = arith.constant 4 : index
    %c0_29 = arith.constant 0 : index
    %c0_30 = arith.constant 0 : index
    %35 = vector.load %arg2[%c4, %c0_29, %c0_30] : memref<9x11x8xbf16, #tpu.memory_space<vmem>>, vector<1x11x8xbf16>
    %36 = vector.shape_cast %35 : vector<1x11x8xbf16> to vector<11x8xbf16>
    %cst_31 = arith.constant dense<0.000000e+00> : vector<11x1024xf32>
    %37 = tpu.matmul %36, %34, %cst_31 {dimension_numbers = #tpu.dot_dimension_numbers<[1], [0], [0], [1], [0, 0, 1, 1], [], []>} : vector<11x8xbf16>, vector<8x1024xbf16>, vector<11x1024xf32> -> vector<11x1024xf32>
    %38 = arith.addf %32, %37 : vector<11x1024xf32>
    %c0_32 = arith.constant 0 : index
    %c0_33 = arith.constant 0 : index
    %c34 = arith.constant 34 : index
    %39 = vector.load %arg1[%c0_32, %c0_33, %c34] : memref<1x8x1090xbf16, #tpu.memory_space<vmem>>, vector<1x8x1024xbf16>
    %40 = vector.shape_cast %39 : vector<1x8x1024xbf16> to vector<8x1024xbf16>
    %41 = vector.broadcast %1 : vector<1x1024xbf16> to vector<8x1024xbf16>
    %42 = arith.mulf %40, %41 : vector<8x1024xbf16>
    %c5 = arith.constant 5 : index
    %c0_34 = arith.constant 0 : index
    %c0_35 = arith.constant 0 : index
    %43 = vector.load %arg2[%c5, %c0_34, %c0_35] : memref<9x11x8xbf16, #tpu.memory_space<vmem>>, vector<1x11x8xbf16>
    %44 = vector.shape_cast %43 : vector<1x11x8xbf16> to vector<11x8xbf16>
    %cst_36 = arith.constant dense<0.000000e+00> : vector<11x1024xf32>
    %45 = tpu.matmul %44, %42, %cst_36 {dimension_numbers = #tpu.dot_dimension_numbers<[1], [0], [0], [1], [0, 0, 1, 1], [], []>} : vector<11x8xbf16>, vector<8x1024xbf16>, vector<11x1024xf32> -> vector<11x1024xf32>
    %46 = arith.addf %38, %45 : vector<11x1024xf32>
    %c0_37 = arith.constant 0 : index
    %c0_38 = arith.constant 0 : index
    %c64 = arith.constant 64 : index
    %47 = vector.load %arg1[%c0_37, %c0_38, %c64] : memref<1x8x1090xbf16, #tpu.memory_space<vmem>>, vector<1x8x1024xbf16>
    %48 = vector.shape_cast %47 : vector<1x8x1024xbf16> to vector<8x1024xbf16>
    %49 = vector.broadcast %0 : vector<1x1024xbf16> to vector<8x1024xbf16>
    %50 = arith.mulf %48, %49 : vector<8x1024xbf16>
    %c6 = arith.constant 6 : index
    %c0_39 = arith.constant 0 : index
    %c0_40 = arith.constant 0 : index
    %51 = vector.load %arg2[%c6, %c0_39, %c0_40] : memref<9x11x8xbf16, #tpu.memory_space<vmem>>, vector<1x11x8xbf16>
    %52 = vector.shape_cast %51 : vector<1x11x8xbf16> to vector<11x8xbf16>
    %cst_41 = arith.constant dense<0.000000e+00> : vector<11x1024xf32>
    %53 = tpu.matmul %52, %50, %cst_41 {dimension_numbers = #tpu.dot_dimension_numbers<[1], [0], [0], [1], [0, 0, 1, 1], [], []>} : vector<11x8xbf16>, vector<8x1024xbf16>, vector<11x1024xf32> -> vector<11x1024xf32>
    %54 = arith.addf %46, %53 : vector<11x1024xf32>
    %c0_42 = arith.constant 0 : index
    %c0_43 = arith.constant 0 : index
    %c65 = arith.constant 65 : index
    %55 = vector.load %arg1[%c0_42, %c0_43, %c65] : memref<1x8x1090xbf16, #tpu.memory_space<vmem>>, vector<1x8x1024xbf16>
    %56 = vector.shape_cast %55 : vector<1x8x1024xbf16> to vector<8x1024xbf16>
    %c7 = arith.constant 7 : index
    %c0_44 = arith.constant 0 : index
    %c0_45 = arith.constant 0 : index
    %57 = vector.load %arg2[%c7, %c0_44, %c0_45] : memref<9x11x8xbf16, #tpu.memory_space<vmem>>, vector<1x11x8xbf16>
    %58 = vector.shape_cast %57 : vector<1x11x8xbf16> to vector<11x8xbf16>
    %cst_46 = arith.constant dense<0.000000e+00> : vector<11x1024xf32>
    %59 = tpu.matmul %58, %56, %cst_46 {dimension_numbers = #tpu.dot_dimension_numbers<[1], [0], [0], [1], [0, 0, 1, 1], [], []>} : vector<11x8xbf16>, vector<8x1024xbf16>, vector<11x1024xf32> -> vector<11x1024xf32>
    %60 = arith.addf %54, %59 : vector<11x1024xf32>
    %c0_47 = arith.constant 0 : index
    %c0_48 = arith.constant 0 : index
    %c66 = arith.constant 66 : index
    %61 = vector.load %arg1[%c0_47, %c0_48, %c66] : memref<1x8x1090xbf16, #tpu.memory_space<vmem>>, vector<1x8x1024xbf16>
    %62 = vector.shape_cast %61 : vector<1x8x1024xbf16> to vector<8x1024xbf16>
    %63 = vector.broadcast %1 : vector<1x1024xbf16> to vector<8x1024xbf16>
    %64 = arith.mulf %62, %63 : vector<8x1024xbf16>
    %c8 = arith.constant 8 : index
    %c0_49 = arith.constant 0 : index
    %c0_50 = arith.constant 0 : index
    %65 = vector.load %arg2[%c8, %c0_49, %c0_50] : memref<9x11x8xbf16, #tpu.memory_space<vmem>>, vector<1x11x8xbf16>
    %66 = vector.shape_cast %65 : vector<1x11x8xbf16> to vector<11x8xbf16>
    %cst_51 = arith.constant dense<0.000000e+00> : vector<11x1024xf32>
    %67 = tpu.matmul %66, %64, %cst_51 {dimension_numbers = #tpu.dot_dimension_numbers<[1], [0], [0], [1], [0, 0, 1, 1], [], []>} : vector<11x8xbf16>, vector<8x1024xbf16>, vector<11x1024xf32> -> vector<11x1024xf32>
    %68 = arith.addf %60, %67 : vector<11x1024xf32>
    %cst_52 = arith.constant dense<0.000000e+00> : vector<11xf32>
    %69 = vector.multi_reduction <add>, %68, %cst_52 [1] : vector<11x1024xf32> to vector<11xf32>
    %70 = vector.shape_cast %69 : vector<11xf32> to vector<11x1xf32>
    %c0_53 = arith.constant 0 : index
    %c0_54 = arith.constant 0 : index
    %c0_55 = arith.constant 0 : index
    %71 = vector.load %arg4[%c0_53, %c0_54, %c0_55] : memref<1x11x1xf32, #tpu.memory_space<vmem>>, vector<1x11x1xf32>
    %72 = vector.shape_cast %71 : vector<1x11x1xf32> to vector<11x1xf32>
    %73 = vector.shape_cast %70 : vector<11x1xf32> to vector<1x11x1xf32>
    tpu.vector_store %arg4[%c0_53, %c0_54, %c0_55], %73 {strides = array<i32>} : memref<1x11x1xf32, #tpu.memory_space<vmem>>, vector<1x11x1xf32>,
    %74 = arith.mulf %68, %68 : vector<11x1024xf32>
    %cst_56 = arith.constant dense<0.000000e+00> : vector<11xf32>
    %75 = vector.multi_reduction <add>, %74, %cst_56 [1] : vector<11x1024xf32> to vector<11xf32>
    %76 = vector.shape_cast %75 : vector<11xf32> to vector<11x1xf32>
    %c0_57 = arith.constant 0 : index
    %c0_58 = arith.constant 0 : index
    %c0_59 = arith.constant 0 : index
    %77 = vector.load %arg5[%c0_57, %c0_58, %c0_59] : memref<1x11x1xf32, #tpu.memory_space<vmem>>, vector<1x11x1xf32>
    %78 = vector.shape_cast %77 : vector<1x11x1xf32> to vector<11x1xf32>
    %79 = vector.shape_cast %76 : vector<11x1xf32> to vector<1x11x1xf32>
    tpu.vector_store %arg5[%c0_57, %c0_58, %c0_59], %79 {strides = array<i32>} : memref<1x11x1xf32, #tpu.memory_space<vmem>>, vector<1x11x1xf32>,
    return
  }
  func.func @transform_0(%arg0: i32) -> (i32, i32, i32) {
    %c0_i32 = arith.constant 0 : i32
    %c0_i32_0 = arith.constant 0 : i32
    %c0_i32_1 = arith.constant 0 : i32
    return %arg0, %c0_i32, %c0_i32_0 : i32, i32, i32
  }
  func.func @transform_1(%arg0: i32) -> (i32, i32, i32) {
    %c0_i32 = arith.constant 0 : i32
    %c0_i32_0 = arith.constant 0 : i32
    %c0_i32_1 = arith.constant 0 : i32
    %c0_i32_2 = arith.constant 0 : i32
    return %c0_i32, %c0_i32_0, %c0_i32_1 : i32, i32, i32
  }
  func.func @transform_2(%arg0: i32) -> (i32, i32) {
    %c0_i32 = arith.constant 0 : i32
    %c0_i32_0 = arith.constant 0 : i32
    %c0_i32_1 = arith.constant 0 : i32
    return %c0_i32, %c0_i32_0 : i32, i32
  }
  func.func @transform_3(%arg0: i32) -> (i32, i32, i32) {
    %c0_i32 = arith.constant 0 : i32
    %c0_i32_0 = arith.constant 0 : i32
    %c0_i32_1 = arith.constant 0 : i32
    return %arg0, %c0_i32, %c0_i32_0 : i32, i32, i32
  }
  func.func @transform_4(%arg0: i32) -> (i32, i32, i32) {
    %c0_i32 = arith.constant 0 : i32
    %c0_i32_0 = arith.constant 0 : i32
    %c0_i32_1 = arith.constant 0 : i32
    return %arg0, %c0_i32, %c0_i32_0 : i32, i32, i32
  }
}

module attributes {stable_mosaic.version = 11 : i64} {
  func.func @_apply_kernel(%arg0: i32, %arg1: memref<1x8x1090xbf16, #tpu.memory_space<vmem>>, %arg2: memref<9x11x8xbf16, #tpu.memory_space<vmem>>, %arg3: memref<2x1024xbf16, #tpu.memory_space<vmem>>, %arg4: memref<11x1xf32, #tpu.memory_space<vmem>>, %arg5: memref<11x1xf32, #tpu.memory_space<vmem>>, %arg6: memref<1x11x1024xf32, #tpu.memory_space<vmem>>) attributes {dimension_semantics = [#tpu.dimension_semantics<parallel>], iteration_bounds = array<i64: 2>, scalar_prefetch = 0 : i64, scratch_operands = 0 : i64, tpu.core_type = #tpu.core_type<tc>, window_params = [{transform_indices = @transform_0, window_bounds = array<i64: 1, 8, 1090>}, {pipeline_mode = #tpu.pipeline_mode<synchronous>, transform_indices = @transform_1, window_bounds = array<i64: 9, 11, 8>}, {pipeline_mode = #tpu.pipeline_mode<synchronous>, transform_indices = @transform_2, window_bounds = array<i64: 2, 1024>}, {pipeline_mode = #tpu.pipeline_mode<synchronous>, transform_indices = @transform_3, window_bounds = array<i64: 11, 1>}, {pipeline_mode = #tpu.pipeline_mode<synchronous>, transform_indices = @transform_4, window_bounds = array<i64: 11, 1>}, {transform_indices = @transform_5, window_bounds = array<i64: 1, 11, 1024>}]} {
    %c0 = arith.constant 0 : index
    %c0_0 = arith.constant 0 : index
    %0 = vector.load %arg3[%c0, %c0_0] : memref<2x1024xbf16, #tpu.memory_space<vmem>>, vector<1x1024xbf16>
    %c1 = arith.constant 1 : index
    %c0_1 = arith.constant 0 : index
    %1 = vector.load %arg3[%c1, %c0_1] : memref<2x1024xbf16, #tpu.memory_space<vmem>>, vector<1x1024xbf16>
    %cst = arith.constant 0.000000e+00 : f32
    %2 = vector.broadcast %cst : f32 to vector<11x1024xf32>
    %c0_2 = arith.constant 0 : index
    %c0_3 = arith.constant 0 : index
    %c0_4 = arith.constant 0 : index
    %3 = vector.load %arg1[%c0_2, %c0_3, %c0_4] : memref<1x8x1090xbf16, #tpu.memory_space<vmem>>, vector<1x8x1024xbf16>
    %4 = vector.shape_cast %3 : vector<1x8x1024xbf16> to vector<8x1024xbf16>
    %5 = vector.broadcast %0 : vector<1x1024xbf16> to vector<8x1024xbf16>
    %6 = arith.mulf %4, %5 : vector<8x1024xbf16>
    %c0_5 = arith.constant 0 : index
    %c0_6 = arith.constant 0 : index
    %c0_7 = arith.constant 0 : index
    %7 = vector.load %arg2[%c0_5, %c0_6, %c0_7] : memref<9x11x8xbf16, #tpu.memory_space<vmem>>, vector<1x11x8xbf16>
    %8 = vector.shape_cast %7 : vector<1x11x8xbf16> to vector<11x8xbf16>
    %cst_8 = arith.constant dense<0.000000e+00> : vector<11x1024xf32>
    %9 = tpu.matmul %8, %6, %cst_8 {dimension_numbers = #tpu.dot_dimension_numbers<[1], [0], [0], [1], [0, 0, 1, 1], [], []>} : vector<11x8xbf16>, vector<8x1024xbf16>, vector<11x1024xf32> -> vector<11x1024xf32>
    %10 = arith.addf %2, %9 : vector<11x1024xf32>
    %c0_9 = arith.constant 0 : index
    %c0_10 = arith.constant 0 : index
    %c1_11 = arith.constant 1 : index
    %11 = vector.load %arg1[%c0_9, %c0_10, %c1_11] : memref<1x8x1090xbf16, #tpu.memory_space<vmem>>, vector<1x8x1024xbf16>
    %12 = vector.shape_cast %11 : vector<1x8x1024xbf16> to vector<8x1024xbf16>
    %c1_12 = arith.constant 1 : index
    %c0_13 = arith.constant 0 : index
    %c0_14 = arith.constant 0 : index
    %13 = vector.load %arg2[%c1_12, %c0_13, %c0_14] : memref<9x11x8xbf16, #tpu.memory_space<vmem>>, vector<1x11x8xbf16>
    %14 = vector.shape_cast %13 : vector<1x11x8xbf16> to vector<11x8xbf16>
    %cst_15 = arith.constant dense<0.000000e+00> : vector<11x1024xf32>
    %15 = tpu.matmul %14, %12, %cst_15 {dimension_numbers = #tpu.dot_dimension_numbers<[1], [0], [0], [1], [0, 0, 1, 1], [], []>} : vector<11x8xbf16>, vector<8x1024xbf16>, vector<11x1024xf32> -> vector<11x1024xf32>
    %16 = arith.addf %10, %15 : vector<11x1024xf32>
    %c0_16 = arith.constant 0 : index
    %c0_17 = arith.constant 0 : index
    %c2 = arith.constant 2 : index
    %17 = vector.load %arg1[%c0_16, %c0_17, %c2] : memref<1x8x1090xbf16, #tpu.memory_space<vmem>>, vector<1x8x1024xbf16>
    %18 = vector.shape_cast %17 : vector<1x8x1024xbf16> to vector<8x1024xbf16>
    %19 = vector.broadcast %1 : vector<1x1024xbf16> to vector<8x1024xbf16>
    %20 = arith.mulf %18, %19 : vector<8x1024xbf16>
    %c2_18 = arith.constant 2 : index
    %c0_19 = arith.constant 0 : index
    %c0_20 = arith.constant 0 : index
    %21 = vector.load %arg2[%c2_18, %c0_19, %c0_20] : memref<9x11x8xbf16, #tpu.memory_space<vmem>>, vector<1x11x8xbf16>
    %22 = vector.shape_cast %21 : vector<1x11x8xbf16> to vector<11x8xbf16>
    %cst_21 = arith.constant dense<0.000000e+00> : vector<11x1024xf32>
    %23 = tpu.matmul %22, %20, %cst_21 {dimension_numbers = #tpu.dot_dimension_numbers<[1], [0], [0], [1], [0, 0, 1, 1], [], []>} : vector<11x8xbf16>, vector<8x1024xbf16>, vector<11x1024xf32> -> vector<11x1024xf32>
    %24 = arith.addf %16, %23 : vector<11x1024xf32>
    %c0_22 = arith.constant 0 : index
    %c0_23 = arith.constant 0 : index
    %c32 = arith.constant 32 : index
    %25 = vector.load %arg1[%c0_22, %c0_23, %c32] : memref<1x8x1090xbf16, #tpu.memory_space<vmem>>, vector<1x8x1024xbf16>
    %26 = vector.shape_cast %25 : vector<1x8x1024xbf16> to vector<8x1024xbf16>
    %27 = vector.broadcast %0 : vector<1x1024xbf16> to vector<8x1024xbf16>
    %28 = arith.mulf %26, %27 : vector<8x1024xbf16>
    %c3 = arith.constant 3 : index
    %c0_24 = arith.constant 0 : index
    %c0_25 = arith.constant 0 : index
    %29 = vector.load %arg2[%c3, %c0_24, %c0_25] : memref<9x11x8xbf16, #tpu.memory_space<vmem>>, vector<1x11x8xbf16>
    %30 = vector.shape_cast %29 : vector<1x11x8xbf16> to vector<11x8xbf16>
    %cst_26 = arith.constant dense<0.000000e+00> : vector<11x1024xf32>
    %31 = tpu.matmul %30, %28, %cst_26 {dimension_numbers = #tpu.dot_dimension_numbers<[1], [0], [0], [1], [0, 0, 1, 1], [], []>} : vector<11x8xbf16>, vector<8x1024xbf16>, vector<11x1024xf32> -> vector<11x1024xf32>
    %32 = arith.addf %24, %31 : vector<11x1024xf32>
    %c0_27 = arith.constant 0 : index
    %c0_28 = arith.constant 0 : index
    %c33 = arith.constant 33 : index
    %33 = vector.load %arg1[%c0_27, %c0_28, %c33] : memref<1x8x1090xbf16, #tpu.memory_space<vmem>>, vector<1x8x1024xbf16>
    %34 = vector.shape_cast %33 : vector<1x8x1024xbf16> to vector<8x1024xbf16>
    %c4 = arith.constant 4 : index
    %c0_29 = arith.constant 0 : index
    %c0_30 = arith.constant 0 : index
    %35 = vector.load %arg2[%c4, %c0_29, %c0_30] : memref<9x11x8xbf16, #tpu.memory_space<vmem>>, vector<1x11x8xbf16>
    %36 = vector.shape_cast %35 : vector<1x11x8xbf16> to vector<11x8xbf16>
    %cst_31 = arith.constant dense<0.000000e+00> : vector<11x1024xf32>
    %37 = tpu.matmul %36, %34, %cst_31 {dimension_numbers = #tpu.dot_dimension_numbers<[1], [0], [0], [1], [0, 0, 1, 1], [], []>} : vector<11x8xbf16>, vector<8x1024xbf16>, vector<11x1024xf32> -> vector<11x1024xf32>
    %38 = arith.addf %32, %37 : vector<11x1024xf32>
    %c0_32 = arith.constant 0 : index
    %c0_33 = arith.constant 0 : index
    %c34 = arith.constant 34 : index
    %39 = vector.load %arg1[%c0_32, %c0_33, %c34] : memref<1x8x1090xbf16, #tpu.memory_space<vmem>>, vector<1x8x1024xbf16>
    %40 = vector.shape_cast %39 : vector<1x8x1024xbf16> to vector<8x1024xbf16>
    %41 = vector.broadcast %1 : vector<1x1024xbf16> to vector<8x1024xbf16>
    %42 = arith.mulf %40, %41 : vector<8x1024xbf16>
    %c5 = arith.constant 5 : index
    %c0_34 = arith.constant 0 : index
    %c0_35 = arith.constant 0 : index
    %43 = vector.load %arg2[%c5, %c0_34, %c0_35] : memref<9x11x8xbf16, #tpu.memory_space<vmem>>, vector<1x11x8xbf16>
    %44 = vector.shape_cast %43 : vector<1x11x8xbf16> to vector<11x8xbf16>
    %cst_36 = arith.constant dense<0.000000e+00> : vector<11x1024xf32>
    %45 = tpu.matmul %44, %42, %cst_36 {dimension_numbers = #tpu.dot_dimension_numbers<[1], [0], [0], [1], [0, 0, 1, 1], [], []>} : vector<11x8xbf16>, vector<8x1024xbf16>, vector<11x1024xf32> -> vector<11x1024xf32>
    %46 = arith.addf %38, %45 : vector<11x1024xf32>
    %c0_37 = arith.constant 0 : index
    %c0_38 = arith.constant 0 : index
    %c64 = arith.constant 64 : index
    %47 = vector.load %arg1[%c0_37, %c0_38, %c64] : memref<1x8x1090xbf16, #tpu.memory_space<vmem>>, vector<1x8x1024xbf16>
    %48 = vector.shape_cast %47 : vector<1x8x1024xbf16> to vector<8x1024xbf16>
    %49 = vector.broadcast %0 : vector<1x1024xbf16> to vector<8x1024xbf16>
    %50 = arith.mulf %48, %49 : vector<8x1024xbf16>
    %c6 = arith.constant 6 : index
    %c0_39 = arith.constant 0 : index
    %c0_40 = arith.constant 0 : index
    %51 = vector.load %arg2[%c6, %c0_39, %c0_40] : memref<9x11x8xbf16, #tpu.memory_space<vmem>>, vector<1x11x8xbf16>
    %52 = vector.shape_cast %51 : vector<1x11x8xbf16> to vector<11x8xbf16>
    %cst_41 = arith.constant dense<0.000000e+00> : vector<11x1024xf32>
    %53 = tpu.matmul %52, %50, %cst_41 {dimension_numbers = #tpu.dot_dimension_numbers<[1], [0], [0], [1], [0, 0, 1, 1], [], []>} : vector<11x8xbf16>, vector<8x1024xbf16>, vector<11x1024xf32> -> vector<11x1024xf32>
    %54 = arith.addf %46, %53 : vector<11x1024xf32>
    %c0_42 = arith.constant 0 : index
    %c0_43 = arith.constant 0 : index
    %c65 = arith.constant 65 : index
    %55 = vector.load %arg1[%c0_42, %c0_43, %c65] : memref<1x8x1090xbf16, #tpu.memory_space<vmem>>, vector<1x8x1024xbf16>
    %56 = vector.shape_cast %55 : vector<1x8x1024xbf16> to vector<8x1024xbf16>
    %c7 = arith.constant 7 : index
    %c0_44 = arith.constant 0 : index
    %c0_45 = arith.constant 0 : index
    %57 = vector.load %arg2[%c7, %c0_44, %c0_45] : memref<9x11x8xbf16, #tpu.memory_space<vmem>>, vector<1x11x8xbf16>
    %58 = vector.shape_cast %57 : vector<1x11x8xbf16> to vector<11x8xbf16>
    %cst_46 = arith.constant dense<0.000000e+00> : vector<11x1024xf32>
    %59 = tpu.matmul %58, %56, %cst_46 {dimension_numbers = #tpu.dot_dimension_numbers<[1], [0], [0], [1], [0, 0, 1, 1], [], []>} : vector<11x8xbf16>, vector<8x1024xbf16>, vector<11x1024xf32> -> vector<11x1024xf32>
    %60 = arith.addf %54, %59 : vector<11x1024xf32>
    %c0_47 = arith.constant 0 : index
    %c0_48 = arith.constant 0 : index
    %c66 = arith.constant 66 : index
    %61 = vector.load %arg1[%c0_47, %c0_48, %c66] : memref<1x8x1090xbf16, #tpu.memory_space<vmem>>, vector<1x8x1024xbf16>
    %62 = vector.shape_cast %61 : vector<1x8x1024xbf16> to vector<8x1024xbf16>
    %63 = vector.broadcast %1 : vector<1x1024xbf16> to vector<8x1024xbf16>
    %64 = arith.mulf %62, %63 : vector<8x1024xbf16>
    %c8 = arith.constant 8 : index
    %c0_49 = arith.constant 0 : index
    %c0_50 = arith.constant 0 : index
    %65 = vector.load %arg2[%c8, %c0_49, %c0_50] : memref<9x11x8xbf16, #tpu.memory_space<vmem>>, vector<1x11x8xbf16>
    %66 = vector.shape_cast %65 : vector<1x11x8xbf16> to vector<11x8xbf16>
    %cst_51 = arith.constant dense<0.000000e+00> : vector<11x1024xf32>
    %67 = tpu.matmul %66, %64, %cst_51 {dimension_numbers = #tpu.dot_dimension_numbers<[1], [0], [0], [1], [0, 0, 1, 1], [], []>} : vector<11x8xbf16>, vector<8x1024xbf16>, vector<11x1024xf32> -> vector<11x1024xf32>
    %68 = arith.addf %60, %67 : vector<11x1024xf32>
    %c0_52 = arith.constant 0 : index
    %c0_53 = arith.constant 0 : index
    %69 = vector.load %arg4[%c0_52, %c0_53] : memref<11x1xf32, #tpu.memory_space<vmem>>, vector<11x1xf32>
    %70 = vector.broadcast %69 : vector<11x1xf32> to vector<11x1024xf32>
    %71 = arith.mulf %68, %70 : vector<11x1024xf32>
    %c0_54 = arith.constant 0 : index
    %c0_55 = arith.constant 0 : index
    %72 = vector.load %arg5[%c0_54, %c0_55] : memref<11x1xf32, #tpu.memory_space<vmem>>, vector<11x1xf32>
    %73 = vector.broadcast %72 : vector<11x1xf32> to vector<11x1024xf32>
    %74 = arith.addf %71, %73 : vector<11x1024xf32>
    %cst_56 = arith.constant 0.000000e+00 : f32
    %75 = vector.broadcast %cst_56 : f32 to vector<11x1024xf32>
    %76 = arith.maximumf %74, %75 : vector<11x1024xf32>
    %c0_57 = arith.constant 0 : index
    %c0_58 = arith.constant 0 : index
    %c0_59 = arith.constant 0 : index
    %77 = vector.load %arg6[%c0_57, %c0_58, %c0_59] : memref<1x11x1024xf32, #tpu.memory_space<vmem>>, vector<1x11x1024xf32>
    %78 = vector.shape_cast %77 : vector<1x11x1024xf32> to vector<11x1024xf32>
    %79 = vector.shape_cast %76 : vector<11x1024xf32> to vector<1x11x1024xf32>
    tpu.vector_store %arg6[%c0_57, %c0_58, %c0_59], %79 {strides = array<i32>} : memref<1x11x1024xf32, #tpu.memory_space<vmem>>, vector<1x11x1024xf32>,
    return
  }
  func.func @transform_0(%arg0: i32) -> (i32, i32, i32) {
    %c0_i32 = arith.constant 0 : i32
    %c0_i32_0 = arith.constant 0 : i32
    %c0_i32_1 = arith.constant 0 : i32
    return %arg0, %c0_i32, %c0_i32_0 : i32, i32, i32
  }
  func.func @transform_1(%arg0: i32) -> (i32, i32, i32) {
    %c0_i32 = arith.constant 0 : i32
    %c0_i32_0 = arith.constant 0 : i32
    %c0_i32_1 = arith.constant 0 : i32
    %c0_i32_2 = arith.constant 0 : i32
    return %c0_i32, %c0_i32_0, %c0_i32_1 : i32, i32, i32
  }
  func.func @transform_2(%arg0: i32) -> (i32, i32) {
    %c0_i32 = arith.constant 0 : i32
    %c0_i32_0 = arith.constant 0 : i32
    %c0_i32_1 = arith.constant 0 : i32
    return %c0_i32, %c0_i32_0 : i32, i32
  }
  func.func @transform_3(%arg0: i32) -> (i32, i32) {
    %c0_i32 = arith.constant 0 : i32
    %c0_i32_0 = arith.constant 0 : i32
    %c0_i32_1 = arith.constant 0 : i32
    return %c0_i32, %c0_i32_0 : i32, i32
  }
  func.func @transform_4(%arg0: i32) -> (i32, i32) {
    %c0_i32 = arith.constant 0 : i32
    %c0_i32_0 = arith.constant 0 : i32
    %c0_i32_1 = arith.constant 0 : i32
    return %c0_i32, %c0_i32_0 : i32, i32
  }
  func.func @transform_5(%arg0: i32) -> (i32, i32, i32) {
    %c0_i32 = arith.constant 0 : i32
    %c0_i32_0 = arith.constant 0 : i32
    %c0_i32_1 = arith.constant 0 : i32
    return %arg0, %c0_i32, %c0_i32_0 : i32, i32, i32
  }
}

</mosaic_0001>

<llo_original>
// kernel: conv2dt_forward.2
$region0: #{conv2dt_forward.2}
  #allocation0 [shape = 'u32[]', space=smem, size = 0x4, offset = 0x4, fixed_abs, tag = 'smem constant byte address 0x4 - core index']
  #allocation1 [shape = 'u32[144,128]{1,0:T(1,128)}', space=vmem, size = 0x12000, scoped, tag = 'internal scratch']
  %s0 = inlined_call_operand.vmem [shape: bf16[2,8,1090], index: 0, kind: input, shape index: {}]
  %s1 = inlined_call_operand.vmem [shape: bf16[9,11,8], index: 1, kind: input, shape index: {}]
  %s2 = inlined_call_operand.vmem [shape: bf16[2,1024], index: 2, kind: input, shape index: {}]
  %s3 = inlined_call_operand.vmem [shape: f32[2,11,1], index: 3, kind: output, shape index: {0}]
  %s4 = inlined_call_operand.vmem [shape: f32[2,11,1], index: 4, kind: output, shape index: {1}]
  %5 = xla_tuple %s3, %s4
  %s6 = sld [smem:[#allocation0]]
  $region53: #{conv2dt_forward.2} parent=0
    _
  %s8 = ssub.s32 1, %s6
  %s9 = scalar_select 0, %s8, %s6
  loop: start=0, step=1, limit=4
  $region2: #{conv2dt_forward.2} parent=0 // loop_pre_header
    _
  $region3: #{conv2dt_forward.2} parent=0 // loop_header
    %s11 = sphi 0, %s15
    %p12 = scmp.ge.s32.totalorder %s11, 4
    %s21 = sphi 0, %s23
    %s24 = sphi 0, %s21
    %s25 = sphi 0, %s24
    %s41 = sphi 0, %s25
    %s45 = sphi 0, %s45
    %s47 = sphi 0, %s45
    %s48 = sphi 0, %s47
    %s62 = sphi 0, %s48
    %s66 = sphi 0, %s66
    %s68 = sphi 0, %s66
    %s69 = sphi 0, %s68
    %s83 = sphi 0, %s69
    %s89 = sphi 0, %s91
    %s92 = sphi 0, %s89
    %s93 = sphi 0, %s92
    %s109 = sphi 0, %s93
    %s115 = sphi 0, %s117
    %s118 = sphi 0, %s115
    %s119 = sphi 0, %s118
    %s135 = sphi 0, %s119
  $region4: #{conv2dt_forward.2} parent=0 // loop_header_branch
    %14 = sbr.rel (%p12) target = $region8
  $region5: #{conv2dt_forward.2} parent=0 // loop_body
    %s16 = ssub.s32 %s11, 1
    %s17 = ssub.s32 %s11, 2
    %s18 = sadd.s32 %s11, 1
    %s19 = ssub.s32 %s11, %s18
    %p20 = scmp.eq.s32.totalorder %s19, 0
    %s22 = sadd.s32 %s21, 1
    %s23 = scalar_select %p20, %s21, %s22
    %p26 = pneg %p20
    %p27 = scmp.eq.s32.totalorder %s11, 1
    %p28 = por %p26, %p27
    %p29 = scmp.ne.s32.totalorder %s21, %s24
    %p30 = scmp.eq.s32.totalorder %s11, 0
    %p31 = por %p29, %p30
    %p32 = scmp.ne.s32.totalorder %s21, %s24
    %p33 = scmp.eq.s32.totalorder %s16, 1
    %p34 = por %p32, %p33
    %p35 = scmp.ne.s32.totalorder %s24, %s25
    %p36 = scmp.eq.s32.totalorder %s16, 0
    %p37 = por %p35, %p36
    %p38 = scmp.ne.s32.totalorder %s24, %s25
    %p39 = scmp.eq.s32.totalorder %s17, 1
    %p40 = por %p38, %p39
    %p42 = scmp.ne.s32.totalorder %s25, %s41
    %p43 = scmp.eq.s32.totalorder %s17, 0
    %p44 = por %p42, %p43
    %s46 = sadd.s32 %s45, 1
    %p49 = scmp.eq.s32.totalorder %s11, 1
    %p50 = scmp.ne.s32.totalorder %s45, %s47
    %p51 = scmp.eq.s32.totalorder %s11, 0
    %p52 = por %p50, %p51
    %p53 = scmp.ne.s32.totalorder %s45, %s47
    %p54 = scmp.eq.s32.totalorder %s16, 1
    %p55 = por %p53, %p54
    %p56 = scmp.ne.s32.totalorder %s47, %s48
    %p57 = scmp.eq.s32.totalorder %s16, 0
    %p58 = por %p56, %p57
    %p59 = scmp.ne.s32.totalorder %s47, %s48
    %p60 = scmp.eq.s32.totalorder %s17, 1
    %p61 = por %p59, %p60
    %p63 = scmp.ne.s32.totalorder %s48, %s62
    %p64 = scmp.eq.s32.totalorder %s17, 0
    %p65 = por %p63, %p64
    %s67 = sadd.s32 %s66, 1
    %p70 = scmp.eq.s32.totalorder %s11, 1
    %p71 = scmp.ne.s32.totalorder %s66, %s68
    %p72 = scmp.eq.s32.totalorder %s11, 0
    %p73 = por %p71, %p72
    %p74 = scmp.ne.s32.totalorder %s66, %s68
    %p75 = scmp.eq.s32.totalorder %s16, 1
    %p76 = por %p74, %p75
    %p77 = scmp.ne.s32.totalorder %s68, %s69
    %p78 = scmp.eq.s32.totalorder %s16, 0
    %p79 = por %p77, %p78
    %p80 = scmp.ne.s32.totalorder %s68, %s69
    %p81 = scmp.eq.s32.totalorder %s17, 1
    %p82 = por %p80, %p81
    %p84 = scmp.ne.s32.totalorder %s69, %s83
    %p85 = scmp.eq.s32.totalorder %s17, 0
    %p86 = por %p84, %p85
    %s87 = ssub.s32 %s11, %s18
    %p88 = scmp.eq.s32.totalorder %s87, 0
    %s90 = sadd.s32 %s89, 1
    %s91 = scalar_select %p88, %s89, %s90
    %p94 = pneg %p88
    %p95 = scmp.eq.s32.totalorder %s11, 1
    %p96 = por %p94, %p95
    %p97 = scmp.ne.s32.totalorder %s89, %s92
    %p98 = scmp.eq.s32.totalorder %s11, 0
    %p99 = por %p97, %p98
    %p100 = scmp.ne.s32.totalorder %s89, %s92
    %p101 = scmp.eq.s32.totalorder %s16, 1
    %p102 = por %p100, %p101
    %p103 = scmp.ne.s32.totalorder %s92, %s93
    %p104 = scmp.eq.s32.totalorder %s16, 0
    %p105 = por %p103, %p104
    %p106 = scmp.ne.s32.totalorder %s92, %s93
    %p107 = scmp.eq.s32.totalorder %s17, 1
    %p108 = por %p106, %p107
    %p110 = scmp.ne.s32.totalorder %s93, %s109
    %p111 = scmp.eq.s32.totalorder %s17, 0
    %p112 = por %p110, %p111
    %s113 = ssub.s32 %s11, %s18
    %p114 = scmp.eq.s32.totalorder %s113, 0
    %s116 = sadd.s32 %s115, 1
    %s117 = scalar_select %p114, %s115, %s116
    %p120 = pneg %p114
    %p121 = scmp.eq.s32.totalorder %s11, 1
    %p122 = por %p120, %p121
    %p123 = scmp.ne.s32.totalorder %s115, %s118
    %p124 = scmp.eq.s32.totalorder %s11, 0
    %p125 = por %p123, %p124
    %p126 = scmp.ne.s32.totalorder %s115, %s118
    %p127 = scmp.eq.s32.totalorder %s16, 1
    %p128 = por %p126, %p127
    %p129 = scmp.ne.s32.totalorder %s118, %s119
    %p130 = scmp.eq.s32.totalorder %s16, 0
    %p131 = por %p129, %p130
    %p132 = scmp.ne.s32.totalorder %s118, %s119
    %p133 = scmp.eq.s32.totalorder %s17, 1
    %p134 = por %p132, %p133
    %p136 = scmp.ne.s32.totalorder %s119, %s135
    %p137 = scmp.eq.s32.totalorder %s17, 0
    %p138 = por %p136, %p137
    %p139 = scmp.le.s32.totalorder 1, %s11
    %p140 = scmp.lt.s32.totalorder %s11, 3
    %p141 = pnand %p139, %p140
    %p142 = pneg %p141
    // Predicated region
    $region9: #{conv2dt_forward.2} parent=5 // pred_check
      _
    $region10: #{conv2dt_forward.2} parent=5 // pred_check_branch
      %144 = sbr.rel (%p141) target = $region12
    $region11: #{conv2dt_forward.2} parent=5 // pred_region
      %s145 = ssub.s32 %s11, 1
      // Predicated region
      $region13: #{conv2dt_forward.2} parent=11 // pred_check
        %p146 = pneg %p58
      $region14: #{conv2dt_forward.2} parent=11 // pred_check_branch
        %148 = sbr.rel (%p146) target = $region16
      $region15: #{conv2dt_forward.2} parent=11 // pred_region
        _
      $region16: #{conv2dt_forward.2} parent=11 // pred_fallthru
        _
      // Predicated region
      $region17: #{conv2dt_forward.2} parent=11 // pred_check
        %p149 = pneg %p79
      $region18: #{conv2dt_forward.2} parent=11 // pred_check_branch
        %151 = sbr.rel (%p149) target = $region20
      $region19: #{conv2dt_forward.2} parent=11 // pred_region
        _
      $region20: #{conv2dt_forward.2} parent=11 // pred_fallthru
        _
    $region12: #{conv2dt_forward.2} parent=5 // pred_fallthru
      _
    %p152 = scmp.lt.s32.totalorder %s11, 2
    // Predicated region
    $region21: #{conv2dt_forward.2} parent=5 // pred_check
      %p153 = pneg %p152
    $region22: #{conv2dt_forward.2} parent=5 // pred_check_branch
      %155 = sbr.rel (%p153) target = $region24
    $region23: #{conv2dt_forward.2} parent=5 // pred_region
      // Predicated region
      $region25: #{conv2dt_forward.2} parent=23 // pred_check
        %p156 = pneg %p31
      $region26: #{conv2dt_forward.2} parent=23 // pred_check_branch
        %158 = sbr.rel (%p156) target = $region28
      $region27: #{conv2dt_forward.2} parent=23 // pred_region
        %p159 = scmp.lt.s32.totalorder %s11, 1
        %s160 = scalar_select %p159, %s11, 1
        %s161 = smul.addr %s160, 9
        %s162 = smul.addr %s161, 4
        %s163 = scalar_lea.vmem %s0, %s162
      $region28: #{conv2dt_forward.2} parent=23 // pred_fallthru
        _
    $region24: #{conv2dt_forward.2} parent=5 // pred_fallthru
      _
    %p164 = scmp.le.s32.totalorder 1, %s11
    %p165 = scmp.lt.s32.totalorder %s11, 3
    %p166 = pnand %p164, %p165
    %p167 = pneg %p166
    // Predicated region
    $region29: #{conv2dt_forward.2} parent=5 // pred_check
      _
    $region30: #{conv2dt_forward.2} parent=5 // pred_check_branch
      %169 = sbr.rel (%p166) target = $region32
    $region31: #{conv2dt_forward.2} parent=5 // pred_region
      %s170 = ssub.s32 %s11, 1
      %p171 = scmp.lt.s32.totalorder %s16, 1
      %s172 = scalar_select %p171, %s16, 1
      %s173 = smul.addr %s172, 9
      %s174 = smul.addr %s173, 4
      %s175 = scalar_lea.vmem %s0, %s174
      %p176 = pneg %p37
      %p177 = pneg %p34
      %p178 = pneg %p58
      %p179 = pneg %p55
      %p180 = pneg %p79
      %p181 = pneg %p76
      %p182 = pneg %p105
      %p183 = pneg %p102
      %p184 = scmp.lt.s32.totalorder %s16, 1
      %s185 = scalar_select %p184, %s16, 1
      %s186 = smul.addr %s185, 2
      %s187 = smul.addr %s186, 8
      %s188 = scalar_lea.vmem %s3, %s187
      %p189 = pneg %p131
      %p190 = pneg %p128
      %p191 = scmp.lt.s32.totalorder %s16, 1
      %s192 = scalar_select %p191, %s16, 1
      %s193 = smul.addr %s192, 2
      %s194 = smul.addr %s193, 8
      %s195 = scalar_lea.vmem %s4, %s194
      %p196 = scmp.lt.s32.totalorder %s16, 1
      %s197 = scalar_select %p196, %s16, 1
      %s198 = smul.addr %s197, 9
      %s199 = smul.addr %s198, 4
      %s200 = scalar_lea.vmem %s0, %s199
      %p201 = scmp.lt.s32.totalorder %s16, 1
      %s202 = scalar_select %p201, %s16, 1
      %s203 = smul.addr %s202, 2
      %s204 = smul.addr %s203, 8
      %s205 = scalar_lea.vmem %s3, %s204
      %p206 = scmp.lt.s32.totalorder %s16, 1
      %s207 = scalar_select %p206, %s16, 1
      %s208 = smul.addr %s207, 2
      %s209 = smul.addr %s208, 8
      %s210 = scalar_lea.vmem %s4, %s209
      %v212 = vld [vmem:[%s2] sm:$0xff]
      %v213 = vld [vmem:[%s200] sm:$0xff]
      %v214 = vld [vmem:[%s200 + $0x8] sm:$0xff]
      %v215 = vld [vmem:[%s200 + $0x10] sm:$0xff]
      %v216 = vld [vmem:[%s200 + $0x18] sm:$0xff]
      %v218 = vcombine.high %v212, %v212
      %v220 = vunpack.c.l.s4 1966171168
      %v221 = vunpack.c.0.s8 %v220
      %v222 = vlaneseq
      %v223 = vshrl.u32 %v222, 7
      %v224 = vsub.s32 %v221, %v223
      %v225 = vrot.slane %v212, %v224
      %v227 = vunpack.c.l.s4 1966171168
      %v228 = vunpack.c.0.s8 %v227
      %v229 = vlaneseq
      %v230 = vshrl.u32 %v229, 7
      %v231 = vsub.s32 %v228, %v230
      %v232 = vrot.slane %v218, %v231
      %v233 = vcombine.high %v225, %v225
      %v234 = vcombine.high %v232, %v232
      %v236 = vunpack.c.l.s4 1966171168
      %v237 = vunpack.c.0.s8 %v236
      %v238 = vlaneseq
      %v239 = vshrl.u32 %v238, 7
      %v240 = vsub.s32 %v237, %v239
      %v241 = vrot.slane %v225, %v240
      %v243 = vunpack.c.l.s4 1966171168
      %v244 = vunpack.c.0.s8 %v243
      %v245 = vlaneseq
      %v246 = vshrl.u32 %v245, 7
      %v247 = vsub.s32 %v244, %v246
      %v248 = vrot.slane %v232, %v247
      %v250 = vunpack.c.l.s4 1966171168
      %v251 = vunpack.c.0.s8 %v250
      %v252 = vlaneseq
      %v253 = vshrl.u32 %v252, 7
      %v254 = vsub.s32 %v251, %v253
      %v255 = vrot.slane %v233, %v254
      %v257 = vunpack.c.l.s4 1966171168
      %v258 = vunpack.c.0.s8 %v257
      %v259 = vlaneseq
      %v260 = vshrl.u32 %v259, 7
      %v261 = vsub.s32 %v258, %v260
      %v262 = vrot.slane %v234, %v261
      %v263 = vcombine.high %v241, %v241
      %v264 = vcombine.high %v248, %v248
      %v265 = vcombine.high %v255, %v255
      %v266 = vcombine.high %v262, %v262
      %v268 = vpack.i.b16 %v241, %v241
      %v270 = vlaneseq
      %v271 = vshrl.u32 %v270, 7
      %v272 = vsub.s32 0, %v271
      %v273 = vrot.slane %v268, %v272
      %v275 = vpack.i.b16 %v255, %v255
      %v277 = vlaneseq
      %v278 = vshrl.u32 %v277, 7
      %v279 = vsub.s32 0, %v278
      %v280 = vrot.slane %v275, %v279
      %v282 = vpack.i.b16 %v263, %v263
      %v284 = vlaneseq
      %v285 = vshrl.u32 %v284, 7
      %v286 = vsub.s32 0, %v285
      %v287 = vrot.slane %v282, %v286
      %v289 = vpack.i.b16 %v265, %v265
      %v291 = vlaneseq
      %v292 = vshrl.u32 %v291, 7
      %v293 = vsub.s32 0, %v292
      %v294 = vrot.slane %v289, %v293
      %v296 = vpack.i.b16 %v248, %v248
      %v298 = vlaneseq
      %v299 = vshrl.u32 %v298, 7
      %v300 = vsub.s32 0, %v299
      %v301 = vrot.slane %v296, %v300
      %v303 = vpack.i.b16 %v262, %v262
      %v305 = vlaneseq
      %v306 = vshrl.u32 %v305, 7
      %v307 = vsub.s32 0, %v306
      %v308 = vrot.slane %v303, %v307
      %v310 = vpack.i.b16 %v264, %v264
      %v312 = vlaneseq
      %v313 = vshrl.u32 %v312, 7
      %v314 = vsub.s32 0, %v313
      %v315 = vrot.slane %v310, %v314
      %v317 = vpack.i.b16 %v266, %v266
      %v319 = vlaneseq
      %v320 = vshrl.u32 %v319, 7
      %v321 = vsub.s32 0, %v320
      %v322 = vrot.slane %v317, %v321
      %v331 = vunpack.c.l.b16 %v273
      %v332 = vunpack.c.l.b16 %v280
      %v333 = vunpack.c.l.b16 %v287
      %v334 = vunpack.c.l.b16 %v294
      %v335 = vunpack.c.l.b16 %v301
      %v336 = vunpack.c.l.b16 %v308
      %v337 = vunpack.c.l.b16 %v315
      %v338 = vunpack.c.l.b16 %v322
      %v339 = vpack.c.b16 %v332, %v331
      %v340 = vpack.c.b16 %v334, %v333
      %v341 = vpack.c.b16 %v336, %v335
      %v342 = vpack.c.b16 %v338, %v337
      %v347 = vmul.bf16 %v213, %v339
      %v348 = vmul.bf16 %v214, %v340
      %v349 = vmul.bf16 %v215, %v341
      %v350 = vmul.bf16 %v216, %v342
      %v351 = vld [vmem:[%s1] sm:$0xf]
      %v352 = vld [vmem:[%s1 + $0x4] sm:$0x3]
      %v353 = vld [vmem:[%s200 + $0x20] sm:$0xf]
      %s354 = scalar_lea.vmem %s1, 8
      %v355 = vld [vmem:[%s354] sm:$0xf]
      %v356 = vld [vmem:[%s354 + $0x4] sm:$0x3]
      %v359 = vunpack.c.l.b16 %v355
      %v360 = vunpack.c.l.b16 %v356
      %v361 = vpack.c.b16 %v360, %v359
      %v367 = vunpack.c.l.b16 %v213
      %v368 = vunpack.c.h.b16 %v213
      %v369 = vunpack.c.l.b16 %v214
      %v370 = vunpack.c.h.b16 %v214
      %v371 = vunpack.c.l.b16 %v215
      %v372 = vunpack.c.h.b16 %v215
      %v373 = vunpack.c.l.b16 %v216
      %v374 = vunpack.c.h.b16 %v216
      %v375 = vunpack.c.l.b16 %v353
      %v376 = vpack.c.b16 %v367, %v367
      %v377 = vpack.c.b16 %v368, %v368
      %v378 = vpack.c.b16 %v369, %v369
      %v379 = vpack.c.b16 %v370, %v370
      %v380 = vpack.c.b16 %v371, %v371
      %v381 = vpack.c.b16 %v372, %v372
      %v382 = vpack.c.b16 %v373, %v373
      %v383 = vpack.c.b16 %v374, %v374
      %v384 = vpack.c.b16 %v375, %v375
      %385 = vrot.lane.b32.xlu0 %v376, 127
      %v386 = vpop.permute.xlu0 %385
      %387 = vrot.lane.b32.xlu0 %v377, 127
      %v388 = vpop.permute.xlu0 %387
      %389 = vrot.lane.b32.xlu0 %v378, 127
      %v390 = vpop.permute.xlu0 %389
      %391 = vrot.lane.b32.xlu0 %v379, 127
      %v392 = vpop.permute.xlu0 %391
      %393 = vrot.lane.b32.xlu0 %v380, 127
      %v394 = vpop.permute.xlu0 %393
      %395 = vrot.lane.b32.xlu0 %v381, 127
      %v396 = vpop.permute.xlu0 %395
      %397 = vrot.lane.b32.xlu0 %v382, 127
      %v398 = vpop.permute.xlu0 %397
      %399 = vrot.lane.b32.xlu0 %v383, 127
      %v400 = vpop.permute.xlu0 %399
      %401 = vrot.lane.b32.xlu0 %v384, 127
      %v402 = vpop.permute.xlu0 %401
      %vm403 = vcmask 1039360
      %v404 = vsel %vm403, %v386, %v388
      %v405 = vsel %vm403, %v388, %v390
      %v406 = vsel %vm403, %v390, %v392
      %v407 = vsel %vm403, %v392, %v394
      %v408 = vsel %vm403, %v394, %v396
      %v409 = vsel %vm403, %v396, %v398
      %v410 = vsel %vm403, %v398, %v400
      %v411 = vsel %vm403, %v400, %v402
      %vm412 = vcmask 64512
      %v414 = vsel %vm412, %v361, 0
      %vm416 = vcmask 1043456
      %v418 = vsel %vm416, %v404, 0
      %v421 = vsel %vm416, %v405, 0
      %v424 = vsel %vm416, %v406, 0
      %v427 = vsel %vm416, %v407, 0
      %v430 = vsel %vm416, %v408, 0
      %v433 = vsel %vm416, %v409, 0
      %v436 = vsel %vm416, %v410, 0
      %v439 = vsel %vm416, %v411, 0
      %441 = vmatprep.subr.bf16.mxu0 %v421
      %442 = vmatpush1.bf16.msra.mxu0 %v418
      %443 = vmatprep.subr.bf16.mxu0 0
      %444 = vmatpush1.bf16.msra.mxu0 0
      %445 = vmatprep.subr.bf16.mxu0 0
      %446 = vmatpush1.bf16.msra.mxu0 0
      %447 = vmatprep.subr.bf16.mxu0 0
      %448 = vmatpush1.bf16.msra.mxu0 0
      %449 = vmatprep.subr.bf16.mxu0 0
      %450 = vmatpush1.bf16.msra.mxu0 0
      %451 = vmatprep.subr.bf16.mxu0 0
      %452 = vmatpush1.bf16.msra.mxu0 0
      %453 = vmatprep.subr.bf16.mxu0 0
      %454 = vmatpush1.bf16.msra.mxu0 0
      %455 = vmatprep.subr.bf16.mxu0 0
      %456 = vmatpush1.bf16.msra.mxu0 0
      %457 = vmatprep.subr.bf16.mxu0 0
      %458 = vmatpush1.bf16.msra.mxu0 0
      %459 = vmatprep.subr.bf16.mxu0 0
      %460 = vmatpush1.bf16.msra.mxu0 0
      %461 = vmatprep.subr.bf16.mxu0 0
      %462 = vmatpush1.bf16.msra.mxu0 0
      %463 = vmatprep.subr.bf16.mxu0 0
      %464 = vmatpush1.bf16.msra.mxu0 0
      %465 = vmatprep.subr.bf16.mxu0 0
      %466 = vmatpush1.bf16.msra.mxu0 0
      %467 = vmatprep.subr.bf16.mxu0 0
      %468 = vmatpush1.bf16.msra.mxu0 0
      %469 = vmatprep.subr.bf16.mxu0 0
      %470 = vmatpush1.bf16.msra.mxu0 0
      %471 = vmatprep.subr.bf16.mxu0 0
      %472 = vmatpush1.bf16.msra.mxu0 0
      %473 = vmatprep.mubr.bf16.mxu0 0
      %474 = vmatmul.mubr.bf16.gmra.mrb[0].mxu0 %v414
      %v475 = vpop.f32.mrb[0].mxu0
      %v476 = vadd.f32 0.0, %v475
      %v477 = vpop.f32.mrb[0].mxu0
      %v478 = vadd.f32 0.0, %v477
      %v479 = vpop.f32.mrb[0].mxu0
      %v480 = vadd.f32 0.0, %v479
      %v481 = vpop.f32.mrb[0].mxu0
      %v482 = vadd.f32 0.0, %v481
      %483 = vdwg.mxu0
      %484 = vmatprep.subr.bf16.mxu0 %v427
      %485 = vmatpush1.bf16.msra.mxu0 %v424
      %486 = vmatprep.subr.bf16.mxu0 0
      %487 = vmatpush1.bf16.msra.mxu0 0
      %488 = vmatprep.subr.bf16.mxu0 0
      %489 = vmatpush1.bf16.msra.mxu0 0
      %490 = vmatprep.subr.bf16.mxu0 0
      %491 = vmatpush1.bf16.msra.mxu0 0
      %492 = vmatprep.subr.bf16.mxu0 0
      %493 = vmatpush1.bf16.msra.mxu0 0
      %494 = vmatprep.subr.bf16.mxu0 0
      %495 = vmatpush1.bf16.msra.mxu0 0
      %496 = vmatprep.subr.bf16.mxu0 0
      %497 = vmatpush1.bf16.msra.mxu0 0
      %498 = vmatprep.subr.bf16.mxu0 0
      %499 = vmatpush1.bf16.msra.mxu0 0
      %500 = vmatprep.subr.bf16.mxu0 0
      %501 = vmatpush1.bf16.msra.mxu0 0
      %502 = vmatprep.subr.bf16.mxu0 0
      %503 = vmatpush1.bf16.msra.mxu0 0
      %504 = vmatprep.subr.bf16.mxu0 0
      %505 = vmatpush1.bf16.msra.mxu0 0
      %506 = vmatprep.subr.bf16.mxu0 0
      %507 = vmatpush1.bf16.msra.mxu0 0
      %508 = vmatprep.subr.bf16.mxu0 0
      %509 = vmatpush1.bf16.msra.mxu0 0
      %510 = vmatprep.subr.bf16.mxu0 0
      %511 = vmatpush1.bf16.msra.mxu0 0
      %512 = vmatprep.subr.bf16.mxu0 0
      %513 = vmatpush1.bf16.msra.mxu0 0
      %514 = vmatprep.subr.bf16.mxu0 0
      %515 = vmatpush1.bf16.msra.mxu0 0
      %516 = vmatprep.mubr.bf16.mxu0 0
      %517 = vmatmul.mubr.bf16.gmra.mrb[0].mxu0 %v414
      %v518 = vpop.f32.mrb[0].mxu0
      %v519 = vadd.f32 0.0, %v518
      %v520 = vpop.f32.mrb[0].mxu0
      %v521 = vadd.f32 0.0, %v520
      %v522 = vpop.f32.mrb[0].mxu0
      %v523 = vadd.f32 0.0, %v522
      %v524 = vpop.f32.mrb[0].mxu0
      %v525 = vadd.f32 0.0, %v524
      %526 = vdwg.mxu0
      %527 = vmatprep.subr.bf16.mxu0 %v433
      %528 = vmatpush1.bf16.msra.mxu0 %v430
      %529 = vmatprep.subr.bf16.mxu0 0
      %530 = vmatpush1.bf16.msra.mxu0 0
      %531 = vmatprep.subr.bf16.mxu0 0
      %532 = vmatpush1.bf16.msra.mxu0 0
      %533 = vmatprep.subr.bf16.mxu0 0
      %534 = vmatpush1.bf16.msra.mxu0 0
      %535 = vmatprep.subr.bf16.mxu0 0
      %536 = vmatpush1.bf16.msra.mxu0 0
      %537 = vmatprep.subr.bf16.mxu0 0
      %538 = vmatpush1.bf16.msra.mxu0 0
      %539 = vmatprep.subr.bf16.mxu0 0
      %540 = vmatpush1.bf16.msra.mxu0 0
      %541 = vmatprep.subr.bf16.mxu0 0
      %542 = vmatpush1.bf16.msra.mxu0 0
      %543 = vmatprep.subr.bf16.mxu0 0
      %544 = vmatpush1.bf16.msra.mxu0 0
      %545 = vmatprep.subr.bf16.mxu0 0
      %546 = vmatpush1.bf16.msra.mxu0 0
      %547 = vmatprep.subr.bf16.mxu0 0
      %548 = vmatpush1.bf16.msra.mxu0 0
      %549 = vmatprep.subr.bf16.mxu0 0
      %550 = vmatpush1.bf16.msra.mxu0 0
      %551 = vmatprep.subr.bf16.mxu0 0
      %552 = vmatpush1.bf16.msra.mxu0 0
      %553 = vmatprep.subr.bf16.mxu0 0
      %554 = vmatpush1.bf16.msra.mxu0 0
      %555 = vmatprep.subr.bf16.mxu0 0
      %556 = vmatpush1.bf16.msra.mxu0 0
      %557 = vmatprep.subr.bf16.mxu0 0
      %558 = vmatpush1.bf16.msra.mxu0 0
      %559 = vmatprep.mubr.bf16.mxu0 0
      %560 = vmatmul.mubr.bf16.gmra.mrb[0].mxu0 %v414
      %v561 = vpop.f32.mrb[0].mxu0
      %v562 = vadd.f32 0.0, %v561
      %v563 = vpop.f32.mrb[0].mxu0
      %v564 = vadd.f32 0.0, %v563
      %v565 = vpop.f32.mrb[0].mxu0
      %v566 = vadd.f32 0.0, %v565
      %v567 = vpop.f32.mrb[0].mxu0
      %v568 = vadd.f32 0.0, %v567
      %569 = vdwg.mxu0
      %570 = vmatprep.subr.bf16.mxu0 %v439
      %571 = vmatpush1.bf16.msra.mxu0 %v436
      %572 = vmatprep.subr.bf16.mxu0 0
      %573 = vmatpush1.bf16.msra.mxu0 0
      %574 = vmatprep.subr.bf16.mxu0 0
      %575 = vmatpush1.bf16.msra.mxu0 0
      %576 = vmatprep.subr.bf16.mxu0 0
      %577 = vmatpush1.bf16.msra.mxu0 0
      %578 = vmatprep.subr.bf16.mxu0 0
      %579 = vmatpush1.bf16.msra.mxu0 0
      %580 = vmatprep.subr.bf16.mxu0 0
      %581 = vmatpush1.bf16.msra.mxu0 0
      %582 = vmatprep.subr.bf16.mxu0 0
      %583 = vmatpush1.bf16.msra.mxu0 0
      %584 = vmatprep.subr.bf16.mxu0 0
      %585 = vmatpush1.bf16.msra.mxu0 0
      %586 = vmatprep.subr.bf16.mxu0 0
      %587 = vmatpush1.bf16.msra.mxu0 0
      %588 = vmatprep.subr.bf16.mxu0 0
      %589 = vmatpush1.bf16.msra.mxu0 0
      %590 = vmatprep.subr.bf16.mxu0 0
      %591 = vmatpush1.bf16.msra.mxu0 0
      %592 = vmatprep.subr.bf16.mxu0 0
      %593 = vmatpush1.bf16.msra.mxu0 0
      %594 = vmatprep.subr.bf16.mxu0 0
      %595 = vmatpush1.bf16.msra.mxu0 0
      %596 = vmatprep.subr.bf16.mxu0 0
      %597 = vmatpush1.bf16.msra.mxu0 0
      %598 = vmatprep.subr.bf16.mxu0 0
      %599 = vmatpush1.bf16.msra.mxu0 0
      %600 = vmatprep.subr.bf16.mxu0 0
      %601 = vmatpush1.bf16.msra.mxu0 0
      %602 = vmatprep.mubr.bf16.mxu0 0
      %603 = vmatmul.mubr.bf16.gmra.mrb[0].mxu0 %v414
      %v604 = vpop.f32.mrb[0].mxu0
      %v605 = vadd.f32 0.0, %v604
      %v606 = vpop.f32.mrb[0].mxu0
      %v607 = vadd.f32 0.0, %v606
      %v608 = vpop.f32.mrb[0].mxu0
      %v609 = vadd.f32 0.0, %v608
      %v610 = vpop.f32.mrb[0].mxu0
      %v611 = vadd.f32 0.0, %v610
      %612 = vdwg.mxu0
      %v615 = vunpack.c.l.b16 %v351
      %v616 = vunpack.c.l.b16 %v352
      %v617 = vpack.c.b16 %v616, %v615
      %v622 = vunpack.c.l.b16 %v347
      %v623 = vunpack.c.h.b16 %v347
      %v624 = vunpack.c.l.b16 %v348
      %v625 = vunpack.c.h.b16 %v348
      %v626 = vunpack.c.l.b16 %v349
      %v627 = vunpack.c.h.b16 %v349
      %v628 = vunpack.c.l.b16 %v350
      %v629 = vunpack.c.h.b16 %v350
      %v630 = vpack.c.b16 %v622, %v622
      %v631 = vpack.c.b16 %v623, %v623
      %v632 = vpack.c.b16 %v624, %v624
      %v633 = vpack.c.b16 %v625, %v625
      %v634 = vpack.c.b16 %v626, %v626
      %v635 = vpack.c.b16 %v627, %v627
      %v636 = vpack.c.b16 %v628, %v628
      %v637 = vpack.c.b16 %v629, %v629
      %v639 = vsel %vm412, %v617, 0
      %v642 = vsel %vm416, %v630, 0
      %v645 = vsel %vm416, %v631, 0
      %v648 = vsel %vm416, %v632, 0
      %v651 = vsel %vm416, %v633, 0
      %v654 = vsel %vm416, %v634, 0
      %v657 = vsel %vm416, %v635, 0
      %v660 = vsel %vm416, %v636, 0
      %v663 = vsel %vm416, %v637, 0
      %665 = vmatprep.subr.bf16.mxu0 %v645
      %666 = vmatpush1.bf16.msra.mxu0 %v642
      %667 = vmatprep.subr.bf16.mxu0 0
      %668 = vmatpush1.bf16.msra.mxu0 0
      %669 = vmatprep.subr.bf16.mxu0 0
      %670 = vmatpush1.bf16.msra.mxu0 0
      %671 = vmatprep.subr.bf16.mxu0 0
      %672 = vmatpush1.bf16.msra.mxu0 0
      %673 = vmatprep.subr.bf16.mxu0 0
      %674 = vmatpush1.bf16.msra.mxu0 0
      %675 = vmatprep.subr.bf16.mxu0 0
      %676 = vmatpush1.bf16.msra.mxu0 0
      %677 = vmatprep.subr.bf16.mxu0 0
      %678 = vmatpush1.bf16.msra.mxu0 0
      %679 = vmatprep.subr.bf16.mxu0 0
      %680 = vmatpush1.bf16.msra.mxu0 0
      %681 = vmatprep.subr.bf16.mxu0 0
      %682 = vmatpush1.bf16.msra.mxu0 0
      %683 = vmatprep.subr.bf16.mxu0 0
      %684 = vmatpush1.bf16.msra.mxu0 0
      %685 = vmatprep.subr.bf16.mxu0 0
      %686 = vmatpush1.bf16.msra.mxu0 0
      %687 = vmatprep.subr.bf16.mxu0 0
      %688 = vmatpush1.bf16.msra.mxu0 0
      %689 = vmatprep.subr.bf16.mxu0 0
      %690 = vmatpush1.bf16.msra.mxu0 0
      %691 = vmatprep.subr.bf16.mxu0 0
      %692 = vmatpush1.bf16.msra.mxu0 0
      %693 = vmatprep.subr.bf16.mxu0 0
      %694 = vmatpush1.bf16.msra.mxu0 0
      %695 = vmatprep.subr.bf16.mxu0 0
      %696 = vmatpush1.bf16.msra.mxu0 0
      %697 = vmatprep.mubr.bf16.mxu0 0
      %698 = vmatmul.mubr.bf16.gmra.mrb[0].mxu0 %v639
      %v699 = vpop.f32.mrb[0].mxu0
      %v700 = vadd.f32 %v476, %v699
      %v701 = vpop.f32.mrb[0].mxu0
      %v702 = vadd.f32 %v478, %v701
      %v703 = vpop.f32.mrb[0].mxu0
      %v704 = vadd.f32 %v480, %v703
      %v705 = vpop.f32.mrb[0].mxu0
      %v706 = vadd.f32 %v482, %v705
      %707 = vdwg.mxu0
      %708 = vmatprep.subr.bf16.mxu0 %v651
      %709 = vmatpush1.bf16.msra.mxu0 %v648
      %710 = vmatprep.subr.bf16.mxu0 0
      %711 = vmatpush1.bf16.msra.mxu0 0
      %712 = vmatprep.subr.bf16.mxu0 0
      %713 = vmatpush1.bf16.msra.mxu0 0
      %714 = vmatprep.subr.bf16.mxu0 0
      %715 = vmatpush1.bf16.msra.mxu0 0
      %716 = vmatprep.subr.bf16.mxu0 0
      %717 = vmatpush1.bf16.msra.mxu0 0
      %718 = vmatprep.subr.bf16.mxu0 0
      %719 = vmatpush1.bf16.msra.mxu0 0
      %720 = vmatprep.subr.bf16.mxu0 0
      %721 = vmatpush1.bf16.msra.mxu0 0
      %722 = vmatprep.subr.bf16.mxu0 0
      %723 = vmatpush1.bf16.msra.mxu0 0
      %724 = vmatprep.subr.bf16.mxu0 0
      %725 = vmatpush1.bf16.msra.mxu0 0
      %726 = vmatprep.subr.bf16.mxu0 0
      %727 = vmatpush1.bf16.msra.mxu0 0
      %728 = vmatprep.subr.bf16.mxu0 0
      %729 = vmatpush1.bf16.msra.mxu0 0
      %730 = vmatprep.subr.bf16.mxu0 0
      %731 = vmatpush1.bf16.msra.mxu0 0
      %732 = vmatprep.subr.bf16.mxu0 0
      %733 = vmatpush1.bf16.msra.mxu0 0
      %734 = vmatprep.subr.bf16.mxu0 0
      %735 = vmatpush1.bf16.msra.mxu0 0
      %736 = vmatprep.subr.bf16.mxu0 0
      %737 = vmatpush1.bf16.msra.mxu0 0
      %738 = vmatprep.subr.bf16.mxu0 0
      %739 = vmatpush1.bf16.msra.mxu0 0
      %740 = vmatprep.mubr.bf16.mxu0 0
      %741 = vmatmul.mubr.bf16.gmra.mrb[0].mxu0 %v639
      %v742 = vpop.f32.mrb[0].mxu0
      %v743 = vadd.f32 %v519, %v742
      %v744 = vpop.f32.mrb[0].mxu0
      %v745 = vadd.f32 %v521, %v744
      %v746 = vpop.f32.mrb[0].mxu0
      %v747 = vadd.f32 %v523, %v746
      %v748 = vpop.f32.mrb[0].mxu0
      %v749 = vadd.f32 %v525, %v748
      %750 = vdwg.mxu0
      %751 = vmatprep.subr.bf16.mxu0 %v657
      %752 = vmatpush1.bf16.msra.mxu0 %v654
      %753 = vmatprep.subr.bf16.mxu0 0
      %754 = vmatpush1.bf16.msra.mxu0 0
      %755 = vmatprep.subr.bf16.mxu0 0
      %756 = vmatpush1.bf16.msra.mxu0 0
      %757 = vmatprep.subr.bf16.mxu0 0
      %758 = vmatpush1.bf16.msra.mxu0 0
      %759 = vmatprep.subr.bf16.mxu0 0
      %760 = vmatpush1.bf16.msra.mxu0 0
      %761 = vmatprep.subr.bf16.mxu0 0
      %762 = vmatpush1.bf16.msra.mxu0 0
      %763 = vmatprep.subr.bf16.mxu0 0
      %764 = vmatpush1.bf16.msra.mxu0 0
      %765 = vmatprep.subr.bf16.mxu0 0
      %766 = vmatpush1.bf16.msra.mxu0 0
      %767 = vmatprep.subr.bf16.mxu0 0
      %768 = vmatpush1.bf16.msra.mxu0 0
      %769 = vmatprep.subr.bf16.mxu0 0
      %770 = vmatpush1.bf16.msra.mxu0 0
      %771 = vmatprep.subr.bf16.mxu0 0
      %772 = vmatpush1.bf16.msra.mxu0 0
      %773 = vmatprep.subr.bf16.mxu0 0
      %774 = vmatpush1.bf16.msra.mxu0 0
      %775 = vmatprep.subr.bf16.mxu0 0
      %776 = vmatpush1.bf16.msra.mxu0 0
      %777 = vmatprep.subr.bf16.mxu0 0
      %778 = vmatpush1.bf16.msra.mxu0 0
      %779 = vmatprep.subr.bf16.mxu0 0
      %780 = vmatpush1.bf16.msra.mxu0 0
      %781 = vmatprep.subr.bf16.mxu0 0
      %782 = vmatpush1.bf16.msra.mxu0 0
      %783 = vmatprep.mubr.bf16.mxu0 0
      %784 = vmatmul.mubr.bf16.gmra.mrb[0].mxu0 %v639
      %v785 = vpop.f32.mrb[0].mxu0
      %v786 = vadd.f32 %v562, %v785
      %v787 = vpop.f32.mrb[0].mxu0
      %v788 = vadd.f32 %v564, %v787
      %v789 = vpop.f32.mrb[0].mxu0
      %v790 = vadd.f32 %v566, %v789
      %v791 = vpop.f32.mrb[0].mxu0
      %v792 = vadd.f32 %v568, %v791
      %793 = vdwg.mxu0
      %794 = vmatprep.subr.bf16.mxu0 %v663
      %795 = vmatpush1.bf16.msra.mxu0 %v660
      %796 = vmatprep.subr.bf16.mxu0 0
      %797 = vmatpush1.bf16.msra.mxu0 0
      %798 = vmatprep.subr.bf16.mxu0 0
      %799 = vmatpush1.bf16.msra.mxu0 0
      %800 = vmatprep.subr.bf16.mxu0 0
      %801 = vmatpush1.bf16.msra.mxu0 0
      %802 = vmatprep.subr.bf16.mxu0 0
      %803 = vmatpush1.bf16.msra.mxu0 0
      %804 = vmatprep.subr.bf16.mxu0 0
      %805 = vmatpush1.bf16.msra.mxu0 0
      %806 = vmatprep.subr.bf16.mxu0 0
      %807 = vmatpush1.bf16.msra.mxu0 0
      %808 = vmatprep.subr.bf16.mxu0 0
      %809 = vmatpush1.bf16.msra.mxu0 0
      %810 = vmatprep.subr.bf16.mxu0 0
      %811 = vmatpush1.bf16.msra.mxu0 0
      %812 = vmatprep.subr.bf16.mxu0 0
      %813 = vmatpush1.bf16.msra.mxu0 0
      %814 = vmatprep.subr.bf16.mxu0 0
      %815 = vmatpush1.bf16.msra.mxu0 0
      %816 = vmatprep.subr.bf16.mxu0 0
      %817 = vmatpush1.bf16.msra.mxu0 0
      %818 = vmatprep.subr.bf16.mxu0 0
      %819 = vmatpush1.bf16.msra.mxu0 0
      %820 = vmatprep.subr.bf16.mxu0 0
      %821 = vmatpush1.bf16.msra.mxu0 0
      %822 = vmatprep.subr.bf16.mxu0 0
      %823 = vmatpush1.bf16.msra.mxu0 0
      %824 = vmatprep.subr.bf16.mxu0 0
      %825 = vmatpush1.bf16.msra.mxu0 0
      %826 = vmatprep.mubr.bf16.mxu0 0
      %827 = vmatmul.mubr.bf16.gmra.mrb[0].mxu0 %v639
      %v828 = vpop.f32.mrb[0].mxu0
      %v829 = vadd.f32 %v605, %v828
      %v830 = vpop.f32.mrb[0].mxu0
      %v831 = vadd.f32 %v607, %v830
      %v832 = vpop.f32.mrb[0].mxu0
      %v833 = vadd.f32 %v609, %v832
      %v834 = vpop.f32.mrb[0].mxu0
      %v835 = vadd.f32 %v611, %v834
      %836 = vdwg.mxu0
      %v837 = vshrl.u32 %v241, 16
      %v838 = vpack.i.b16 %v837, %v837
      %v840 = vlaneseq
      %v841 = vshrl.u32 %v840, 7
      %v842 = vsub.s32 0, %v841
      %v843 = vrot.slane %v838, %v842
      %v844 = vshrl.u32 %v255, 16
      %v845 = vpack.i.b16 %v844, %v844
      %v847 = vlaneseq
      %v848 = vshrl.u32 %v847, 7
      %v849 = vsub.s32 0, %v848
      %v850 = vrot.slane %v845, %v849
      %v851 = vshrl.u32 %v263, 16
      %v852 = vpack.i.b16 %v851, %v851
      %v854 = vlaneseq
      %v855 = vshrl.u32 %v854, 7
      %v856 = vsub.s32 0, %v855
      %v857 = vrot.slane %v852, %v856
      %v858 = vshrl.u32 %v265, 16
      %v859 = vpack.i.b16 %v858, %v858
      %v861 = vlaneseq
      %v862 = vshrl.u32 %v861, 7
      %v863 = vsub.s32 0, %v862
      %v864 = vrot.slane %v859, %v863
      %v865 = vshrl.u32 %v248, 16
      %v866 = vpack.i.b16 %v865, %v865
      %v868 = vlaneseq
      %v869 = vshrl.u32 %v868, 7
      %v870 = vsub.s32 0, %v869
      %v871 = vrot.slane %v866, %v870
      %v872 = vshrl.u32 %v262, 16
      %v873 = vpack.i.b16 %v872, %v872
      %v875 = vlaneseq
      %v876 = vshrl.u32 %v875, 7
      %v877 = vsub.s32 0, %v876
      %v878 = vrot.slane %v873, %v877
      %v879 = vshrl.u32 %v264, 16
      %v880 = vpack.i.b16 %v879, %v879
      %v882 = vlaneseq
      %v883 = vshrl.u32 %v882, 7
      %v884 = vsub.s32 0, %v883
      %v885 = vrot.slane %v880, %v884
      %v886 = vshrl.u32 %v266, 16
      %v887 = vpack.i.b16 %v886, %v886
      %v889 = vlaneseq
      %v890 = vshrl.u32 %v889, 7
      %v891 = vsub.s32 0, %v890
      %v892 = vrot.slane %v887, %v891
      %v901 = vunpack.c.l.b16 %v843
      %v902 = vunpack.c.l.b16 %v850
      %v903 = vunpack.c.l.b16 %v857
      %v904 = vunpack.c.l.b16 %v864
      %v905 = vunpack.c.l.b16 %v871
      %v906 = vunpack.c.l.b16 %v878
      %v907 = vunpack.c.l.b16 %v885
      %v908 = vunpack.c.l.b16 %v892
      %v909 = vpack.c.b16 %v902, %v901
      %v910 = vpack.c.b16 %v904, %v903
      %v911 = vpack.c.b16 %v906, %v905
      %v912 = vpack.c.b16 %v908, %v907
      %913 = vrot.lane.b32.xlu0 %v909, 2
      %v914 = vpop.permute.xlu0 %913
      %915 = vrot.lane.b32.xlu0 %v910, 2
      %v916 = vpop.permute.xlu0 %915
      %917 = vrot.lane.b32.xlu0 %v911, 2
      %v918 = vpop.permute.xlu0 %917
      %919 = vrot.lane.b32.xlu0 %v912, 2
      %v920 = vpop.permute.xlu0 %919
      %v921 = vrot.slane %v914, 4
      %v922 = vrot.slane %v916, 4
      %v923 = vrot.slane %v918, 4
      %v924 = vrot.slane %v920, 4
      %vm925 = vcmask 15360
      %v926 = vsel %vm925, %v921, %v914
      %vm927 = vcmask 1043456
      %v928 = vsel %vm927, %v921, %v922
      %v929 = vsel %vm925, %v928, %v916
      %v930 = vsel %vm927, %v922, %v923
      %v931 = vsel %vm925, %v930, %v918
      %v932 = vsel %vm927, %v923, %v924
      %v933 = vsel %vm925, %v932, %v920
      %v939 = vmul.bf16 %v213, %v926
      %v940 = vmul.bf16 %v214, %v929
      %v941 = vmul.bf16 %v215, %v931
      %v942 = vmul.bf16 %v216, %v933
      %v943 = vmul.bf16 %v353, %v924
      %s944 = scalar_lea.vmem %s1, 16
      %v945 = vld [vmem:[%s944] sm:$0xf]
      %v946 = vld [vmem:[%s944 + $0x4] sm:$0x3]
      %v949 = vunpack.c.l.b16 %v945
      %v950 = vunpack.c.l.b16 %v946
      %v951 = vpack.c.b16 %v950, %v949
      %v957 = vunpack.c.l.b16 %v939
      %v958 = vunpack.c.h.b16 %v939
      %v959 = vunpack.c.l.b16 %v940
      %v960 = vunpack.c.h.b16 %v940
      %v961 = vunpack.c.l.b16 %v941
      %v962 = vunpack.c.h.b16 %v941
      %v963 = vunpack.c.l.b16 %v942
      %v964 = vunpack.c.h.b16 %v942
      %v965 = vunpack.c.l.b16 %v943
      %v966 = vpack.c.b16 %v957, %v957
      %v967 = vpack.c.b16 %v958, %v958
      %v968 = vpack.c.b16 %v959, %v959
      %v969 = vpack.c.b16 %v960, %v960
      %v970 = vpack.c.b16 %v961, %v961
      %v971 = vpack.c.b16 %v962, %v962
      %v972 = vpack.c.b16 %v963, %v963
      %v973 = vpack.c.b16 %v964, %v964
      %v974 = vpack.c.b16 %v965, %v965
      %975 = vrot.lane.b32.xlu0 %v966, 126
      %v976 = vpop.permute.xlu0 %975
      %977 = vrot.lane.b32.xlu0 %v967, 126
      %v978 = vpop.permute.xlu0 %977
      %979 = vrot.lane.b32.xlu0 %v968, 126
      %v980 = vpop.permute.xlu0 %979
      %981 = vrot.lane.b32.xlu0 %v969, 126
      %v982 = vpop.permute.xlu0 %981
      %983 = vrot.lane.b32.xlu0 %v970, 126
      %v984 = vpop.permute.xlu0 %983
      %985 = vrot.lane.b32.xlu0 %v971, 126
      %v986 = vpop.permute.xlu0 %985
      %987 = vrot.lane.b32.xlu0 %v972, 126
      %v988 = vpop.permute.xlu0 %987
      %989 = vrot.lane.b32.xlu0 %v973, 126
      %v990 = vpop.permute.xlu0 %989
      %991 = vrot.lane.b32.xlu0 %v974, 126
      %v992 = vpop.permute.xlu0 %991
      %vm993 = vcmask 1031168
      %v994 = vsel %vm993, %v976, %v978
      %v995 = vsel %vm993, %v978, %v980
      %v996 = vsel %vm993, %v980, %v982
      %v997 = vsel %vm993, %v982, %v984
      %v998 = vsel %vm993, %v984, %v986
      %v999 = vsel %vm993, %v986, %v988
      %v1000 = vsel %vm993, %v988, %v990
      %v1001 = vsel %vm993, %v990, %v992
      %v1003 = vsel %vm412, %v951, 0
      %v1006 = vsel %vm416, %v994, 0
      %v1009 = vsel %vm416, %v995, 0
      %v1012 = vsel %vm416, %v996, 0
      %v1015 = vsel %vm416, %v997, 0
      %v1018 = vsel %vm416, %v998, 0
      %v1021 = vsel %vm416, %v999, 0
      %v1024 = vsel %vm416, %v1000, 0
      %v1027 = vsel %vm416, %v1001, 0
      %1029 = vmatprep.subr.bf16.mxu0 %v1009
      %1030 = vmatpush1.bf16.msra.mxu0 %v1006
      %1031 = vmatprep.subr.bf16.mxu0 0
      %1032 = vmatpush1.bf16.msra.mxu0 0
      %1033 = vmatprep.subr.bf16.mxu0 0
      %1034 = vmatpush1.bf16.msra.mxu0 0
      %1035 = vmatprep.subr.bf16.mxu0 0
      %1036 = vmatpush1.bf16.msra.mxu0 0
      %1037 = vmatprep.subr.bf16.mxu0 0
      %1038 = vmatpush1.bf16.msra.mxu0 0
      %1039 = vmatprep.subr.bf16.mxu0 0
      %1040 = vmatpush1.bf16.msra.mxu0 0
      %1041 = vmatprep.subr.bf16.mxu0 0
      %1042 = vmatpush1.bf16.msra.mxu0 0
      %1043 = vmatprep.subr.bf16.mxu0 0
      %1044 = vmatpush1.bf16.msra.mxu0 0
      %1045 = vmatprep.subr.bf16.mxu0 0
      %1046 = vmatpush1.bf16.msra.mxu0 0
      %1047 = vmatprep.subr.bf16.mxu0 0
      %1048 = vmatpush1.bf16.msra.mxu0 0
      %1049 = vmatprep.subr.bf16.mxu0 0
      %1050 = vmatpush1.bf16.msra.mxu0 0
      %1051 = vmatprep.subr.bf16.mxu0 0
      %1052 = vmatpush1.bf16.msra.mxu0 0
      %1053 = vmatprep.subr.bf16.mxu0 0
      %1054 = vmatpush1.bf16.msra.mxu0 0
      %1055 = vmatprep.subr.bf16.mxu0 0
      %1056 = vmatpush1.bf16.msra.mxu0 0
      %1057 = vmatprep.subr.bf16.mxu0 0
      %1058 = vmatpush1.bf16.msra.mxu0 0
      %1059 = vmatprep.subr.bf16.mxu0 0
      %1060 = vmatpush1.bf16.msra.mxu0 0
      %1061 = vmatprep.mubr.bf16.mxu0 0
      %1062 = vmatmul.mubr.bf16.gmra.mrb[0].mxu0 %v1003
      %v1063 = vpop.f32.mrb[0].mxu0
      %v1064 = vadd.f32 0.0, %v1063
      %v1065 = vpop.f32.mrb[0].mxu0
      %v1066 = vadd.f32 0.0, %v1065
      %v1067 = vpop.f32.mrb[0].mxu0
      %v1068 = vadd.f32 0.0, %v1067
      %v1069 = vpop.f32.mrb[0].mxu0
      %v1070 = vadd.f32 0.0, %v1069
      %1071 = vdwg.mxu0
      %1072 = vmatprep.subr.bf16.mxu0 %v1015
      %1073 = vmatpush1.bf16.msra.mxu0 %v1012
      %1074 = vmatprep.subr.bf16.mxu0 0
      %1075 = vmatpush1.bf16.msra.mxu0 0
      %1076 = vmatprep.subr.bf16.mxu0 0
      %1077 = vmatpush1.bf16.msra.mxu0 0
      %1078 = vmatprep.subr.bf16.mxu0 0
      %1079 = vmatpush1.bf16.msra.mxu0 0
      %1080 = vmatprep.subr.bf16.mxu0 0
      %1081 = vmatpush1.bf16.msra.mxu0 0
      %1082 = vmatprep.subr.bf16.mxu0 0
      %1083 = vmatpush1.bf16.msra.mxu0 0
      %1084 = vmatprep.subr.bf16.mxu0 0
      %1085 = vmatpush1.bf16.msra.mxu0 0
      %1086 = vmatprep.subr.bf16.mxu0 0
      %1087 = vmatpush1.bf16.msra.mxu0 0
      %1088 = vmatprep.subr.bf16.mxu0 0
      %1089 = vmatpush1.bf16.msra.mxu0 0
      %1090 = vmatprep.subr.bf16.mxu0 0
      %1091 = vmatpush1.bf16.msra.mxu0 0
      %1092 = vmatprep.subr.bf16.mxu0 0
      %1093 = vmatpush1.bf16.msra.mxu0 0
      %1094 = vmatprep.subr.bf16.mxu0 0
      %1095 = vmatpush1.bf16.msra.mxu0 0
      %1096 = vmatprep.subr.bf16.mxu0 0
      %1097 = vmatpush1.bf16.msra.mxu0 0
      %1098 = vmatprep.subr.bf16.mxu0 0
      %1099 = vmatpush1.bf16.msra.mxu0 0
      %1100 = vmatprep.subr.bf16.mxu0 0
      %1101 = vmatpush1.bf16.msra.mxu0 0
      %1102 = vmatprep.subr.bf16.mxu0 0
      %1103 = vmatpush1.bf16.msra.mxu0 0
      %1104 = vmatprep.mubr.bf16.mxu0 0
      %1105 = vmatmul.mubr.bf16.gmra.mrb[0].mxu0 %v1003
      %v1106 = vpop.f32.mrb[0].mxu0
      %v1107 = vadd.f32 0.0, %v1106
      %v1108 = vpop.f32.mrb[0].mxu0
      %v1109 = vadd.f32 0.0, %v1108
      %v1110 = vpop.f32.mrb[0].mxu0
      %v1111 = vadd.f32 0.0, %v1110
      %v1112 = vpop.f32.mrb[0].mxu0
      %v1113 = vadd.f32 0.0, %v1112
      %1114 = vdwg.mxu0
      %1115 = vmatprep.subr.bf16.mxu0 %v1021
      %1116 = vmatpush1.bf16.msra.mxu0 %v1018
      %1117 = vmatprep.subr.bf16.mxu0 0
      %1118 = vmatpush1.bf16.msra.mxu0 0
      %1119 = vmatprep.subr.bf16.mxu0 0
      %1120 = vmatpush1.bf16.msra.mxu0 0
      %1121 = vmatprep.subr.bf16.mxu0 0
      %1122 = vmatpush1.bf16.msra.mxu0 0
      %1123 = vmatprep.subr.bf16.mxu0 0
      %1124 = vmatpush1.bf16.msra.mxu0 0
      %1125 = vmatprep.subr.bf16.mxu0 0
      %1126 = vmatpush1.bf16.msra.mxu0 0
      %1127 = vmatprep.subr.bf16.mxu0 0
      %1128 = vmatpush1.bf16.msra.mxu0 0
      %1129 = vmatprep.subr.bf16.mxu0 0
      %1130 = vmatpush1.bf16.msra.mxu0 0
      %1131 = vmatprep.subr.bf16.mxu0 0
      %1132 = vmatpush1.bf16.msra.mxu0 0
      %1133 = vmatprep.subr.bf16.mxu0 0
      %1134 = vmatpush1.bf16.msra.mxu0 0
      %1135 = vmatprep.subr.bf16.mxu0 0
      %1136 = vmatpush1.bf16.msra.mxu0 0
      %1137 = vmatprep.subr.bf16.mxu0 0
      %1138 = vmatpush1.bf16.msra.mxu0 0
      %1139 = vmatprep.subr.bf16.mxu0 0
      %1140 = vmatpush1.bf16.msra.mxu0 0
      %1141 = vmatprep.subr.bf16.mxu0 0
      %1142 = vmatpush1.bf16.msra.mxu0 0
      %1143 = vmatprep.subr.bf16.mxu0 0
      %1144 = vmatpush1.bf16.msra.mxu0 0
      %1145 = vmatprep.subr.bf16.mxu0 0
      %1146 = vmatpush1.bf16.msra.mxu0 0
      %1147 = vmatprep.mubr.bf16.mxu0 0
      %1148 = vmatmul.mubr.bf16.gmra.mrb[0].mxu0 %v1003
      %v1149 = vpop.f32.mrb[0].mxu0
      %v1150 = vadd.f32 0.0, %v1149
      %v1151 = vpop.f32.mrb[0].mxu0
      %v1152 = vadd.f32 0.0, %v1151
      %v1153 = vpop.f32.mrb[0].mxu0
      %v1154 = vadd.f32 0.0, %v1153
      %v1155 = vpop.f32.mrb[0].mxu0
      %v1156 = vadd.f32 0.0, %v1155
      %1157 = vdwg.mxu0
      %1158 = vmatprep.subr.bf16.mxu0 %v1027
      %1159 = vmatpush1.bf16.msra.mxu0 %v1024
      %1160 = vmatprep.subr.bf16.mxu0 0
      %1161 = vmatpush1.bf16.msra.mxu0 0
      %1162 = vmatprep.subr.bf16.mxu0 0
      %1163 = vmatpush1.bf16.msra.mxu0 0
      %1164 = vmatprep.subr.bf16.mxu0 0
      %1165 = vmatpush1.bf16.msra.mxu0 0
      %1166 = vmatprep.subr.bf16.mxu0 0
      %1167 = vmatpush1.bf16.msra.mxu0 0
      %1168 = vmatprep.subr.bf16.mxu0 0
      %1169 = vmatpush1.bf16.msra.mxu0 0
      %1170 = vmatprep.subr.bf16.mxu0 0
      %1171 = vmatpush1.bf16.msra.mxu0 0
      %1172 = vmatprep.subr.bf16.mxu0 0
      %1173 = vmatpush1.bf16.msra.mxu0 0
      %1174 = vmatprep.subr.bf16.mxu0 0
      %1175 = vmatpush1.bf16.msra.mxu0 0
      %1176 = vmatprep.subr.bf16.mxu0 0
      %1177 = vmatpush1.bf16.msra.mxu0 0
      %1178 = vmatprep.subr.bf16.mxu0 0
      %1179 = vmatpush1.bf16.msra.mxu0 0
      %1180 = vmatprep.subr.bf16.mxu0 0
      %1181 = vmatpush1.bf16.msra.mxu0 0
      %1182 = vmatprep.subr.bf16.mxu0 0
      %1183 = vmatpush1.bf16.msra.mxu0 0
      %1184 = vmatprep.subr.bf16.mxu0 0
      %1185 = vmatpush1.bf16.msra.mxu0 0
      %1186 = vmatprep.subr.bf16.mxu0 0
      %1187 = vmatpush1.bf16.msra.mxu0 0
      %1188 = vmatprep.subr.bf16.mxu0 0
      %1189 = vmatpush1.bf16.msra.mxu0 0
      %1190 = vmatprep.mubr.bf16.mxu0 0
      %1191 = vmatmul.mubr.bf16.gmra.mrb[0].mxu0 %v1003
      %v1192 = vpop.f32.mrb[0].mxu0
      %v1193 = vadd.f32 0.0, %v1192
      %v1194 = vpop.f32.mrb[0].mxu0
      %v1195 = vadd.f32 0.0, %v1194
      %v1196 = vpop.f32.mrb[0].mxu0
      %v1197 = vadd.f32 0.0, %v1196
      %v1198 = vpop.f32.mrb[0].mxu0
      %v1199 = vadd.f32 0.0, %v1198
      %1200 = vdwg.mxu0
      %v1201 = vadd.f32 %v700, %v1064
      %v1202 = vadd.f32 %v702, %v1066
      %v1203 = vadd.f32 %v743, %v1107
      %v1204 = vadd.f32 %v745, %v1109
      %v1205 = vadd.f32 %v786, %v1150
      %v1206 = vadd.f32 %v788, %v1152
      %v1207 = vadd.f32 %v829, %v1193
      %v1208 = vadd.f32 %v831, %v1195
      %v1209 = vadd.f32 %v704, %v1068
      %v1210 = vadd.f32 %v706, %v1070
      %v1211 = vadd.f32 %v747, %v1111
      %v1212 = vadd.f32 %v749, %v1113
      %v1213 = vadd.f32 %v790, %v1154
      %v1214 = vadd.f32 %v792, %v1156
      %v1215 = vadd.f32 %v833, %v1197
      %v1216 = vadd.f32 %v835, %v1199
      %v1217 = vld [vmem:[%s200] sm:$0xff]
      %v1218 = vld [vmem:[%s200 + $0x8] sm:$0xff]
      %v1219 = vld [vmem:[%s200 + $0x10] sm:$0xff]
      %v1220 = vld [vmem:[%s200 + $0x18] sm:$0xff]
      %v1221 = vld [vmem:[%s200 + $0x20] sm:$0xf]
      %1222 = vrot.lane.b32.xlu0 %v339, 32
      %v1223 = vpop.permute.xlu0 %1222
      %1224 = vrot.lane.b32.xlu0 %v340, 32
      %v1225 = vpop.permute.xlu0 %1224
      %1226 = vrot.lane.b32.xlu0 %v341, 32
      %v1227 = vpop.permute.xlu0 %1226
      %1228 = vrot.lane.b32.xlu0 %v342, 32
      %v1229 = vpop.permute.xlu0 %1228
      %v1230 = vrot.slane %v1223, 4
      %v1231 = vrot.slane %v1225, 4
      %v1232 = vrot.slane %v1227, 4
      %v1233 = vrot.slane %v1229, 4
      %vm1234 = vcmask 261120
      %v1235 = vsel %vm1234, %v1230, %v1223
      %v1236 = vsel %vm927, %v1230, %v1231
      %v1237 = vsel %vm1234, %v1236, %v1225
      %v1238 = vsel %vm927, %v1231, %v1232
      %v1239 = vsel %vm1234, %v1238, %v1227
      %v1240 = vsel %vm927, %v1232, %v1233
      %v1241 = vsel %vm1234, %v1240, %v1229
      %v1247 = vmul.bf16 %v1217, %v1235
      %v1248 = vmul.bf16 %v1218, %v1237
      %v1249 = vmul.bf16 %v1219, %v1239
      %v1250 = vmul.bf16 %v1220, %v1241
      %v1251 = vmul.bf16 %v1221, %v1233
      %s1252 = scalar_lea.vmem %s1, 24
      %v1253 = vld [vmem:[%s1252] sm:$0xf]
      %v1254 = vld [vmem:[%s1252 + $0x4] sm:$0x3]
      %v1257 = vunpack.c.l.b16 %v1253
      %v1258 = vunpack.c.l.b16 %v1254
      %v1259 = vpack.c.b16 %v1258, %v1257
      %v1265 = vunpack.c.l.b16 %v1247
      %v1266 = vunpack.c.h.b16 %v1247
      %v1267 = vunpack.c.l.b16 %v1248
      %v1268 = vunpack.c.h.b16 %v1248
      %v1269 = vunpack.c.l.b16 %v1249
      %v1270 = vunpack.c.h.b16 %v1249
      %v1271 = vunpack.c.l.b16 %v1250
      %v1272 = vunpack.c.h.b16 %v1250
      %v1273 = vunpack.c.l.b16 %v1251
      %v1274 = vpack.c.b16 %v1265, %v1265
      %v1275 = vpack.c.b16 %v1266, %v1266
      %v1276 = vpack.c.b16 %v1267, %v1267
      %v1277 = vpack.c.b16 %v1268, %v1268
      %v1278 = vpack.c.b16 %v1269, %v1269
      %v1279 = vpack.c.b16 %v1270, %v1270
      %v1280 = vpack.c.b16 %v1271, %v1271
      %v1281 = vpack.c.b16 %v1272, %v1272
      %v1282 = vpack.c.b16 %v1273, %v1273
      %1283 = vrot.lane.b32.xlu0 %v1274, 96
      %v1284 = vpop.permute.xlu0 %1283
      %1285 = vrot.lane.b32.xlu0 %v1275, 96
      %v1286 = vpop.permute.xlu0 %1285
      %1287 = vrot.lane.b32.xlu0 %v1276, 96
      %v1288 = vpop.permute.xlu0 %1287
      %1289 = vrot.lane.b32.xlu0 %v1277, 96
      %v1290 = vpop.permute.xlu0 %1289
      %1291 = vrot.lane.b32.xlu0 %v1278, 96
      %v1292 = vpop.permute.xlu0 %1291
      %1293 = vrot.lane.b32.xlu0 %v1279, 96
      %v1294 = vpop.permute.xlu0 %1293
      %1295 = vrot.lane.b32.xlu0 %v1280, 96
      %v1296 = vpop.permute.xlu0 %1295
      %1297 = vrot.lane.b32.xlu0 %v1281, 96
      %v1298 = vpop.permute.xlu0 %1297
      %1299 = vrot.lane.b32.xlu0 %v1282, 96
      %v1300 = vpop.permute.xlu0 %1299
      %vm1301 = vcmask 785408
      %v1302 = vsel %vm1301, %v1284, %v1286
      %v1303 = vsel %vm1301, %v1286, %v1288
      %v1304 = vsel %vm1301, %v1288, %v1290
      %v1305 = vsel %vm1301, %v1290, %v1292
      %v1306 = vsel %vm1301, %v1292, %v1294
      %v1307 = vsel %vm1301, %v1294, %v1296
      %v1308 = vsel %vm1301, %v1296, %v1298
      %v1309 = vsel %vm1301, %v1298, %v1300
      %v1311 = vsel %vm412, %v1259, 0
      %v1314 = vsel %vm416, %v1302, 0
      %v1317 = vsel %vm416, %v1303, 0
      %v1320 = vsel %vm416, %v1304, 0
      %v1323 = vsel %vm416, %v1305, 0
      %v1326 = vsel %vm416, %v1306, 0
      %v1329 = vsel %vm416, %v1307, 0
      %v1332 = vsel %vm416, %v1308, 0
      %v1335 = vsel %vm416, %v1309, 0
      %1337 = vmatprep.subr.bf16.mxu0 %v1317
      %1338 = vmatpush1.bf16.msra.mxu0 %v1314
      %1339 = vmatprep.subr.bf16.mxu0 0
      %1340 = vmatpush1.bf16.msra.mxu0 0
      %1341 = vmatprep.subr.bf16.mxu0 0
      %1342 = vmatpush1.bf16.msra.mxu0 0
      %1343 = vmatprep.subr.bf16.mxu0 0
      %1344 = vmatpush1.bf16.msra.mxu0 0
      %1345 = vmatprep.subr.bf16.mxu0 0
      %1346 = vmatpush1.bf16.msra.mxu0 0
      %1347 = vmatprep.subr.bf16.mxu0 0
      %1348 = vmatpush1.bf16.msra.mxu0 0
      %1349 = vmatprep.subr.bf16.mxu0 0
      %1350 = vmatpush1.bf16.msra.mxu0 0
      %1351 = vmatprep.subr.bf16.mxu0 0
      %1352 = vmatpush1.bf16.msra.mxu0 0
      %1353 = vmatprep.subr.bf16.mxu0 0
      %1354 = vmatpush1.bf16.msra.mxu0 0
      %1355 = vmatprep.subr.bf16.mxu0 0
      %1356 = vmatpush1.bf16.msra.mxu0 0
      %1357 = vmatprep.subr.bf16.mxu0 0
      %1358 = vmatpush1.bf16.msra.mxu0 0
      %1359 = vmatprep.subr.bf16.mxu0 0
      %1360 = vmatpush1.bf16.msra.mxu0 0
      %1361 = vmatprep.subr.bf16.mxu0 0
      %1362 = vmatpush1.bf16.msra.mxu0 0
      %1363 = vmatprep.subr.bf16.mxu0 0
      %1364 = vmatpush1.bf16.msra.mxu0 0
      %1365 = vmatprep.subr.bf16.mxu0 0
      %1366 = vmatpush1.bf16.msra.mxu0 0
      %1367 = vmatprep.subr.bf16.mxu0 0
      %1368 = vmatpush1.bf16.msra.mxu0 0
      %1369 = vmatprep.mubr.bf16.mxu0 0
      %1370 = vmatmul.mubr.bf16.gmra.mrb[0].mxu0 %v1311
      %v1371 = vpop.f32.mrb[0].mxu0
      %v1372 = vadd.f32 0.0, %v1371
      %v1373 = vpop.f32.mrb[0].mxu0
      %v1374 = vadd.f32 0.0, %v1373
      %v1375 = vpop.f32.mrb[0].mxu0
      %v1376 = vadd.f32 0.0, %v1375
      %v1377 = vpop.f32.mrb[0].mxu0
      %v1378 = vadd.f32 0.0, %v1377
      %1379 = vdwg.mxu0
      %1380 = vmatprep.subr.bf16.mxu0 %v1323
      %1381 = vmatpush1.bf16.msra.mxu0 %v1320
      %1382 = vmatprep.subr.bf16.mxu0 0
      %1383 = vmatpush1.bf16.msra.mxu0 0
      %1384 = vmatprep.subr.bf16.mxu0 0
      %1385 = vmatpush1.bf16.msra.mxu0 0
      %1386 = vmatprep.subr.bf16.mxu0 0
      %1387 = vmatpush1.bf16.msra.mxu0 0
      %1388 = vmatprep.subr.bf16.mxu0 0
      %1389 = vmatpush1.bf16.msra.mxu0 0
      %1390 = vmatprep.subr.bf16.mxu0 0
      %1391 = vmatpush1.bf16.msra.mxu0 0
      %1392 = vmatprep.subr.bf16.mxu0 0
      %1393 = vmatpush1.bf16.msra.mxu0 0
      %1394 = vmatprep.subr.bf16.mxu0 0
      %1395 = vmatpush1.bf16.msra.mxu0 0
      %1396 = vmatprep.subr.bf16.mxu0 0
      %1397 = vmatpush1.bf16.msra.mxu0 0
      %1398 = vmatprep.subr.bf16.mxu0 0
      %1399 = vmatpush1.bf16.msra.mxu0 0
      %1400 = vmatprep.subr.bf16.mxu0 0
      %1401 = vmatpush1.bf16.msra.mxu0 0
      %1402 = vmatprep.subr.bf16.mxu0 0
      %1403 = vmatpush1.bf16.msra.mxu0 0
      %1404 = vmatprep.subr.bf16.mxu0 0
      %1405 = vmatpush1.bf16.msra.mxu0 0
      %1406 = vmatprep.subr.bf16.mxu0 0
      %1407 = vmatpush1.bf16.msra.mxu0 0
      %1408 = vmatprep.subr.bf16.mxu0 0
      %1409 = vmatpush1.bf16.msra.mxu0 0
      %1410 = vmatprep.subr.bf16.mxu0 0
      %1411 = vmatpush1.bf16.msra.mxu0 0
      %1412 = vmatprep.mubr.bf16.mxu0 0
      %1413 = vmatmul.mubr.bf16.gmra.mrb[0].mxu0 %v1311
      %v1414 = vpop.f32.mrb[0].mxu0
      %v1415 = vadd.f32 0.0, %v1414
      %v1416 = vpop.f32.mrb[0].mxu0
      %v1417 = vadd.f32 0.0, %v1416
      %v1418 = vpop.f32.mrb[0].mxu0
      %v1419 = vadd.f32 0.0, %v1418
      %v1420 = vpop.f32.mrb[0].mxu0
      %v1421 = vadd.f32 0.0, %v1420
      %1422 = vdwg.mxu0
      %1423 = vmatprep.subr.bf16.mxu0 %v1329
      %1424 = vmatpush1.bf16.msra.mxu0 %v1326
      %1425 = vmatprep.subr.bf16.mxu0 0
      %1426 = vmatpush1.bf16.msra.mxu0 0
      %1427 = vmatprep.subr.bf16.mxu0 0
      %1428 = vmatpush1.bf16.msra.mxu0 0
      %1429 = vmatprep.subr.bf16.mxu0 0
      %1430 = vmatpush1.bf16.msra.mxu0 0
      %1431 = vmatprep.subr.bf16.mxu0 0
      %1432 = vmatpush1.bf16.msra.mxu0 0
      %1433 = vmatprep.subr.bf16.mxu0 0
      %1434 = vmatpush1.bf16.msra.mxu0 0
      %1435 = vmatprep.subr.bf16.mxu0 0
      %1436 = vmatpush1.bf16.msra.mxu0 0
      %1437 = vmatprep.subr.bf16.mxu0 0
      %1438 = vmatpush1.bf16.msra.mxu0 0
      %1439 = vmatprep.subr.bf16.mxu0 0
      %1440 = vmatpush1.bf16.msra.mxu0 0
      %1441 = vmatprep.subr.bf16.mxu0 0
      %1442 = vmatpush1.bf16.msra.mxu0 0
      %1443 = vmatprep.subr.bf16.mxu0 0
      %1444 = vmatpush1.bf16.msra.mxu0 0
      %1445 = vmatprep.subr.bf16.mxu0 0
      %1446 = vmatpush1.bf16.msra.mxu0 0
      %1447 = vmatprep.subr.bf16.mxu0 0
      %1448 = vmatpush1.bf16.msra.mxu0 0
      %1449 = vmatprep.subr.bf16.mxu0 0
      %1450 = vmatpush1.bf16.msra.mxu0 0
      %1451 = vmatprep.subr.bf16.mxu0 0
      %1452 = vmatpush1.bf16.msra.mxu0 0
      %1453 = vmatprep.subr.bf16.mxu0 0
      %1454 = vmatpush1.bf16.msra.mxu0 0
      %1455 = vmatprep.mubr.bf16.mxu0 0
      %1456 = vmatmul.mubr.bf16.gmra.mrb[0].mxu0 %v1311
      %v1457 = vpop.f32.mrb[0].mxu0
      %v1458 = vadd.f32 0.0, %v1457
      %v1459 = vpop.f32.mrb[0].mxu0
      %v1460 = vadd.f32 0.0, %v1459
      %v1461 = vpop.f32.mrb[0].mxu0
      %v1462 = vadd.f32 0.0, %v1461
      %v1463 = vpop.f32.mrb[0].mxu0
      %v1464 = vadd.f32 0.0, %v1463
      %1465 = vdwg.mxu0
      %1466 = vmatprep.subr.bf16.mxu0 %v1335
      %1467 = vmatpush1.bf16.msra.mxu0 %v1332
      %1468 = vmatprep.subr.bf16.mxu0 0
      %1469 = vmatpush1.bf16.msra.mxu0 0
      %1470 = vmatprep.subr.bf16.mxu0 0
      %1471 = vmatpush1.bf16.msra.mxu0 0
      %1472 = vmatprep.subr.bf16.mxu0 0
      %1473 = vmatpush1.bf16.msra.mxu0 0
      %1474 = vmatprep.subr.bf16.mxu0 0
      %1475 = vmatpush1.bf16.msra.mxu0 0
      %1476 = vmatprep.subr.bf16.mxu0 0
      %1477 = vmatpush1.bf16.msra.mxu0 0
      %1478 = vmatprep.subr.bf16.mxu0 0
      %1479 = vmatpush1.bf16.msra.mxu0 0
      %1480 = vmatprep.subr.bf16.mxu0 0
      %1481 = vmatpush1.bf16.msra.mxu0 0
      %1482 = vmatprep.subr.bf16.mxu0 0
      %1483 = vmatpush1.bf16.msra.mxu0 0
      %1484 = vmatprep.subr.bf16.mxu0 0
      %1485 = vmatpush1.bf16.msra.mxu0 0
      %1486 = vmatprep.subr.bf16.mxu0 0
      %1487 = vmatpush1.bf16.msra.mxu0 0
      %1488 = vmatprep.subr.bf16.mxu0 0
      %1489 = vmatpush1.bf16.msra.mxu0 0
      %1490 = vmatprep.subr.bf16.mxu0 0
      %1491 = vmatpush1.bf16.msra.mxu0 0
      %1492 = vmatprep.subr.bf16.mxu0 0
      %1493 = vmatpush1.bf16.msra.mxu0 0
      %1494 = vmatprep.subr.bf16.mxu0 0
      %1495 = vmatpush1.bf16.msra.mxu0 0
      %1496 = vmatprep.subr.bf16.mxu0 0
      %1497 = vmatpush1.bf16.msra.mxu0 0
      %1498 = vmatprep.mubr.bf16.mxu0 0
      %1499 = vmatmul.mubr.bf16.gmra.mrb[0].mxu0 %v1311
      %v1500 = vpop.f32.mrb[0].mxu0
      %v1501 = vadd.f32 0.0, %v1500
      %v1502 = vpop.f32.mrb[0].mxu0
      %v1503 = vadd.f32 0.0, %v1502
      %v1504 = vpop.f32.mrb[0].mxu0
      %v1505 = vadd.f32 0.0, %v1504
      %v1506 = vpop.f32.mrb[0].mxu0
      %v1507 = vadd.f32 0.0, %v1506
      %1508 = vdwg.mxu0
      %v1509 = vadd.f32 %v1201, %v1372
      %v1510 = vadd.f32 %v1202, %v1374
      %v1511 = vadd.f32 %v1203, %v1415
      %v1512 = vadd.f32 %v1204, %v1417
      %v1513 = vadd.f32 %v1205, %v1458
      %v1514 = vadd.f32 %v1206, %v1460
      %v1515 = vadd.f32 %v1207, %v1501
      %v1516 = vadd.f32 %v1208, %v1503
      %v1517 = vadd.f32 %v1209, %v1376
      %v1518 = vadd.f32 %v1210, %v1378
      %v1519 = vadd.f32 %v1211, %v1419
      %v1520 = vadd.f32 %v1212, %v1421
      %v1521 = vadd.f32 %v1213, %v1462
      %v1522 = vadd.f32 %v1214, %v1464
      %v1523 = vadd.f32 %v1215, %v1505
      %v1524 = vadd.f32 %v1216, %v1507
      %s1525 = scalar_lea.vmem %s1, 32
      %v1526 = vld [vmem:[%s1525] sm:$0xf]
      %v1527 = vld [vmem:[%s1525 + $0x4] sm:$0x3]
      %v1530 = vunpack.c.l.b16 %v1526
      %v1531 = vunpack.c.l.b16 %v1527
      %v1532 = vpack.c.b16 %v1531, %v1530
      %v1538 = vunpack.c.l.b16 %v1217
      %v1539 = vunpack.c.h.b16 %v1217
      %v1540 = vunpack.c.l.b16 %v1218
      %v1541 = vunpack.c.h.b16 %v1218
      %v1542 = vunpack.c.l.b16 %v1219
      %v1543 = vunpack.c.h.b16 %v1219
      %v1544 = vunpack.c.l.b16 %v1220
      %v1545 = vunpack.c.h.b16 %v1220
      %v1546 = vunpack.c.l.b16 %v1221
      %v1547 = vpack.c.b16 %v1538, %v1538
      %v1548 = vpack.c.b16 %v1539, %v1539
      %v1549 = vpack.c.b16 %v1540, %v1540
      %v1550 = vpack.c.b16 %v1541, %v1541
      %v1551 = vpack.c.b16 %v1542, %v1542
      %v1552 = vpack.c.b16 %v1543, %v1543
      %v1553 = vpack.c.b16 %v1544, %v1544
      %v1554 = vpack.c.b16 %v1545, %v1545
      %v1555 = vpack.c.b16 %v1546, %v1546
      %1556 = vrot.lane.b32.xlu0 %v1547, 95
      %v1557 = vpop.permute.xlu0 %1556
      %1558 = vrot.lane.b32.xlu0 %v1548, 95
      %v1559 = vpop.permute.xlu0 %1558
      %1560 = vrot.lane.b32.xlu0 %v1549, 95
      %v1561 = vpop.permute.xlu0 %1560
      %1562 = vrot.lane.b32.xlu0 %v1550, 95
      %v1563 = vpop.permute.xlu0 %1562
      %1564 = vrot.lane.b32.xlu0 %v1551, 95
      %v1565 = vpop.permute.xlu0 %1564
      %1566 = vrot.lane.b32.xlu0 %v1552, 95
      %v1567 = vpop.permute.xlu0 %1566
      %1568 = vrot.lane.b32.xlu0 %v1553, 95
      %v1569 = vpop.permute.xlu0 %1568
      %1570 = vrot.lane.b32.xlu0 %v1554, 95
      %v1571 = vpop.permute.xlu0 %1570
      %1572 = vrot.lane.b32.xlu0 %v1555, 95
      %v1573 = vpop.permute.xlu0 %1572
      %vm1574 = vcmask 777216
      %v1575 = vsel %vm1574, %v1557, %v1559
      %v1576 = vsel %vm1574, %v1559, %v1561
      %v1577 = vsel %vm1574, %v1561, %v1563
      %v1578 = vsel %vm1574, %v1563, %v1565
      %v1579 = vsel %vm1574, %v1565, %v1567
      %v1580 = vsel %vm1574, %v1567, %v1569
      %v1581 = vsel %vm1574, %v1569, %v1571
      %v1582 = vsel %vm1574, %v1571, %v1573
      %v1584 = vsel %vm412, %v1532, 0
      %v1587 = vsel %vm416, %v1575, 0
      %v1590 = vsel %vm416, %v1576, 0
      %v1593 = vsel %vm416, %v1577, 0
      %v1596 = vsel %vm416, %v1578, 0
      %v1599 = vsel %vm416, %v1579, 0
      %v1602 = vsel %vm416, %v1580, 0
      %v1605 = vsel %vm416, %v1581, 0
      %v1608 = vsel %vm416, %v1582, 0
      %1610 = vmatprep.subr.bf16.mxu0 %v1590
      %1611 = vmatpush1.bf16.msra.mxu0 %v1587
      %1612 = vmatprep.subr.bf16.mxu0 0
      %1613 = vmatpush1.bf16.msra.mxu0 0
      %1614 = vmatprep.subr.bf16.mxu0 0
      %1615 = vmatpush1.bf16.msra.mxu0 0
      %1616 = vmatprep.subr.bf16.mxu0 0
      %1617 = vmatpush1.bf16.msra.mxu0 0
      %1618 = vmatprep.subr.bf16.mxu0 0
      %1619 = vmatpush1.bf16.msra.mxu0 0
      %1620 = vmatprep.subr.bf16.mxu0 0
      %1621 = vmatpush1.bf16.msra.mxu0 0
      %1622 = vmatprep.subr.bf16.mxu0 0
      %1623 = vmatpush1.bf16.msra.mxu0 0
      %1624 = vmatprep.subr.bf16.mxu0 0
      %1625 = vmatpush1.bf16.msra.mxu0 0
      %1626 = vmatprep.subr.bf16.mxu0 0
      %1627 = vmatpush1.bf16.msra.mxu0 0
      %1628 = vmatprep.subr.bf16.mxu0 0
      %1629 = vmatpush1.bf16.msra.mxu0 0
      %1630 = vmatprep.subr.bf16.mxu0 0
      %1631 = vmatpush1.bf16.msra.mxu0 0
      %1632 = vmatprep.subr.bf16.mxu0 0
      %1633 = vmatpush1.bf16.msra.mxu0 0
      %1634 = vmatprep.subr.bf16.mxu0 0
      %1635 = vmatpush1.bf16.msra.mxu0 0
      %1636 = vmatprep.subr.bf16.mxu0 0
      %1637 = vmatpush1.bf16.msra.mxu0 0
      %1638 = vmatprep.subr.bf16.mxu0 0
      %1639 = vmatpush1.bf16.msra.mxu0 0
      %1640 = vmatprep.subr.bf16.mxu0 0
      %1641 = vmatpush1.bf16.msra.mxu0 0
      %1642 = vmatprep.mubr.bf16.mxu0 0
      %1643 = vmatmul.mubr.bf16.gmra.mrb[0].mxu0 %v1584
      %v1644 = vpop.f32.mrb[0].mxu0
      %v1645 = vadd.f32 0.0, %v1644
      %v1646 = vpop.f32.mrb[0].mxu0
      %v1647 = vadd.f32 0.0, %v1646
      %v1648 = vpop.f32.mrb[0].mxu0
      %v1649 = vadd.f32 0.0, %v1648
      %v1650 = vpop.f32.mrb[0].mxu0
      %v1651 = vadd.f32 0.0, %v1650
      %1652 = vdwg.mxu0
      %1653 = vmatprep.subr.bf16.mxu0 %v1596
      %1654 = vmatpush1.bf16.msra.mxu0 %v1593
      %1655 = vmatprep.subr.bf16.mxu0 0
      %1656 = vmatpush1.bf16.msra.mxu0 0
      %1657 = vmatprep.subr.bf16.mxu0 0
      %1658 = vmatpush1.bf16.msra.mxu0 0
      %1659 = vmatprep.subr.bf16.mxu0 0
      %1660 = vmatpush1.bf16.msra.mxu0 0
      %1661 = vmatprep.subr.bf16.mxu0 0
      %1662 = vmatpush1.bf16.msra.mxu0 0
      %1663 = vmatprep.subr.bf16.mxu0 0
      %1664 = vmatpush1.bf16.msra.mxu0 0
      %1665 = vmatprep.subr.bf16.mxu0 0
      %1666 = vmatpush1.bf16.msra.mxu0 0
      %1667 = vmatprep.subr.bf16.mxu0 0
      %1668 = vmatpush1.bf16.msra.mxu0 0
      %1669 = vmatprep.subr.bf16.mxu0 0
      %1670 = vmatpush1.bf16.msra.mxu0 0
      %1671 = vmatprep.subr.bf16.mxu0 0
      %1672 = vmatpush1.bf16.msra.mxu0 0
      %1673 = vmatprep.subr.bf16.mxu0 0
      %1674 = vmatpush1.bf16.msra.mxu0 0
      %1675 = vmatprep.subr.bf16.mxu0 0
      %1676 = vmatpush1.bf16.msra.mxu0 0
      %1677 = vmatprep.subr.bf16.mxu0 0
      %1678 = vmatpush1.bf16.msra.mxu0 0
      %1679 = vmatprep.subr.bf16.mxu0 0
      %1680 = vmatpush1.bf16.msra.mxu0 0
      %1681 = vmatprep.subr.bf16.mxu0 0
      %1682 = vmatpush1.bf16.msra.mxu0 0
      %1683 = vmatprep.subr.bf16.mxu0 0
      %1684 = vmatpush1.bf16.msra.mxu0 0
      %1685 = vmatprep.mubr.bf16.mxu0 0
      %1686 = vmatmul.mubr.bf16.gmra.mrb[0].mxu0 %v1584
      %v1687 = vpop.f32.mrb[0].mxu0
      %v1688 = vadd.f32 0.0, %v1687
      %v1689 = vpop.f32.mrb[0].mxu0
      %v1690 = vadd.f32 0.0, %v1689
      %v1691 = vpop.f32.mrb[0].mxu0
      %v1692 = vadd.f32 0.0, %v1691
      %v1693 = vpop.f32.mrb[0].mxu0
      %v1694 = vadd.f32 0.0, %v1693
      %1695 = vdwg.mxu0
      %1696 = vmatprep.subr.bf16.mxu0 %v1602
      %1697 = vmatpush1.bf16.msra.mxu0 %v1599
      %1698 = vmatprep.subr.bf16.mxu0 0
      %1699 = vmatpush1.bf16.msra.mxu0 0
      %1700 = vmatprep.subr.bf16.mxu0 0
      %1701 = vmatpush1.bf16.msra.mxu0 0
      %1702 = vmatprep.subr.bf16.mxu0 0
      %1703 = vmatpush1.bf16.msra.mxu0 0
      %1704 = vmatprep.subr.bf16.mxu0 0
      %1705 = vmatpush1.bf16.msra.mxu0 0
      %1706 = vmatprep.subr.bf16.mxu0 0
      %1707 = vmatpush1.bf16.msra.mxu0 0
      %1708 = vmatprep.subr.bf16.mxu0 0
      %1709 = vmatpush1.bf16.msra.mxu0 0
      %1710 = vmatprep.subr.bf16.mxu0 0
      %1711 = vmatpush1.bf16.msra.mxu0 0
      %1712 = vmatprep.subr.bf16.mxu0 0
      %1713 = vmatpush1.bf16.msra.mxu0 0
      %1714 = vmatprep.subr.bf16.mxu0 0
      %1715 = vmatpush1.bf16.msra.mxu0 0
      %1716 = vmatprep.subr.bf16.mxu0 0
      %1717 = vmatpush1.bf16.msra.mxu0 0
      %1718 = vmatprep.subr.bf16.mxu0 0
      %1719 = vmatpush1.bf16.msra.mxu0 0
      %1720 = vmatprep.subr.bf16.mxu0 0
      %1721 = vmatpush1.bf16.msra.mxu0 0
      %1722 = vmatprep.subr.bf16.mxu0 0
      %1723 = vmatpush1.bf16.msra.mxu0 0
      %1724 = vmatprep.subr.bf16.mxu0 0
      %1725 = vmatpush1.bf16.msra.mxu0 0
      %1726 = vmatprep.subr.bf16.mxu0 0
      %1727 = vmatpush1.bf16.msra.mxu0 0
      %1728 = vmatprep.mubr.bf16.mxu0 0
      %1729 = vmatmul.mubr.bf16.gmra.mrb[0].mxu0 %v1584
      %v1730 = vpop.f32.mrb[0].mxu0
      %v1731 = vadd.f32 0.0, %v1730
      %v1732 = vpop.f32.mrb[0].mxu0
      %v1733 = vadd.f32 0.0, %v1732
      %v1734 = vpop.f32.mrb[0].mxu0
      %v1735 = vadd.f32 0.0, %v1734
      %v1736 = vpop.f32.mrb[0].mxu0
      %v1737 = vadd.f32 0.0, %v1736
      %1738 = vdwg.mxu0
      %1739 = vmatprep.subr.bf16.mxu0 %v1608
      %1740 = vmatpush1.bf16.msra.mxu0 %v1605
      %1741 = vmatprep.subr.bf16.mxu0 0
      %1742 = vmatpush1.bf16.msra.mxu0 0
      %1743 = vmatprep.subr.bf16.mxu0 0
      %1744 = vmatpush1.bf16.msra.mxu0 0
      %1745 = vmatprep.subr.bf16.mxu0 0
      %1746 = vmatpush1.bf16.msra.mxu0 0
      %1747 = vmatprep.subr.bf16.mxu0 0
      %1748 = vmatpush1.bf16.msra.mxu0 0
      %1749 = vmatprep.subr.bf16.mxu0 0
      %1750 = vmatpush1.bf16.msra.mxu0 0
      %1751 = vmatprep.subr.bf16.mxu0 0
      %1752 = vmatpush1.bf16.msra.mxu0 0
      %1753 = vmatprep.subr.bf16.mxu0 0
      %1754 = vmatpush1.bf16.msra.mxu0 0
      %1755 = vmatprep.subr.bf16.mxu0 0
      %1756 = vmatpush1.bf16.msra.mxu0 0
      %1757 = vmatprep.subr.bf16.mxu0 0
      %1758 = vmatpush1.bf16.msra.mxu0 0
      %1759 = vmatprep.subr.bf16.mxu0 0
      %1760 = vmatpush1.bf16.msra.mxu0 0
      %1761 = vmatprep.subr.bf16.mxu0 0
      %1762 = vmatpush1.bf16.msra.mxu0 0
      %1763 = vmatprep.subr.bf16.mxu0 0
      %1764 = vmatpush1.bf16.msra.mxu0 0
      %1765 = vmatprep.subr.bf16.mxu0 0
      %1766 = vmatpush1.bf16.msra.mxu0 0
      %1767 = vmatprep.subr.bf16.mxu0 0
      %1768 = vmatpush1.bf16.msra.mxu0 0
      %1769 = vmatprep.subr.bf16.mxu0 0
      %1770 = vmatpush1.bf16.msra.mxu0 0
      %1771 = vmatprep.mubr.bf16.mxu0 0
      %1772 = vmatmul.mubr.bf16.gmra.mrb[0].mxu0 %v1584
      %v1773 = vpop.f32.mrb[0].mxu0
      %v1774 = vadd.f32 0.0, %v1773
      %v1775 = vpop.f32.mrb[0].mxu0
      %v1776 = vadd.f32 0.0, %v1775
      %v1777 = vpop.f32.mrb[0].mxu0
      %v1778 = vadd.f32 0.0, %v1777
      %v1779 = vpop.f32.mrb[0].mxu0
      %v1780 = vadd.f32 0.0, %v1779
      %1781 = vdwg.mxu0
      %v1782 = vadd.f32 %v1509, %v1645
      %v1783 = vadd.f32 %v1510, %v1647
      %v1784 = vadd.f32 %v1511, %v1688
      %v1785 = vadd.f32 %v1512, %v1690
      %v1786 = vadd.f32 %v1513, %v1731
      %v1787 = vadd.f32 %v1514, %v1733
      %v1788 = vadd.f32 %v1515, %v1774
      %v1789 = vadd.f32 %v1516, %v1776
      %v1790 = vadd.f32 %v1517, %v1649
      %v1791 = vadd.f32 %v1518, %v1651
      %v1792 = vadd.f32 %v1519, %v1692
      %v1793 = vadd.f32 %v1520, %v1694
      %v1794 = vadd.f32 %v1521, %v1735
      %v1795 = vadd.f32 %v1522, %v1737
      %v1796 = vadd.f32 %v1523, %v1778
      %v1797 = vadd.f32 %v1524, %v1780
      %1798 = vrot.lane.b32.xlu0 %v909, 34
      %v1799 = vpop.permute.xlu0 %1798
      %1800 = vrot.lane.b32.xlu0 %v910, 34
      %v1801 = vpop.permute.xlu0 %1800
      %1802 = vrot.lane.b32.xlu0 %v911, 34
      %v1803 = vpop.permute.xlu0 %1802
      %1804 = vrot.lane.b32.xlu0 %v912, 34
      %v1805 = vpop.permute.xlu0 %1804
      %v1806 = vrot.slane %v1799, 4
      %v1807 = vrot.slane %v1801, 4
      %v1808 = vrot.slane %v1803, 4
      %v1809 = vrot.slane %v1805, 4
      %vm1810 = vcmask 277504
      %v1811 = vsel %vm1810, %v1806, %v1799
      %v1812 = vsel %vm927, %v1806, %v1807
      %v1813 = vsel %vm1810, %v1812, %v1801
      %v1814 = vsel %vm927, %v1807, %v1808
      %v1815 = vsel %vm1810, %v1814, %v1803
      %v1816 = vsel %vm927, %v1808, %v1809
      %v1817 = vsel %vm1810, %v1816, %v1805
      %v1823 = vmul.bf16 %v1217, %v1811
      %v1824 = vmul.bf16 %v1218, %v1813
      %v1825 = vmul.bf16 %v1219, %v1815
      %v1826 = vmul.bf16 %v1220, %v1817
      %v1827 = vmul.bf16 %v1221, %v1809
      %s1828 = scalar_lea.vmem %s1, 40
      %v1829 = vld [vmem:[%s1828] sm:$0xf]
      %v1830 = vld [vmem:[%s1828 + $0x4] sm:$0x3]
      %v1833 = vunpack.c.l.b16 %v1829
      %v1834 = vunpack.c.l.b16 %v1830
      %v1835 = vpack.c.b16 %v1834, %v1833
      %v1841 = vunpack.c.l.b16 %v1823
      %v1842 = vunpack.c.h.b16 %v1823
      %v1843 = vunpack.c.l.b16 %v1824
      %v1844 = vunpack.c.h.b16 %v1824
      %v1845 = vunpack.c.l.b16 %v1825
      %v1846 = vunpack.c.h.b16 %v1825
      %v1847 = vunpack.c.l.b16 %v1826
      %v1848 = vunpack.c.h.b16 %v1826
      %v1849 = vunpack.c.l.b16 %v1827
      %v1850 = vpack.c.b16 %v1841, %v1841
      %v1851 = vpack.c.b16 %v1842, %v1842
      %v1852 = vpack.c.b16 %v1843, %v1843
      %v1853 = vpack.c.b16 %v1844, %v1844
      %v1854 = vpack.c.b16 %v1845, %v1845
      %v1855 = vpack.c.b16 %v1846, %v1846
      %v1856 = vpack.c.b16 %v1847, %v1847
      %v1857 = vpack.c.b16 %v1848, %v1848
      %v1858 = vpack.c.b16 %v1849, %v1849
      %1859 = vrot.lane.b32.xlu0 %v1850, 94
      %v1860 = vpop.permute.xlu0 %1859
      %1861 = vrot.lane.b32.xlu0 %v1851, 94
      %v1862 = vpop.permute.xlu0 %1861
      %1863 = vrot.lane.b32.xlu0 %v1852, 94
      %v1864 = vpop.permute.xlu0 %1863
      %1865 = vrot.lane.b32.xlu0 %v1853, 94
      %v1866 = vpop.permute.xlu0 %1865
      %1867 = vrot.lane.b32.xlu0 %v1854, 94
      %v1868 = vpop.permute.xlu0 %1867
      %1869 = vrot.lane.b32.xlu0 %v1855, 94
      %v1870 = vpop.permute.xlu0 %1869
      %1871 = vrot.lane.b32.xlu0 %v1856, 94
      %v1872 = vpop.permute.xlu0 %1871
      %1873 = vrot.lane.b32.xlu0 %v1857, 94
      %v1874 = vpop.permute.xlu0 %1873
      %1875 = vrot.lane.b32.xlu0 %v1858, 94
      %v1876 = vpop.permute.xlu0 %1875
      %vm1877 = vcmask 769024
      %v1878 = vsel %vm1877, %v1860, %v1862
      %v1879 = vsel %vm1877, %v1862, %v1864
      %v1880 = vsel %vm1877, %v1864, %v1866
      %v1881 = vsel %vm1877, %v1866, %v1868
      %v1882 = vsel %vm1877, %v1868, %v1870
      %v1883 = vsel %vm1877, %v1870, %v1872
      %v1884 = vsel %vm1877, %v1872, %v1874
      %v1885 = vsel %vm1877, %v1874, %v1876
      %v1887 = vsel %vm412, %v1835, 0
      %v1890 = vsel %vm416, %v1878, 0
      %v1893 = vsel %vm416, %v1879, 0
      %v1896 = vsel %vm416, %v1880, 0
      %v1899 = vsel %vm416, %v1881, 0
      %v1902 = vsel %vm416, %v1882, 0
      %v1905 = vsel %vm416, %v1883, 0
      %v1908 = vsel %vm416, %v1884, 0
      %v1911 = vsel %vm416, %v1885, 0
      %1913 = vmatprep.subr.bf16.mxu0 %v1893
      %1914 = vmatpush1.bf16.msra.mxu0 %v1890
      %1915 = vmatprep.subr.bf16.mxu0 0
      %1916 = vmatpush1.bf16.msra.mxu0 0
      %1917 = vmatprep.subr.bf16.mxu0 0
      %1918 = vmatpush1.bf16.msra.mxu0 0
      %1919 = vmatprep.subr.bf16.mxu0 0
      %1920 = vmatpush1.bf16.msra.mxu0 0
      %1921 = vmatprep.subr.bf16.mxu0 0
      %1922 = vmatpush1.bf16.msra.mxu0 0
      %1923 = vmatprep.subr.bf16.mxu0 0
      %1924 = vmatpush1.bf16.msra.mxu0 0
      %1925 = vmatprep.subr.bf16.mxu0 0
      %1926 = vmatpush1.bf16.msra.mxu0 0
      %1927 = vmatprep.subr.bf16.mxu0 0
      %1928 = vmatpush1.bf16.msra.mxu0 0
      %1929 = vmatprep.subr.bf16.mxu0 0
      %1930 = vmatpush1.bf16.msra.mxu0 0
      %1931 = vmatprep.subr.bf16.mxu0 0
      %1932 = vmatpush1.bf16.msra.mxu0 0
      %1933 = vmatprep.subr.bf16.mxu0 0
      %1934 = vmatpush1.bf16.msra.mxu0 0
      %1935 = vmatprep.subr.bf16.mxu0 0
      %1936 = vmatpush1.bf16.msra.mxu0 0
      %1937 = vmatprep.subr.bf16.mxu0 0
      %1938 = vmatpush1.bf16.msra.mxu0 0
      %1939 = vmatprep.subr.bf16.mxu0 0
      %1940 = vmatpush1.bf16.msra.mxu0 0
      %1941 = vmatprep.subr.bf16.mxu0 0
      %1942 = vmatpush1.bf16.msra.mxu0 0
      %1943 = vmatprep.subr.bf16.mxu0 0
      %1944 = vmatpush1.bf16.msra.mxu0 0
      %1945 = vmatprep.mubr.bf16.mxu0 0
      %1946 = vmatmul.mubr.bf16.gmra.mrb[0].mxu0 %v1887
      %v1947 = vpop.f32.mrb[0].mxu0
      %v1948 = vadd.f32 0.0, %v1947
      %v1949 = vpop.f32.mrb[0].mxu0
      %v1950 = vadd.f32 0.0, %v1949
      %v1951 = vpop.f32.mrb[0].mxu0
      %v1952 = vadd.f32 0.0, %v1951
      %v1953 = vpop.f32.mrb[0].mxu0
      %v1954 = vadd.f32 0.0, %v1953
      %1955 = vdwg.mxu0
      %1956 = vmatprep.subr.bf16.mxu0 %v1899
      %1957 = vmatpush1.bf16.msra.mxu0 %v1896
      %1958 = vmatprep.subr.bf16.mxu0 0
      %1959 = vmatpush1.bf16.msra.mxu0 0
      %1960 = vmatprep.subr.bf16.mxu0 0
      %1961 = vmatpush1.bf16.msra.mxu0 0
      %1962 = vmatprep.subr.bf16.mxu0 0
      %1963 = vmatpush1.bf16.msra.mxu0 0
      %1964 = vmatprep.subr.bf16.mxu0 0
      %1965 = vmatpush1.bf16.msra.mxu0 0
      %1966 = vmatprep.subr.bf16.mxu0 0
      %1967 = vmatpush1.bf16.msra.mxu0 0
      %1968 = vmatprep.subr.bf16.mxu0 0
      %1969 = vmatpush1.bf16.msra.mxu0 0
      %1970 = vmatprep.subr.bf16.mxu0 0
      %1971 = vmatpush1.bf16.msra.mxu0 0
      %1972 = vmatprep.subr.bf16.mxu0 0
      %1973 = vmatpush1.bf16.msra.mxu0 0
      %1974 = vmatprep.subr.bf16.mxu0 0
      %1975 = vmatpush1.bf16.msra.mxu0 0
      %1976 = vmatprep.subr.bf16.mxu0 0
      %1977 = vmatpush1.bf16.msra.mxu0 0
      %1978 = vmatprep.subr.bf16.mxu0 0
      %1979 = vmatpush1.bf16.msra.mxu0 0
      %1980 = vmatprep.subr.bf16.mxu0 0
      %1981 = vmatpush1.bf16.msra.mxu0 0
      %1982 = vmatprep.subr.bf16.mxu0 0
      %1983 = vmatpush1.bf16.msra.mxu0 0
      %1984 = vmatprep.subr.bf16.mxu0 0
      %1985 = vmatpush1.bf16.msra.mxu0 0
      %1986 = vmatprep.subr.bf16.mxu0 0
      %1987 = vmatpush1.bf16.msra.mxu0 0
      %1988 = vmatprep.mubr.bf16.mxu0 0
      %1989 = vmatmul.mubr.bf16.gmra.mrb[0].mxu0 %v1887
      %v1990 = vpop.f32.mrb[0].mxu0
      %v1991 = vadd.f32 0.0, %v1990
      %v1992 = vpop.f32.mrb[0].mxu0
      %v1993 = vadd.f32 0.0, %v1992
      %v1994 = vpop.f32.mrb[0].mxu0
      %v1995 = vadd.f32 0.0, %v1994
      %v1996 = vpop.f32.mrb[0].mxu0
      %v1997 = vadd.f32 0.0, %v1996
      %1998 = vdwg.mxu0
      %1999 = vmatprep.subr.bf16.mxu0 %v1905
      %2000 = vmatpush1.bf16.msra.mxu0 %v1902
      %2001 = vmatprep.subr.bf16.mxu0 0
      %2002 = vmatpush1.bf16.msra.mxu0 0
      %2003 = vmatprep.subr.bf16.mxu0 0
      %2004 = vmatpush1.bf16.msra.mxu0 0
      %2005 = vmatprep.subr.bf16.mxu0 0
      %2006 = vmatpush1.bf16.msra.mxu0 0
      %2007 = vmatprep.subr.bf16.mxu0 0
      %2008 = vmatpush1.bf16.msra.mxu0 0
      %2009 = vmatprep.subr.bf16.mxu0 0
      %2010 = vmatpush1.bf16.msra.mxu0 0
      %2011 = vmatprep.subr.bf16.mxu0 0
      %2012 = vmatpush1.bf16.msra.mxu0 0
      %2013 = vmatprep.subr.bf16.mxu0 0
      %2014 = vmatpush1.bf16.msra.mxu0 0
      %2015 = vmatprep.subr.bf16.mxu0 0
      %2016 = vmatpush1.bf16.msra.mxu0 0
      %2017 = vmatprep.subr.bf16.mxu0 0
      %2018 = vmatpush1.bf16.msra.mxu0 0
      %2019 = vmatprep.subr.bf16.mxu0 0
      %2020 = vmatpush1.bf16.msra.mxu0 0
      %2021 = vmatprep.subr.bf16.mxu0 0
      %2022 = vmatpush1.bf16.msra.mxu0 0
      %2023 = vmatprep.subr.bf16.mxu0 0
      %2024 = vmatpush1.bf16.msra.mxu0 0
      %2025 = vmatprep.subr.bf16.mxu0 0
      %2026 = vmatpush1.bf16.msra.mxu0 0
      %2027 = vmatprep.subr.bf16.mxu0 0
      %2028 = vmatpush1.bf16.msra.mxu0 0
      %2029 = vmatprep.subr.bf16.mxu0 0
      %2030 = vmatpush1.bf16.msra.mxu0 0
      %2031 = vmatprep.mubr.bf16.mxu0 0
      %2032 = vmatmul.mubr.bf16.gmra.mrb[0].mxu0 %v1887
      %v2033 = vpop.f32.mrb[0].mxu0
      %v2034 = vadd.f32 0.0, %v2033
      %v2035 = vpop.f32.mrb[0].mxu0
      %v2036 = vadd.f32 0.0, %v2035
      %v2037 = vpop.f32.mrb[0].mxu0
      %v2038 = vadd.f32 0.0, %v2037
      %v2039 = vpop.f32.mrb[0].mxu0
      %v2040 = vadd.f32 0.0, %v2039
      %2041 = vdwg.mxu0
      %2042 = vmatprep.subr.bf16.mxu0 %v1911
      %2043 = vmatpush1.bf16.msra.mxu0 %v1908
      %2044 = vmatprep.subr.bf16.mxu0 0
      %2045 = vmatpush1.bf16.msra.mxu0 0
      %2046 = vmatprep.subr.bf16.mxu0 0
      %2047 = vmatpush1.bf16.msra.mxu0 0
      %2048 = vmatprep.subr.bf16.mxu0 0
      %2049 = vmatpush1.bf16.msra.mxu0 0
      %2050 = vmatprep.subr.bf16.mxu0 0
      %2051 = vmatpush1.bf16.msra.mxu0 0
      %2052 = vmatprep.subr.bf16.mxu0 0
      %2053 = vmatpush1.bf16.msra.mxu0 0
      %2054 = vmatprep.subr.bf16.mxu0 0
      %2055 = vmatpush1.bf16.msra.mxu0 0
      %2056 = vmatprep.subr.bf16.mxu0 0
      %2057 = vmatpush1.bf16.msra.mxu0 0
      %2058 = vmatprep.subr.bf16.mxu0 0
      %2059 = vmatpush1.bf16.msra.mxu0 0
      %2060 = vmatprep.subr.bf16.mxu0 0
      %2061 = vmatpush1.bf16.msra.mxu0 0
      %2062 = vmatprep.subr.bf16.mxu0 0
      %2063 = vmatpush1.bf16.msra.mxu0 0
      %2064 = vmatprep.subr.bf16.mxu0 0
      %2065 = vmatpush1.bf16.msra.mxu0 0
      %2066 = vmatprep.subr.bf16.mxu0 0
      %2067 = vmatpush1.bf16.msra.mxu0 0
      %2068 = vmatprep.subr.bf16.mxu0 0
      %2069 = vmatpush1.bf16.msra.mxu0 0
      %2070 = vmatprep.subr.bf16.mxu0 0
      %2071 = vmatpush1.bf16.msra.mxu0 0
      %2072 = vmatprep.subr.bf16.mxu0 0
      %2073 = vmatpush1.bf16.msra.mxu0 0
      %2074 = vmatprep.mubr.bf16.mxu0 0
      %2075 = vmatmul.mubr.bf16.gmra.mrb[0].mxu0 %v1887
      %v2076 = vpop.f32.mrb[0].mxu0
      %v2077 = vadd.f32 0.0, %v2076
      %v2078 = vpop.f32.mrb[0].mxu0
      %v2079 = vadd.f32 0.0, %v2078
      %v2080 = vpop.f32.mrb[0].mxu0
      %v2081 = vadd.f32 0.0, %v2080
      %v2082 = vpop.f32.mrb[0].mxu0
      %v2083 = vadd.f32 0.0, %v2082
      %2084 = vdwg.mxu0
      %v2085 = vadd.f32 %v1782, %v1948
      %v2086 = vadd.f32 %v1783, %v1950
      %v2087 = vadd.f32 %v1784, %v1991
      %v2088 = vadd.f32 %v1785, %v1993
      %v2089 = vadd.f32 %v1786, %v2034
      %v2090 = vadd.f32 %v1787, %v2036
      %v2091 = vadd.f32 %v1788, %v2077
      %v2092 = vadd.f32 %v1789, %v2079
      %v2093 = vadd.f32 %v1790, %v1952
      %v2094 = vadd.f32 %v1791, %v1954
      %v2095 = vadd.f32 %v1792, %v1995
      %v2096 = vadd.f32 %v1793, %v1997
      %v2097 = vadd.f32 %v1794, %v2038
      %v2098 = vadd.f32 %v1795, %v2040
      %v2099 = vadd.f32 %v1796, %v2081
      %v2100 = vadd.f32 %v1797, %v2083
      %2101 = vrot.lane.b32.xlu0 %v339, 64
      %v2102 = vpop.permute.xlu0 %2101
      %2103 = vrot.lane.b32.xlu0 %v340, 64
      %v2104 = vpop.permute.xlu0 %2103
      %2105 = vrot.lane.b32.xlu0 %v341, 64
      %v2106 = vpop.permute.xlu0 %2105
      %2107 = vrot.lane.b32.xlu0 %v342, 64
      %v2108 = vpop.permute.xlu0 %2107
      %v2109 = vrot.slane %v2102, 4
      %v2110 = vrot.slane %v2104, 4
      %v2111 = vrot.slane %v2106, 4
      %v2112 = vrot.slane %v2108, 4
      %vm2113 = vcmask 523264
      %v2114 = vsel %vm2113, %v2109, %v2102
      %v2115 = vsel %vm927, %v2109, %v2110
      %v2116 = vsel %vm2113, %v2115, %v2104
      %v2117 = vsel %vm927, %v2110, %v2111
      %v2118 = vsel %vm2113, %v2117, %v2106
      %v2119 = vsel %vm927, %v2111, %v2112
      %v2120 = vsel %vm2113, %v2119, %v2108
      %v2126 = vmul.bf16 %v1217, %v2114
      %v2127 = vmul.bf16 %v1218, %v2116
      %v2128 = vmul.bf16 %v1219, %v2118
      %v2129 = vmul.bf16 %v1220, %v2120
      %v2130 = vmul.bf16 %v1221, %v2112
      %s2131 = scalar_lea.vmem %s1, 48
      %v2132 = vld [vmem:[%s2131] sm:$0xf]
      %v2133 = vld [vmem:[%s2131 + $0x4] sm:$0x3]
      %v2136 = vunpack.c.l.b16 %v2132
      %v2137 = vunpack.c.l.b16 %v2133
      %v2138 = vpack.c.b16 %v2137, %v2136
      %v2144 = vunpack.c.l.b16 %v2126
      %v2145 = vunpack.c.h.b16 %v2126
      %v2146 = vunpack.c.l.b16 %v2127
      %v2147 = vunpack.c.h.b16 %v2127
      %v2148 = vunpack.c.l.b16 %v2128
      %v2149 = vunpack.c.h.b16 %v2128
      %v2150 = vunpack.c.l.b16 %v2129
      %v2151 = vunpack.c.h.b16 %v2129
      %v2152 = vunpack.c.l.b16 %v2130
      %v2153 = vpack.c.b16 %v2144, %v2144
      %v2154 = vpack.c.b16 %v2145, %v2145
      %v2155 = vpack.c.b16 %v2146, %v2146
      %v2156 = vpack.c.b16 %v2147, %v2147
      %v2157 = vpack.c.b16 %v2148, %v2148
      %v2158 = vpack.c.b16 %v2149, %v2149
      %v2159 = vpack.c.b16 %v2150, %v2150
      %v2160 = vpack.c.b16 %v2151, %v2151
      %v2161 = vpack.c.b16 %v2152, %v2152
      %2162 = vrot.lane.b32.xlu0 %v2153, 64
      %v2163 = vpop.permute.xlu0 %2162
      %2164 = vrot.lane.b32.xlu0 %v2154, 64
      %v2165 = vpop.permute.xlu0 %2164
      %2166 = vrot.lane.b32.xlu0 %v2155, 64
      %v2167 = vpop.permute.xlu0 %2166
      %2168 = vrot.lane.b32.xlu0 %v2156, 64
      %v2169 = vpop.permute.xlu0 %2168
      %2170 = vrot.lane.b32.xlu0 %v2157, 64
      %v2171 = vpop.permute.xlu0 %2170
      %2172 = vrot.lane.b32.xlu0 %v2158, 64
      %v2173 = vpop.permute.xlu0 %2172
      %2174 = vrot.lane.b32.xlu0 %v2159, 64
      %v2175 = vpop.permute.xlu0 %2174
      %2176 = vrot.lane.b32.xlu0 %v2160, 64
      %v2177 = vpop.permute.xlu0 %2176
      %2178 = vrot.lane.b32.xlu0 %v2161, 64
      %v2179 = vpop.permute.xlu0 %2178
      %v2180 = vsel %vm2113, %v2163, %v2165
      %v2181 = vsel %vm2113, %v2165, %v2167
      %v2182 = vsel %vm2113, %v2167, %v2169
      %v2183 = vsel %vm2113, %v2169, %v2171
      %v2184 = vsel %vm2113, %v2171, %v2173
      %v2185 = vsel %vm2113, %v2173, %v2175
      %v2186 = vsel %vm2113, %v2175, %v2177
      %v2187 = vsel %vm2113, %v2177, %v2179
      %v2189 = vsel %vm412, %v2138, 0
      %v2192 = vsel %vm416, %v2180, 0
      %v2195 = vsel %vm416, %v2181, 0
      %v2198 = vsel %vm416, %v2182, 0
      %v2201 = vsel %vm416, %v2183, 0
      %v2204 = vsel %vm416, %v2184, 0
      %v2207 = vsel %vm416, %v2185, 0
      %v2210 = vsel %vm416, %v2186, 0
      %v2213 = vsel %vm416, %v2187, 0
      %2215 = vmatprep.subr.bf16.mxu0 %v2195
      %2216 = vmatpush1.bf16.msra.mxu0 %v2192
      %2217 = vmatprep.subr.bf16.mxu0 0
      %2218 = vmatpush1.bf16.msra.mxu0 0
      %2219 = vmatprep.subr.bf16.mxu0 0
      %2220 = vmatpush1.bf16.msra.mxu0 0
      %2221 = vmatprep.subr.bf16.mxu0 0
      %2222 = vmatpush1.bf16.msra.mxu0 0
      %2223 = vmatprep.subr.bf16.mxu0 0
      %2224 = vmatpush1.bf16.msra.mxu0 0
      %2225 = vmatprep.subr.bf16.mxu0 0
      %2226 = vmatpush1.bf16.msra.mxu0 0
      %2227 = vmatprep.subr.bf16.mxu0 0
      %2228 = vmatpush1.bf16.msra.mxu0 0
      %2229 = vmatprep.subr.bf16.mxu0 0
      %2230 = vmatpush1.bf16.msra.mxu0 0
      %2231 = vmatprep.subr.bf16.mxu0 0
      %2232 = vmatpush1.bf16.msra.mxu0 0
      %2233 = vmatprep.subr.bf16.mxu0 0
      %2234 = vmatpush1.bf16.msra.mxu0 0
      %2235 = vmatprep.subr.bf16.mxu0 0
      %2236 = vmatpush1.bf16.msra.mxu0 0
      %2237 = vmatprep.subr.bf16.mxu0 0
      %2238 = vmatpush1.bf16.msra.mxu0 0
      %2239 = vmatprep.subr.bf16.mxu0 0
      %2240 = vmatpush1.bf16.msra.mxu0 0
      %2241 = vmatprep.subr.bf16.mxu0 0
      %2242 = vmatpush1.bf16.msra.mxu0 0
      %2243 = vmatprep.subr.bf16.mxu0 0
      %2244 = vmatpush1.bf16.msra.mxu0 0
      %2245 = vmatprep.subr.bf16.mxu0 0
      %2246 = vmatpush1.bf16.msra.mxu0 0
      %2247 = vmatprep.mubr.bf16.mxu0 0
      %2248 = vmatmul.mubr.bf16.gmra.mrb[0].mxu0 %v2189
      %v2249 = vpop.f32.mrb[0].mxu0
      %v2250 = vadd.f32 0.0, %v2249
      %v2251 = vpop.f32.mrb[0].mxu0
      %v2252 = vadd.f32 0.0, %v2251
      %v2253 = vpop.f32.mrb[0].mxu0
      %v2254 = vadd.f32 0.0, %v2253
      %v2255 = vpop.f32.mrb[0].mxu0
      %v2256 = vadd.f32 0.0, %v2255
      %2257 = vdwg.mxu0
      %2258 = vmatprep.subr.bf16.mxu0 %v2201
      %2259 = vmatpush1.bf16.msra.mxu0 %v2198
      %2260 = vmatprep.subr.bf16.mxu0 0
      %2261 = vmatpush1.bf16.msra.mxu0 0
      %2262 = vmatprep.subr.bf16.mxu0 0
      %2263 = vmatpush1.bf16.msra.mxu0 0
      %2264 = vmatprep.subr.bf16.mxu0 0
      %2265 = vmatpush1.bf16.msra.mxu0 0
      %2266 = vmatprep.subr.bf16.mxu0 0
      %2267 = vmatpush1.bf16.msra.mxu0 0
      %2268 = vmatprep.subr.bf16.mxu0 0
      %2269 = vmatpush1.bf16.msra.mxu0 0
      %2270 = vmatprep.subr.bf16.mxu0 0
      %2271 = vmatpush1.bf16.msra.mxu0 0
      %2272 = vmatprep.subr.bf16.mxu0 0
      %2273 = vmatpush1.bf16.msra.mxu0 0
      %2274 = vmatprep.subr.bf16.mxu0 0
      %2275 = vmatpush1.bf16.msra.mxu0 0
      %2276 = vmatprep.subr.bf16.mxu0 0
      %2277 = vmatpush1.bf16.msra.mxu0 0
      %2278 = vmatprep.subr.bf16.mxu0 0
      %2279 = vmatpush1.bf16.msra.mxu0 0
      %2280 = vmatprep.subr.bf16.mxu0 0
      %2281 = vmatpush1.bf16.msra.mxu0 0
      %2282 = vmatprep.subr.bf16.mxu0 0
      %2283 = vmatpush1.bf16.msra.mxu0 0
      %2284 = vmatprep.subr.bf16.mxu0 0
      %2285 = vmatpush1.bf16.msra.mxu0 0
      %2286 = vmatprep.subr.bf16.mxu0 0
      %2287 = vmatpush1.bf16.msra.mxu0 0
      %2288 = vmatprep.subr.bf16.mxu0 0
      %2289 = vmatpush1.bf16.msra.mxu0 0
      %2290 = vmatprep.mubr.bf16.mxu0 0
      %2291 = vmatmul.mubr.bf16.gmra.mrb[0].mxu0 %v2189
      %v2292 = vpop.f32.mrb[0].mxu0
      %v2293 = vadd.f32 0.0, %v2292
      %v2294 = vpop.f32.mrb[0].mxu0
      %v2295 = vadd.f32 0.0, %v2294
      %v2296 = vpop.f32.mrb[0].mxu0
      %v2297 = vadd.f32 0.0, %v2296
      %v2298 = vpop.f32.mrb[0].mxu0
      %v2299 = vadd.f32 0.0, %v2298
      %2300 = vdwg.mxu0
      %2301 = vmatprep.subr.bf16.mxu0 %v2207
      %2302 = vmatpush1.bf16.msra.mxu0 %v2204
      %2303 = vmatprep.subr.bf16.mxu0 0
      %2304 = vmatpush1.bf16.msra.mxu0 0
      %2305 = vmatprep.subr.bf16.mxu0 0
      %2306 = vmatpush1.bf16.msra.mxu0 0
      %2307 = vmatprep.subr.bf16.mxu0 0
      %2308 = vmatpush1.bf16.msra.mxu0 0
      %2309 = vmatprep.subr.bf16.mxu0 0
      %2310 = vmatpush1.bf16.msra.mxu0 0
      %2311 = vmatprep.subr.bf16.mxu0 0
      %2312 = vmatpush1.bf16.msra.mxu0 0
      %2313 = vmatprep.subr.bf16.mxu0 0
      %2314 = vmatpush1.bf16.msra.mxu0 0
      %2315 = vmatprep.subr.bf16.mxu0 0
      %2316 = vmatpush1.bf16.msra.mxu0 0
      %2317 = vmatprep.subr.bf16.mxu0 0
      %2318 = vmatpush1.bf16.msra.mxu0 0
      %2319 = vmatprep.subr.bf16.mxu0 0
      %2320 = vmatpush1.bf16.msra.mxu0 0
      %2321 = vmatprep.subr.bf16.mxu0 0
      %2322 = vmatpush1.bf16.msra.mxu0 0
      %2323 = vmatprep.subr.bf16.mxu0 0
      %2324 = vmatpush1.bf16.msra.mxu0 0
      %2325 = vmatprep.subr.bf16.mxu0 0
      %2326 = vmatpush1.bf16.msra.mxu0 0
      %2327 = vmatprep.subr.bf16.mxu0 0
      %2328 = vmatpush1.bf16.msra.mxu0 0
      %2329 = vmatprep.subr.bf16.mxu0 0
      %2330 = vmatpush1.bf16.msra.mxu0 0
      %2331 = vmatprep.subr.bf16.mxu0 0
      %2332 = vmatpush1.bf16.msra.mxu0 0
      %2333 = vmatprep.mubr.bf16.mxu0 0
      %2334 = vmatmul.mubr.bf16.gmra.mrb[0].mxu0 %v2189
      %v2335 = vpop.f32.mrb[0].mxu0
      %v2336 = vadd.f32 0.0, %v2335
      %v2337 = vpop.f32.mrb[0].mxu0
      %v2338 = vadd.f32 0.0, %v2337
      %v2339 = vpop.f32.mrb[0].mxu0
      %v2340 = vadd.f32 0.0, %v2339
      %v2341 = vpop.f32.mrb[0].mxu0
      %v2342 = vadd.f32 0.0, %v2341
      %2343 = vdwg.mxu0
      %2344 = vmatprep.subr.bf16.mxu0 %v2213
      %2345 = vmatpush1.bf16.msra.mxu0 %v2210
      %2346 = vmatprep.subr.bf16.mxu0 0
      %2347 = vmatpush1.bf16.msra.mxu0 0
      %2348 = vmatprep.subr.bf16.mxu0 0
      %2349 = vmatpush1.bf16.msra.mxu0 0
      %2350 = vmatprep.subr.bf16.mxu0 0
      %2351 = vmatpush1.bf16.msra.mxu0 0
      %2352 = vmatprep.subr.bf16.mxu0 0
      %2353 = vmatpush1.bf16.msra.mxu0 0
      %2354 = vmatprep.subr.bf16.mxu0 0
      %2355 = vmatpush1.bf16.msra.mxu0 0
      %2356 = vmatprep.subr.bf16.mxu0 0
      %2357 = vmatpush1.bf16.msra.mxu0 0
      %2358 = vmatprep.subr.bf16.mxu0 0
      %2359 = vmatpush1.bf16.msra.mxu0 0
      %2360 = vmatprep.subr.bf16.mxu0 0
      %2361 = vmatpush1.bf16.msra.mxu0 0
      %2362 = vmatprep.subr.bf16.mxu0 0
      %2363 = vmatpush1.bf16.msra.mxu0 0
      %2364 = vmatprep.subr.bf16.mxu0 0
      %2365 = vmatpush1.bf16.msra.mxu0 0
      %2366 = vmatprep.subr.bf16.mxu0 0
      %2367 = vmatpush1.bf16.msra.mxu0 0
      %2368 = vmatprep.subr.bf16.mxu0 0
      %2369 = vmatpush1.bf16.msra.mxu0 0
      %2370 = vmatprep.subr.bf16.mxu0 0
      %2371 = vmatpush1.bf16.msra.mxu0 0
      %2372 = vmatprep.subr.bf16.mxu0 0
      %2373 = vmatpush1.bf16.msra.mxu0 0
      %2374 = vmatprep.subr.bf16.mxu0 0
      %2375 = vmatpush1.bf16.msra.mxu0 0
      %2376 = vmatprep.mubr.bf16.mxu0 0
      %2377 = vmatmul.mubr.bf16.gmra.mrb[0].mxu0 %v2189
      %v2378 = vpop.f32.mrb[0].mxu0
      %v2379 = vadd.f32 0.0, %v2378
      %v2380 = vpop.f32.mrb[0].mxu0
      %v2381 = vadd.f32 0.0, %v2380
      %v2382 = vpop.f32.mrb[0].mxu0
      %v2383 = vadd.f32 0.0, %v2382
      %v2384 = vpop.f32.mrb[0].mxu0
      %v2385 = vadd.f32 0.0, %v2384
      %2386 = vdwg.mxu0
      %v2387 = vadd.f32 %v2085, %v2250
      %v2388 = vadd.f32 %v2086, %v2252
      %v2389 = vadd.f32 %v2087, %v2293
      %v2390 = vadd.f32 %v2088, %v2295
      %v2391 = vadd.f32 %v2089, %v2336
      %v2392 = vadd.f32 %v2090, %v2338
      %v2393 = vadd.f32 %v2091, %v2379
      %v2394 = vadd.f32 %v2092, %v2381
      %v2395 = vadd.f32 %v2093, %v2254
      %v2396 = vadd.f32 %v2094, %v2256
      %v2397 = vadd.f32 %v2095, %v2297
      %v2398 = vadd.f32 %v2096, %v2299
      %v2399 = vadd.f32 %v2097, %v2340
      %v2400 = vadd.f32 %v2098, %v2342
      %v2401 = vadd.f32 %v2099, %v2383
      %v2402 = vadd.f32 %v2100, %v2385
      %s2403 = scalar_lea.vmem %s1, 56
      %v2404 = vld [vmem:[%s2403] sm:$0xf]
      %v2405 = vld [vmem:[%s2403 + $0x4] sm:$0x3]
      %v2408 = vunpack.c.l.b16 %v2404
      %v2409 = vunpack.c.l.b16 %v2405
      %v2410 = vpack.c.b16 %v2409, %v2408
      %2411 = vrot.lane.b32.xlu0 %v1547, 63
      %v2412 = vpop.permute.xlu0 %2411
      %2413 = vrot.lane.b32.xlu0 %v1548, 63
      %v2414 = vpop.permute.xlu0 %2413
      %2415 = vrot.lane.b32.xlu0 %v1549, 63
      %v2416 = vpop.permute.xlu0 %2415
      %2417 = vrot.lane.b32.xlu0 %v1550, 63
      %v2418 = vpop.permute.xlu0 %2417
      %2419 = vrot.lane.b32.xlu0 %v1551, 63
      %v2420 = vpop.permute.xlu0 %2419
      %2421 = vrot.lane.b32.xlu0 %v1552, 63
      %v2422 = vpop.permute.xlu0 %2421
      %2423 = vrot.lane.b32.xlu0 %v1553, 63
      %v2424 = vpop.permute.xlu0 %2423
      %2425 = vrot.lane.b32.xlu0 %v1554, 63
      %v2426 = vpop.permute.xlu0 %2425
      %2427 = vrot.lane.b32.xlu0 %v1555, 63
      %v2428 = vpop.permute.xlu0 %2427
      %vm2429 = vcmask 515072
      %v2430 = vsel %vm2429, %v2412, %v2414
      %v2431 = vsel %vm2429, %v2414, %v2416
      %v2432 = vsel %vm2429, %v2416, %v2418
      %v2433 = vsel %vm2429, %v2418, %v2420
      %v2434 = vsel %vm2429, %v2420, %v2422
      %v2435 = vsel %vm2429, %v2422, %v2424
      %v2436 = vsel %vm2429, %v2424, %v2426
      %v2437 = vsel %vm2429, %v2426, %v2428
      %v2439 = vsel %vm412, %v2410, 0
      %v2442 = vsel %vm416, %v2430, 0
      %v2445 = vsel %vm416, %v2431, 0
      %v2448 = vsel %vm416, %v2432, 0
      %v2451 = vsel %vm416, %v2433, 0
      %v2454 = vsel %vm416, %v2434, 0
      %v2457 = vsel %vm416, %v2435, 0
      %v2460 = vsel %vm416, %v2436, 0
      %v2463 = vsel %vm416, %v2437, 0
      %2465 = vmatprep.subr.bf16.mxu0 %v2445
      %2466 = vmatpush1.bf16.msra.mxu0 %v2442
      %2467 = vmatprep.subr.bf16.mxu0 0
      %2468 = vmatpush1.bf16.msra.mxu0 0
      %2469 = vmatprep.subr.bf16.mxu0 0
      %2470 = vmatpush1.bf16.msra.mxu0 0
      %2471 = vmatprep.subr.bf16.mxu0 0
      %2472 = vmatpush1.bf16.msra.mxu0 0
      %2473 = vmatprep.subr.bf16.mxu0 0
      %2474 = vmatpush1.bf16.msra.mxu0 0
      %2475 = vmatprep.subr.bf16.mxu0 0
      %2476 = vmatpush1.bf16.msra.mxu0 0
      %2477 = vmatprep.subr.bf16.mxu0 0
      %2478 = vmatpush1.bf16.msra.mxu0 0
      %2479 = vmatprep.subr.bf16.mxu0 0
      %2480 = vmatpush1.bf16.msra.mxu0 0
      %2481 = vmatprep.subr.bf16.mxu0 0
      %2482 = vmatpush1.bf16.msra.mxu0 0
      %2483 = vmatprep.subr.bf16.mxu0 0
      %2484 = vmatpush1.bf16.msra.mxu0 0
      %2485 = vmatprep.subr.bf16.mxu0 0
      %2486 = vmatpush1.bf16.msra.mxu0 0
      %2487 = vmatprep.subr.bf16.mxu0 0
      %2488 = vmatpush1.bf16.msra.mxu0 0
      %2489 = vmatprep.subr.bf16.mxu0 0
      %2490 = vmatpush1.bf16.msra.mxu0 0
      %2491 = vmatprep.subr.bf16.mxu0 0
      %2492 = vmatpush1.bf16.msra.mxu0 0
      %2493 = vmatprep.subr.bf16.mxu0 0
      %2494 = vmatpush1.bf16.msra.mxu0 0
      %2495 = vmatprep.subr.bf16.mxu0 0
      %2496 = vmatpush1.bf16.msra.mxu0 0
      %2497 = vmatprep.mubr.bf16.mxu0 0
      %2498 = vmatmul.mubr.bf16.gmra.mrb[0].mxu0 %v2439
      %v2499 = vpop.f32.mrb[0].mxu0
      %v2500 = vadd.f32 0.0, %v2499
      %v2501 = vpop.f32.mrb[0].mxu0
      %v2502 = vadd.f32 0.0, %v2501
      %v2503 = vpop.f32.mrb[0].mxu0
      %v2504 = vadd.f32 0.0, %v2503
      %v2505 = vpop.f32.mrb[0].mxu0
      %v2506 = vadd.f32 0.0, %v2505
      %2507 = vdwg.mxu0
      %2508 = vmatprep.subr.bf16.mxu0 %v2451
      %2509 = vmatpush1.bf16.msra.mxu0 %v2448
      %2510 = vmatprep.subr.bf16.mxu0 0
      %2511 = vmatpush1.bf16.msra.mxu0 0
      %2512 = vmatprep.subr.bf16.mxu0 0
      %2513 = vmatpush1.bf16.msra.mxu0 0
      %2514 = vmatprep.subr.bf16.mxu0 0
      %2515 = vmatpush1.bf16.msra.mxu0 0
      %2516 = vmatprep.subr.bf16.mxu0 0
      %2517 = vmatpush1.bf16.msra.mxu0 0
      %2518 = vmatprep.subr.bf16.mxu0 0
      %2519 = vmatpush1.bf16.msra.mxu0 0
      %2520 = vmatprep.subr.bf16.mxu0 0
      %2521 = vmatpush1.bf16.msra.mxu0 0
      %2522 = vmatprep.subr.bf16.mxu0 0
      %2523 = vmatpush1.bf16.msra.mxu0 0
      %2524 = vmatprep.subr.bf16.mxu0 0
      %2525 = vmatpush1.bf16.msra.mxu0 0
      %2526 = vmatprep.subr.bf16.mxu0 0
      %2527 = vmatpush1.bf16.msra.mxu0 0
      %2528 = vmatprep.subr.bf16.mxu0 0
      %2529 = vmatpush1.bf16.msra.mxu0 0
      %2530 = vmatprep.subr.bf16.mxu0 0
      %2531 = vmatpush1.bf16.msra.mxu0 0
      %2532 = vmatprep.subr.bf16.mxu0 0
      %2533 = vmatpush1.bf16.msra.mxu0 0
      %2534 = vmatprep.subr.bf16.mxu0 0
      %2535 = vmatpush1.bf16.msra.mxu0 0
      %2536 = vmatprep.subr.bf16.mxu0 0
      %2537 = vmatpush1.bf16.msra.mxu0 0
      %2538 = vmatprep.subr.bf16.mxu0 0
      %2539 = vmatpush1.bf16.msra.mxu0 0
      %2540 = vmatprep.mubr.bf16.mxu0 0
      %2541 = vmatmul.mubr.bf16.gmra.mrb[0].mxu0 %v2439
      %v2542 = vpop.f32.mrb[0].mxu0
      %v2543 = vadd.f32 0.0, %v2542
      %v2544 = vpop.f32.mrb[0].mxu0
      %v2545 = vadd.f32 0.0, %v2544
      %v2546 = vpop.f32.mrb[0].mxu0
      %v2547 = vadd.f32 0.0, %v2546
      %v2548 = vpop.f32.mrb[0].mxu0
      %v2549 = vadd.f32 0.0, %v2548
      %2550 = vdwg.mxu0
      %2551 = vmatprep.subr.bf16.mxu0 %v2457
      %2552 = vmatpush1.bf16.msra.mxu0 %v2454
      %2553 = vmatprep.subr.bf16.mxu0 0
      %2554 = vmatpush1.bf16.msra.mxu0 0
      %2555 = vmatprep.subr.bf16.mxu0 0
      %2556 = vmatpush1.bf16.msra.mxu0 0
      %2557 = vmatprep.subr.bf16.mxu0 0
      %2558 = vmatpush1.bf16.msra.mxu0 0
      %2559 = vmatprep.subr.bf16.mxu0 0
      %2560 = vmatpush1.bf16.msra.mxu0 0
      %2561 = vmatprep.subr.bf16.mxu0 0
      %2562 = vmatpush1.bf16.msra.mxu0 0
      %2563 = vmatprep.subr.bf16.mxu0 0
      %2564 = vmatpush1.bf16.msra.mxu0 0
      %2565 = vmatprep.subr.bf16.mxu0 0
      %2566 = vmatpush1.bf16.msra.mxu0 0
      %2567 = vmatprep.subr.bf16.mxu0 0
      %2568 = vmatpush1.bf16.msra.mxu0 0
      %2569 = vmatprep.subr.bf16.mxu0 0
      %2570 = vmatpush1.bf16.msra.mxu0 0
      %2571 = vmatprep.subr.bf16.mxu0 0
      %2572 = vmatpush1.bf16.msra.mxu0 0
      %2573 = vmatprep.subr.bf16.mxu0 0
      %2574 = vmatpush1.bf16.msra.mxu0 0
      %2575 = vmatprep.subr.bf16.mxu0 0
      %2576 = vmatpush1.bf16.msra.mxu0 0
      %2577 = vmatprep.subr.bf16.mxu0 0
      %2578 = vmatpush1.bf16.msra.mxu0 0
      %2579 = vmatprep.subr.bf16.mxu0 0
      %2580 = vmatpush1.bf16.msra.mxu0 0
      %2581 = vmatprep.subr.bf16.mxu0 0
      %2582 = vmatpush1.bf16.msra.mxu0 0
      %2583 = vmatprep.mubr.bf16.mxu0 0
      %2584 = vmatmul.mubr.bf16.gmra.mrb[0].mxu0 %v2439
      %v2585 = vpop.f32.mrb[0].mxu0
      %v2586 = vadd.f32 0.0, %v2585
      %v2587 = vpop.f32.mrb[0].mxu0
      %v2588 = vadd.f32 0.0, %v2587
      %v2589 = vpop.f32.mrb[0].mxu0
      %v2590 = vadd.f32 0.0, %v2589
      %v2591 = vpop.f32.mrb[0].mxu0
      %v2592 = vadd.f32 0.0, %v2591
      %2593 = vdwg.mxu0
      %2594 = vmatprep.subr.bf16.mxu0 %v2463
      %2595 = vmatpush1.bf16.msra.mxu0 %v2460
      %2596 = vmatprep.subr.bf16.mxu0 0
      %2597 = vmatpush1.bf16.msra.mxu0 0
      %2598 = vmatprep.subr.bf16.mxu0 0
      %2599 = vmatpush1.bf16.msra.mxu0 0
      %2600 = vmatprep.subr.bf16.mxu0 0
      %2601 = vmatpush1.bf16.msra.mxu0 0
      %2602 = vmatprep.subr.bf16.mxu0 0
      %2603 = vmatpush1.bf16.msra.mxu0 0
      %2604 = vmatprep.subr.bf16.mxu0 0
      %2605 = vmatpush1.bf16.msra.mxu0 0
      %2606 = vmatprep.subr.bf16.mxu0 0
      %2607 = vmatpush1.bf16.msra.mxu0 0
      %2608 = vmatprep.subr.bf16.mxu0 0
      %2609 = vmatpush1.bf16.msra.mxu0 0
      %2610 = vmatprep.subr.bf16.mxu0 0
      %2611 = vmatpush1.bf16.msra.mxu0 0
      %2612 = vmatprep.subr.bf16.mxu0 0
      %2613 = vmatpush1.bf16.msra.mxu0 0
      %2614 = vmatprep.subr.bf16.mxu0 0
      %2615 = vmatpush1.bf16.msra.mxu0 0
      %2616 = vmatprep.subr.bf16.mxu0 0
      %2617 = vmatpush1.bf16.msra.mxu0 0
      %2618 = vmatprep.subr.bf16.mxu0 0
      %2619 = vmatpush1.bf16.msra.mxu0 0
      %2620 = vmatprep.subr.bf16.mxu0 0
      %2621 = vmatpush1.bf16.msra.mxu0 0
      %2622 = vmatprep.subr.bf16.mxu0 0
      %2623 = vmatpush1.bf16.msra.mxu0 0
      %2624 = vmatprep.subr.bf16.mxu0 0
      %2625 = vmatpush1.bf16.msra.mxu0 0
      %2626 = vmatprep.mubr.bf16.mxu0 0
      %2627 = vmatmul.mubr.bf16.gmra.mrb[0].mxu0 %v2439
      %v2628 = vpop.f32.mrb[0].mxu0
      %v2629 = vadd.f32 0.0, %v2628
      %v2630 = vpop.f32.mrb[0].mxu0
      %v2631 = vadd.f32 0.0, %v2630
      %v2632 = vpop.f32.mrb[0].mxu0
      %v2633 = vadd.f32 0.0, %v2632
      %v2634 = vpop.f32.mrb[0].mxu0
      %v2635 = vadd.f32 0.0, %v2634
      %2636 = vdwg.mxu0
      %v2637 = vadd.f32 %v2387, %v2500
      %v2638 = vadd.f32 %v2388, %v2502
      %v2639 = vadd.f32 %v2389, %v2543
      %v2640 = vadd.f32 %v2390, %v2545
      %v2641 = vadd.f32 %v2391, %v2586
      %v2642 = vadd.f32 %v2392, %v2588
      %v2643 = vadd.f32 %v2393, %v2629
      %v2644 = vadd.f32 %v2394, %v2631
      %v2645 = vadd.f32 %v2395, %v2504
      %v2646 = vadd.f32 %v2396, %v2506
      %v2647 = vadd.f32 %v2397, %v2547
      %v2648 = vadd.f32 %v2398, %v2549
      %v2649 = vadd.f32 %v2399, %v2590
      %v2650 = vadd.f32 %v2400, %v2592
      %v2651 = vadd.f32 %v2401, %v2633
      %v2652 = vadd.f32 %v2402, %v2635
      %2653 = vrot.lane.b32.xlu0 %v909, 66
      %v2654 = vpop.permute.xlu0 %2653
      %2655 = vrot.lane.b32.xlu0 %v910, 66
      %v2656 = vpop.permute.xlu0 %2655
      %2657 = vrot.lane.b32.xlu0 %v911, 66
      %v2658 = vpop.permute.xlu0 %2657
      %2659 = vrot.lane.b32.xlu0 %v912, 66
      %v2660 = vpop.permute.xlu0 %2659
      %v2661 = vrot.slane %v2654, 4
      %v2662 = vrot.slane %v2656, 4
      %v2663 = vrot.slane %v2658, 4
      %v2664 = vrot.slane %v2660, 4
      %vm2665 = vcmask 539648
      %v2666 = vsel %vm2665, %v2661, %v2654
      %v2667 = vsel %vm927, %v2661, %v2662
      %v2668 = vsel %vm2665, %v2667, %v2656
      %v2669 = vsel %vm927, %v2662, %v2663
      %v2670 = vsel %vm2665, %v2669, %v2658
      %v2671 = vsel %vm927, %v2663, %v2664
      %v2672 = vsel %vm2665, %v2671, %v2660
      %v2678 = vmul.bf16 %v1217, %v2666
      %v2679 = vmul.bf16 %v1218, %v2668
      %v2680 = vmul.bf16 %v1219, %v2670
      %v2681 = vmul.bf16 %v1220, %v2672
      %v2682 = vmul.bf16 %v1221, %v2664
      %s2683 = scalar_lea.vmem %s1, 64
      %v2684 = vld [vmem:[%s2683] sm:$0xf]
      %v2685 = vld [vmem:[%s2683 + $0x4] sm:$0x3]
      %v2688 = vunpack.c.l.b16 %v2684
      %v2689 = vunpack.c.l.b16 %v2685
      %v2690 = vpack.c.b16 %v2689, %v2688
      %v2696 = vunpack.c.l.b16 %v2678
      %v2697 = vunpack.c.h.b16 %v2678
      %v2698 = vunpack.c.l.b16 %v2679
      %v2699 = vunpack.c.h.b16 %v2679
      %v2700 = vunpack.c.l.b16 %v2680
      %v2701 = vunpack.c.h.b16 %v2680
      %v2702 = vunpack.c.l.b16 %v2681
      %v2703 = vunpack.c.h.b16 %v2681
      %v2704 = vunpack.c.l.b16 %v2682
      %v2705 = vpack.c.b16 %v2696, %v2696
      %v2706 = vpack.c.b16 %v2697, %v2697
      %v2707 = vpack.c.b16 %v2698, %v2698
      %v2708 = vpack.c.b16 %v2699, %v2699
      %v2709 = vpack.c.b16 %v2700, %v2700
      %v2710 = vpack.c.b16 %v2701, %v2701
      %v2711 = vpack.c.b16 %v2702, %v2702
      %v2712 = vpack.c.b16 %v2703, %v2703
      %v2713 = vpack.c.b16 %v2704, %v2704
      %2714 = vrot.lane.b32.xlu0 %v2705, 62
      %v2715 = vpop.permute.xlu0 %2714
      %2716 = vrot.lane.b32.xlu0 %v2706, 62
      %v2717 = vpop.permute.xlu0 %2716
      %2718 = vrot.lane.b32.xlu0 %v2707, 62
      %v2719 = vpop.permute.xlu0 %2718
      %2720 = vrot.lane.b32.xlu0 %v2708, 62
      %v2721 = vpop.permute.xlu0 %2720
      %2722 = vrot.lane.b32.xlu0 %v2709, 62
      %v2723 = vpop.permute.xlu0 %2722
      %2724 = vrot.lane.b32.xlu0 %v2710, 62
      %v2725 = vpop.permute.xlu0 %2724
      %2726 = vrot.lane.b32.xlu0 %v2711, 62
      %v2727 = vpop.permute.xlu0 %2726
      %2728 = vrot.lane.b32.xlu0 %v2712, 62
      %v2729 = vpop.permute.xlu0 %2728
      %2730 = vrot.lane.b32.xlu0 %v2713, 62
      %v2731 = vpop.permute.xlu0 %2730
      %vm2732 = vcmask 506880
      %v2733 = vsel %vm2732, %v2715, %v2717
      %v2734 = vsel %vm2732, %v2717, %v2719
      %v2735 = vsel %vm2732, %v2719, %v2721
      %v2736 = vsel %vm2732, %v2721, %v2723
      %v2737 = vsel %vm2732, %v2723, %v2725
      %v2738 = vsel %vm2732, %v2725, %v2727
      %v2739 = vsel %vm2732, %v2727, %v2729
      %v2740 = vsel %vm2732, %v2729, %v2731
      %v2742 = vsel %vm412, %v2690, 0
      %v2745 = vsel %vm416, %v2733, 0
      %v2748 = vsel %vm416, %v2734, 0
      %v2751 = vsel %vm416, %v2735, 0
      %v2754 = vsel %vm416, %v2736, 0
      %v2757 = vsel %vm416, %v2737, 0
      %v2760 = vsel %vm416, %v2738, 0
      %v2763 = vsel %vm416, %v2739, 0
      %v2766 = vsel %vm416, %v2740, 0
      %2768 = vmatprep.subr.bf16.mxu0 %v2748
      %2769 = vmatpush1.bf16.msra.mxu0 %v2745
      %2770 = vmatprep.subr.bf16.mxu0 0
      %2771 = vmatpush1.bf16.msra.mxu0 0
      %2772 = vmatprep.subr.bf16.mxu0 0
      %2773 = vmatpush1.bf16.msra.mxu0 0
      %2774 = vmatprep.subr.bf16.mxu0 0
      %2775 = vmatpush1.bf16.msra.mxu0 0
      %2776 = vmatprep.subr.bf16.mxu0 0
      %2777 = vmatpush1.bf16.msra.mxu0 0
      %2778 = vmatprep.subr.bf16.mxu0 0
      %2779 = vmatpush1.bf16.msra.mxu0 0
      %2780 = vmatprep.subr.bf16.mxu0 0
      %2781 = vmatpush1.bf16.msra.mxu0 0
      %2782 = vmatprep.subr.bf16.mxu0 0
      %2783 = vmatpush1.bf16.msra.mxu0 0
      %2784 = vmatprep.subr.bf16.mxu0 0
      %2785 = vmatpush1.bf16.msra.mxu0 0
      %2786 = vmatprep.subr.bf16.mxu0 0
      %2787 = vmatpush1.bf16.msra.mxu0 0
      %2788 = vmatprep.subr.bf16.mxu0 0
      %2789 = vmatpush1.bf16.msra.mxu0 0
      %2790 = vmatprep.subr.bf16.mxu0 0
      %2791 = vmatpush1.bf16.msra.mxu0 0
      %2792 = vmatprep.subr.bf16.mxu0 0
      %2793 = vmatpush1.bf16.msra.mxu0 0
      %2794 = vmatprep.subr.bf16.mxu0 0
      %2795 = vmatpush1.bf16.msra.mxu0 0
      %2796 = vmatprep.subr.bf16.mxu0 0
      %2797 = vmatpush1.bf16.msra.mxu0 0
      %2798 = vmatprep.subr.bf16.mxu0 0
      %2799 = vmatpush1.bf16.msra.mxu0 0
      %2800 = vmatprep.mubr.bf16.mxu0 0
      %2801 = vmatmul.mubr.bf16.gmra.mrb[0].mxu0 %v2742
      %v2802 = vpop.f32.mrb[0].mxu0
      %v2803 = vadd.f32 0.0, %v2802
      %v2804 = vpop.f32.mrb[0].mxu0
      %v2805 = vadd.f32 0.0, %v2804
      %v2806 = vpop.f32.mrb[0].mxu0
      %v2807 = vadd.f32 0.0, %v2806
      %v2808 = vpop.f32.mrb[0].mxu0
      %v2809 = vadd.f32 0.0, %v2808
      %2810 = vdwg.mxu0
      %2811 = vmatprep.subr.bf16.mxu0 %v2754
      %2812 = vmatpush1.bf16.msra.mxu0 %v2751
      %2813 = vmatprep.subr.bf16.mxu0 0
      %2814 = vmatpush1.bf16.msra.mxu0 0
      %2815 = vmatprep.subr.bf16.mxu0 0
      %2816 = vmatpush1.bf16.msra.mxu0 0
      %2817 = vmatprep.subr.bf16.mxu0 0
      %2818 = vmatpush1.bf16.msra.mxu0 0
      %2819 = vmatprep.subr.bf16.mxu0 0
      %2820 = vmatpush1.bf16.msra.mxu0 0
      %2821 = vmatprep.subr.bf16.mxu0 0
      %2822 = vmatpush1.bf16.msra.mxu0 0
      %2823 = vmatprep.subr.bf16.mxu0 0
      %2824 = vmatpush1.bf16.msra.mxu0 0
      %2825 = vmatprep.subr.bf16.mxu0 0
      %2826 = vmatpush1.bf16.msra.mxu0 0
      %2827 = vmatprep.subr.bf16.mxu0 0
      %2828 = vmatpush1.bf16.msra.mxu0 0
      %2829 = vmatprep.subr.bf16.mxu0 0
      %2830 = vmatpush1.bf16.msra.mxu0 0
      %2831 = vmatprep.subr.bf16.mxu0 0
      %2832 = vmatpush1.bf16.msra.mxu0 0
      %2833 = vmatprep.subr.bf16.mxu0 0
      %2834 = vmatpush1.bf16.msra.mxu0 0
      %2835 = vmatprep.subr.bf16.mxu0 0
      %2836 = vmatpush1.bf16.msra.mxu0 0
      %2837 = vmatprep.subr.bf16.mxu0 0
      %2838 = vmatpush1.bf16.msra.mxu0 0
      %2839 = vmatprep.subr.bf16.mxu0 0
      %2840 = vmatpush1.bf16.msra.mxu0 0
      %2841 = vmatprep.subr.bf16.mxu0 0
      %2842 = vmatpush1.bf16.msra.mxu0 0
      %2843 = vmatprep.mubr.bf16.mxu0 0
      %2844 = vmatmul.mubr.bf16.gmra.mrb[0].mxu0 %v2742
      %v2845 = vpop.f32.mrb[0].mxu0
      %v2846 = vadd.f32 0.0, %v2845
      %v2847 = vpop.f32.mrb[0].mxu0
      %v2848 = vadd.f32 0.0, %v2847
      %v2849 = vpop.f32.mrb[0].mxu0
      %v2850 = vadd.f32 0.0, %v2849
      %v2851 = vpop.f32.mrb[0].mxu0
      %v2852 = vadd.f32 0.0, %v2851
      %2853 = vdwg.mxu0
      %2854 = vmatprep.subr.bf16.mxu0 %v2760
      %2855 = vmatpush1.bf16.msra.mxu0 %v2757
      %2856 = vmatprep.subr.bf16.mxu0 0
      %2857 = vmatpush1.bf16.msra.mxu0 0
      %2858 = vmatprep.subr.bf16.mxu0 0
      %2859 = vmatpush1.bf16.msra.mxu0 0
      %2860 = vmatprep.subr.bf16.mxu0 0
      %2861 = vmatpush1.bf16.msra.mxu0 0
      %2862 = vmatprep.subr.bf16.mxu0 0
      %2863 = vmatpush1.bf16.msra.mxu0 0
      %2864 = vmatprep.subr.bf16.mxu0 0
      %2865 = vmatpush1.bf16.msra.mxu0 0
      %2866 = vmatprep.subr.bf16.mxu0 0
      %2867 = vmatpush1.bf16.msra.mxu0 0
      %2868 = vmatprep.subr.bf16.mxu0 0
      %2869 = vmatpush1.bf16.msra.mxu0 0
      %2870 = vmatprep.subr.bf16.mxu0 0
      %2871 = vmatpush1.bf16.msra.mxu0 0
      %2872 = vmatprep.subr.bf16.mxu0 0
      %2873 = vmatpush1.bf16.msra.mxu0 0
      %2874 = vmatprep.subr.bf16.mxu0 0
      %2875 = vmatpush1.bf16.msra.mxu0 0
      %2876 = vmatprep.subr.bf16.mxu0 0
      %2877 = vmatpush1.bf16.msra.mxu0 0
      %2878 = vmatprep.subr.bf16.mxu0 0
      %2879 = vmatpush1.bf16.msra.mxu0 0
      %2880 = vmatprep.subr.bf16.mxu0 0
      %2881 = vmatpush1.bf16.msra.mxu0 0
      %2882 = vmatprep.subr.bf16.mxu0 0
      %2883 = vmatpush1.bf16.msra.mxu0 0
      %2884 = vmatprep.subr.bf16.mxu0 0
      %2885 = vmatpush1.bf16.msra.mxu0 0
      %2886 = vmatprep.mubr.bf16.mxu0 0
      %2887 = vmatmul.mubr.bf16.gmra.mrb[0].mxu0 %v2742
      %v2888 = vpop.f32.mrb[0].mxu0
      %v2889 = vadd.f32 0.0, %v2888
      %v2890 = vpop.f32.mrb[0].mxu0
      %v2891 = vadd.f32 0.0, %v2890
      %v2892 = vpop.f32.mrb[0].mxu0
      %v2893 = vadd.f32 0.0, %v2892
      %v2894 = vpop.f32.mrb[0].mxu0
      %v2895 = vadd.f32 0.0, %v2894
      %2896 = vdwg.mxu0
      %2897 = vmatprep.subr.bf16.mxu0 %v2766
      %2898 = vmatpush1.bf16.msra.mxu0 %v2763
      %2899 = vmatprep.subr.bf16.mxu0 0
      %2900 = vmatpush1.bf16.msra.mxu0 0
      %2901 = vmatprep.subr.bf16.mxu0 0
      %2902 = vmatpush1.bf16.msra.mxu0 0
      %2903 = vmatprep.subr.bf16.mxu0 0
      %2904 = vmatpush1.bf16.msra.mxu0 0
      %2905 = vmatprep.subr.bf16.mxu0 0
      %2906 = vmatpush1.bf16.msra.mxu0 0
      %2907 = vmatprep.subr.bf16.mxu0 0
      %2908 = vmatpush1.bf16.msra.mxu0 0
      %2909 = vmatprep.subr.bf16.mxu0 0
      %2910 = vmatpush1.bf16.msra.mxu0 0
      %2911 = vmatprep.subr.bf16.mxu0 0
      %2912 = vmatpush1.bf16.msra.mxu0 0
      %2913 = vmatprep.subr.bf16.mxu0 0
      %2914 = vmatpush1.bf16.msra.mxu0 0
      %2915 = vmatprep.subr.bf16.mxu0 0
      %2916 = vmatpush1.bf16.msra.mxu0 0
      %2917 = vmatprep.subr.bf16.mxu0 0
      %2918 = vmatpush1.bf16.msra.mxu0 0
      %2919 = vmatprep.subr.bf16.mxu0 0
      %2920 = vmatpush1.bf16.msra.mxu0 0
      %2921 = vmatprep.subr.bf16.mxu0 0
      %2922 = vmatpush1.bf16.msra.mxu0 0
      %2923 = vmatprep.subr.bf16.mxu0 0
      %2924 = vmatpush1.bf16.msra.mxu0 0
      %2925 = vmatprep.subr.bf16.mxu0 0
      %2926 = vmatpush1.bf16.msra.mxu0 0
      %2927 = vmatprep.subr.bf16.mxu0 0
      %2928 = vmatpush1.bf16.msra.mxu0 0
      %2929 = vmatprep.mubr.bf16.mxu0 0
      %2930 = vmatmul.mubr.bf16.gmra.mrb[0].mxu0 %v2742
      %v2931 = vpop.f32.mrb[0].mxu0
      %v2932 = vadd.f32 0.0, %v2931
      %v2933 = vpop.f32.mrb[0].mxu0
      %v2934 = vadd.f32 0.0, %v2933
      %v2935 = vpop.f32.mrb[0].mxu0
      %v2936 = vadd.f32 0.0, %v2935
      %v2937 = vpop.f32.mrb[0].mxu0
      %v2938 = vadd.f32 0.0, %v2937
      %2939 = vdwg.mxu0
      %v2940 = vadd.f32 %v2637, %v2803
      %v2941 = vadd.f32 %v2638, %v2805
      %v2942 = vadd.f32 %v2639, %v2846
      %v2943 = vadd.f32 %v2640, %v2848
      %v2944 = vadd.f32 %v2641, %v2889
      %v2945 = vadd.f32 %v2642, %v2891
      %v2946 = vadd.f32 %v2643, %v2932
      %v2947 = vadd.f32 %v2644, %v2934
      %v2948 = vadd.f32 %v2645, %v2807
      %v2949 = vadd.f32 %v2646, %v2809
      %v2950 = vadd.f32 %v2647, %v2850
      %v2951 = vadd.f32 %v2648, %v2852
      %v2952 = vadd.f32 %v2649, %v2893
      %v2953 = vadd.f32 %v2650, %v2895
      %v2954 = vadd.f32 %v2651, %v2936
      %v2955 = vadd.f32 %v2652, %v2938
      %v2956 = vadd.f32 %v2940, %v2941
      %v2957 = vadd.f32 %v2956, %v2942
      %v2958 = vadd.f32 %v2957, %v2943
      %v2959 = vadd.f32 %v2958, %v2944
      %v2960 = vadd.f32 %v2959, %v2945
      %v2961 = vadd.f32 %v2960, %v2946
      %v2962 = vadd.f32 %v2961, %v2947
      %2963 = vadd.xlane.f32.xlu0 %v2962
      %v2964 = vpop.xlane.xlu0 %2963
      %vm2965 = vcmask 1042432
      %v2966 = vsel %vm2965, %v2948, 0.0
      %v2967 = vsel %vm2965, %v2949, 0.0
      %v2968 = vadd.f32 %v2966, %v2967
      %v2969 = vsel %vm2965, %v2950, 0.0
      %v2970 = vadd.f32 %v2968, %v2969
      %v2971 = vsel %vm2965, %v2951, 0.0
      %v2972 = vadd.f32 %v2970, %v2971
      %v2973 = vsel %vm2965, %v2952, 0.0
      %v2974 = vadd.f32 %v2972, %v2973
      %v2975 = vsel %vm2965, %v2953, 0.0
      %v2976 = vadd.f32 %v2974, %v2975
      %v2977 = vsel %vm2965, %v2954, 0.0
      %v2978 = vadd.f32 %v2976, %v2977
      %v2979 = vsel %vm2965, %v2955, 0.0
      %v2980 = vadd.f32 %v2978, %v2979
      %2981 = vadd.xlane.f32.xlu0 %v2980
      %v2982 = vpop.xlane.xlu0 %2981
      %vm2983 = vcmask 7168
      %2984 = vst.msk [vmem:[%s205] sm:$0xff] %vm2983, %v2964
      %vm2985 = vcmask 2048
      %2986 = vst.msk [vmem:[%s205 + $0x8] sm:$0x7] %vm2985, %v2982
      %v2987 = vmul.f32 %v2940, %v2940
      %v2988 = vmul.f32 %v2941, %v2941
      %v2989 = vmul.f32 %v2942, %v2942
      %v2990 = vmul.f32 %v2943, %v2943
      %v2991 = vmul.f32 %v2944, %v2944
      %v2992 = vmul.f32 %v2945, %v2945
      %v2993 = vmul.f32 %v2946, %v2946
      %v2994 = vmul.f32 %v2947, %v2947
      %v2995 = vmul.f32 %v2948, %v2948
      %v2996 = vmul.f32 %v2949, %v2949
      %v2997 = vmul.f32 %v2950, %v2950
      %v2998 = vmul.f32 %v2951, %v2951
      %v2999 = vmul.f32 %v2952, %v2952
      %v3000 = vmul.f32 %v2953, %v2953
      %v3001 = vmul.f32 %v2954, %v2954
      %v3002 = vmul.f32 %v2955, %v2955
      %v3003 = vadd.f32 %v2987, %v2988
      %v3004 = vadd.f32 %v3003, %v2989
      %v3005 = vadd.f32 %v3004, %v2990
      %v3006 = vadd.f32 %v3005, %v2991
      %v3007 = vadd.f32 %v3006, %v2992
      %v3008 = vadd.f32 %v3007, %v2993
      %v3009 = vadd.f32 %v3008, %v2994
      %3010 = vadd.xlane.f32.xlu0 %v3009
      %v3011 = vpop.xlane.xlu0 %3010
      %v3012 = vsel %vm2965, %v2995, 0.0
      %v3013 = vsel %vm2965, %v2996, 0.0
      %v3014 = vadd.f32 %v3012, %v3013
      %v3015 = vsel %vm2965, %v2997, 0.0
      %v3016 = vadd.f32 %v3014, %v3015
      %v3017 = vsel %vm2965, %v2998, 0.0
      %v3018 = vadd.f32 %v3016, %v3017
      %v3019 = vsel %vm2965, %v2999, 0.0
      %v3020 = vadd.f32 %v3018, %v3019
      %v3021 = vsel %vm2965, %v3000, 0.0
      %v3022 = vadd.f32 %v3020, %v3021
      %v3023 = vsel %vm2965, %v3001, 0.0
      %v3024 = vadd.f32 %v3022, %v3023
      %v3025 = vsel %vm2965, %v3002, 0.0
      %v3026 = vadd.f32 %v3024, %v3025
      %3027 = vadd.xlane.f32.xlu0 %v3026
      %v3028 = vpop.xlane.xlu0 %3027
      %3029 = vst.msk [vmem:[%s210] sm:$0xff] %vm2983, %v3011
      %3030 = vst.msk [vmem:[%s210 + $0x8] sm:$0x7] %vm2985, %v3028
      %p3031 = scmp.lt.s32.totalorder %s16, 1
      %s3032 = scalar_select %p3031, %s16, 1
      %s3033 = smul.addr %s3032, 2
      %s3034 = smul.addr %s3033, 8
      %s3035 = scalar_lea.vmem %s3, %s3034
      %p3036 = scmp.lt.s32.totalorder %s16, 1
      %s3037 = scalar_select %p3036, %s16, 1
      %s3038 = smul.addr %s3037, 2
      %s3039 = smul.addr %s3038, 8
      %s3040 = scalar_lea.vmem %s4, %s3039
      // Predicated region
      $region33: #{conv2dt_forward.2} parent=31 // pred_check
        %p3041 = pneg %p102
      $region34: #{conv2dt_forward.2} parent=31 // pred_check_branch
        %3043 = sbr.rel (%p3041) target = $region36
      $region35: #{conv2dt_forward.2} parent=31 // pred_region
        _
      $region36: #{conv2dt_forward.2} parent=31 // pred_fallthru
        _
      // Predicated region
      $region37: #{conv2dt_forward.2} parent=31 // pred_check
        %p3044 = pneg %p128
      $region38: #{conv2dt_forward.2} parent=31 // pred_check_branch
        %3046 = sbr.rel (%p3044) target = $region40
      $region39: #{conv2dt_forward.2} parent=31 // pred_region
        _
      $region40: #{conv2dt_forward.2} parent=31 // pred_fallthru
        _
    $region32: #{conv2dt_forward.2} parent=5 // pred_fallthru
      _
    %p3047 = scmp.le.s32.totalorder 2, %s11
    // Predicated region
    $region41: #{conv2dt_forward.2} parent=5 // pred_check
      %p3048 = pneg %p3047
    $region42: #{conv2dt_forward.2} parent=5 // pred_check_branch
      %3050 = sbr.rel (%p3048) target = $region44
    $region43: #{conv2dt_forward.2} parent=5 // pred_region
      %s3051 = ssub.s32 %s11, 2
      // Predicated region
      $region45: #{conv2dt_forward.2} parent=43 // pred_check
        %p3052 = pneg %p108
      $region46: #{conv2dt_forward.2} parent=43 // pred_check_branch
        %3054 = sbr.rel (%p3052) target = $region48
      $region47: #{conv2dt_forward.2} parent=43 // pred_region
        %p3055 = scmp.lt.s32.totalorder %s17, 1
        %s3056 = scalar_select %p3055, %s17, 1
        %s3057 = smul.addr %s3056, 2
        %s3058 = smul.addr %s3057, 8
        %s3059 = scalar_lea.vmem %s3, %s3058
      $region48: #{conv2dt_forward.2} parent=43 // pred_fallthru
        _
      // Predicated region
      $region49: #{conv2dt_forward.2} parent=43 // pred_check
        %p3060 = pneg %p134
      $region50: #{conv2dt_forward.2} parent=43 // pred_check_branch
        %3062 = sbr.rel (%p3060) target = $region52
      $region51: #{conv2dt_forward.2} parent=43 // pred_region
        %p3063 = scmp.lt.s32.totalorder %s17, 1
        %s3064 = scalar_select %p3063, %s17, 1
        %s3065 = smul.addr %s3064, 2
        %s3066 = smul.addr %s3065, 8
        %s3067 = scalar_lea.vmem %s4, %s3066
      $region52: #{conv2dt_forward.2} parent=43 // pred_fallthru
        _
    $region44: #{conv2dt_forward.2} parent=5 // pred_fallthru
      _
  $region6: #{conv2dt_forward.2} parent=0 // loop_footer
    %s15 = sadd.s32 1, %s11
  $region7: #{conv2dt_forward.2} parent=0 // loop_footer_branch
    %10 = sbr.rel target = $region3
  $region8: #{conv2dt_forward.2} parent=0 // loop_exit
    _

// kernel: conv2dt_forward.3
$region0: #{conv2dt_forward.3}
  #allocation0 [shape = 'u32[]', space=smem, size = 0x4, offset = 0x4, fixed_abs, tag = 'smem constant byte address 0x4 - core index']
  #allocation1 [shape = 'u32[144,128]{1,0:T(1,128)}', space=vmem, size = 0x12000, scoped, tag = 'internal scratch']
  %s0 = inlined_call_operand.vmem [shape: bf16[2,8,1090], index: 0, kind: input, shape index: {}]
  %s1 = inlined_call_operand.vmem [shape: bf16[9,11,8], index: 1, kind: input, shape index: {}]
  %s2 = inlined_call_operand.vmem [shape: bf16[2,1024], index: 2, kind: input, shape index: {}]
  %s3 = inlined_call_operand.vmem [shape: f32[11,1], index: 3, kind: input, shape index: {}]
  %s4 = inlined_call_operand.vmem [shape: f32[11,1], index: 4, kind: input, shape index: {}]
  %s5 = inlined_call_operand.vmem [shape: f32[2,11,1024], index: 5, kind: output, shape index: {}]
  %s6 = sld [smem:[#allocation0]]
  $region53: #{conv2dt_forward.3} parent=0
    _
  %s8 = ssub.s32 1, %s6
  %s9 = scalar_select 0, %s8, %s6
  loop: start=0, step=1, limit=4
  $region2: #{conv2dt_forward.3} parent=0 // loop_pre_header
    _
  $region3: #{conv2dt_forward.3} parent=0 // loop_header
    %s11 = sphi 0, %s15
    %p12 = scmp.ge.s32.totalorder %s11, 4
    %s21 = sphi 0, %s23
    %s24 = sphi 0, %s21
    %s25 = sphi 0, %s24
    %s41 = sphi 0, %s25
    %s45 = sphi 0, %s45
    %s47 = sphi 0, %s45
    %s48 = sphi 0, %s47
    %s62 = sphi 0, %s48
    %s66 = sphi 0, %s66
    %s68 = sphi 0, %s66
    %s69 = sphi 0, %s68
    %s83 = sphi 0, %s69
    %s87 = sphi 0, %s87
    %s89 = sphi 0, %s87
    %s90 = sphi 0, %s89
    %s104 = sphi 0, %s90
    %s108 = sphi 0, %s108
    %s110 = sphi 0, %s108
    %s111 = sphi 0, %s110
    %s125 = sphi 0, %s111
    %s131 = sphi 0, %s133
    %s134 = sphi 0, %s131
    %s135 = sphi 0, %s134
    %s151 = sphi 0, %s135
  $region4: #{conv2dt_forward.3} parent=0 // loop_header_branch
    %14 = sbr.rel (%p12) target = $region8
  $region5: #{conv2dt_forward.3} parent=0 // loop_body
    %s16 = ssub.s32 %s11, 1
    %s17 = ssub.s32 %s11, 2
    %s18 = sadd.s32 %s11, 1
    %s19 = ssub.s32 %s11, %s18
    %p20 = scmp.eq.s32.totalorder %s19, 0
    %s22 = sadd.s32 %s21, 1
    %s23 = scalar_select %p20, %s21, %s22
    %p26 = pneg %p20
    %p27 = scmp.eq.s32.totalorder %s11, 1
    %p28 = por %p26, %p27
    %p29 = scmp.ne.s32.totalorder %s21, %s24
    %p30 = scmp.eq.s32.totalorder %s11, 0
    %p31 = por %p29, %p30
    %p32 = scmp.ne.s32.totalorder %s21, %s24
    %p33 = scmp.eq.s32.totalorder %s16, 1
    %p34 = por %p32, %p33
    %p35 = scmp.ne.s32.totalorder %s24, %s25
    %p36 = scmp.eq.s32.totalorder %s16, 0
    %p37 = por %p35, %p36
    %p38 = scmp.ne.s32.totalorder %s24, %s25
    %p39 = scmp.eq.s32.totalorder %s17, 1
    %p40 = por %p38, %p39
    %p42 = scmp.ne.s32.totalorder %s25, %s41
    %p43 = scmp.eq.s32.totalorder %s17, 0
    %p44 = por %p42, %p43
    %s46 = sadd.s32 %s45, 1
    %p49 = scmp.eq.s32.totalorder %s11, 1
    %p50 = scmp.ne.s32.totalorder %s45, %s47
    %p51 = scmp.eq.s32.totalorder %s11, 0
    %p52 = por %p50, %p51
    %p53 = scmp.ne.s32.totalorder %s45, %s47
    %p54 = scmp.eq.s32.totalorder %s16, 1
    %p55 = por %p53, %p54
    %p56 = scmp.ne.s32.totalorder %s47, %s48
    %p57 = scmp.eq.s32.totalorder %s16, 0
    %p58 = por %p56, %p57
    %p59 = scmp.ne.s32.totalorder %s47, %s48
    %p60 = scmp.eq.s32.totalorder %s17, 1
    %p61 = por %p59, %p60
    %p63 = scmp.ne.s32.totalorder %s48, %s62
    %p64 = scmp.eq.s32.totalorder %s17, 0
    %p65 = por %p63, %p64
    %s67 = sadd.s32 %s66, 1
    %p70 = scmp.eq.s32.totalorder %s11, 1
    %p71 = scmp.ne.s32.totalorder %s66, %s68
    %p72 = scmp.eq.s32.totalorder %s11, 0
    %p73 = por %p71, %p72
    %p74 = scmp.ne.s32.totalorder %s66, %s68
    %p75 = scmp.eq.s32.totalorder %s16, 1
    %p76 = por %p74, %p75
    %p77 = scmp.ne.s32.totalorder %s68, %s69
    %p78 = scmp.eq.s32.totalorder %s16, 0
    %p79 = por %p77, %p78
    %p80 = scmp.ne.s32.totalorder %s68, %s69
    %p81 = scmp.eq.s32.totalorder %s17, 1
    %p82 = por %p80, %p81
    %p84 = scmp.ne.s32.totalorder %s69, %s83
    %p85 = scmp.eq.s32.totalorder %s17, 0
    %p86 = por %p84, %p85
    %s88 = sadd.s32 %s87, 1
    %p91 = scmp.eq.s32.totalorder %s11, 1
    %p92 = scmp.ne.s32.totalorder %s87, %s89
    %p93 = scmp.eq.s32.totalorder %s11, 0
    %p94 = por %p92, %p93
    %p95 = scmp.ne.s32.totalorder %s87, %s89
    %p96 = scmp.eq.s32.totalorder %s16, 1
    %p97 = por %p95, %p96
    %p98 = scmp.ne.s32.totalorder %s89, %s90
    %p99 = scmp.eq.s32.totalorder %s16, 0
    %p100 = por %p98, %p99
    %p101 = scmp.ne.s32.totalorder %s89, %s90
    %p102 = scmp.eq.s32.totalorder %s17, 1
    %p103 = por %p101, %p102
    %p105 = scmp.ne.s32.totalorder %s90, %s104
    %p106 = scmp.eq.s32.totalorder %s17, 0
    %p107 = por %p105, %p106
    %s109 = sadd.s32 %s108, 1
    %p112 = scmp.eq.s32.totalorder %s11, 1
    %p113 = scmp.ne.s32.totalorder %s108, %s110
    %p114 = scmp.eq.s32.totalorder %s11, 0
    %p115 = por %p113, %p114
    %p116 = scmp.ne.s32.totalorder %s108, %s110
    %p117 = scmp.eq.s32.totalorder %s16, 1
    %p118 = por %p116, %p117
    %p119 = scmp.ne.s32.totalorder %s110, %s111
    %p120 = scmp.eq.s32.totalorder %s16, 0
    %p121 = por %p119, %p120
    %p122 = scmp.ne.s32.totalorder %s110, %s111
    %p123 = scmp.eq.s32.totalorder %s17, 1
    %p124 = por %p122, %p123
    %p126 = scmp.ne.s32.totalorder %s111, %s125
    %p127 = scmp.eq.s32.totalorder %s17, 0
    %p128 = por %p126, %p127
    %s129 = ssub.s32 %s11, %s18
    %p130 = scmp.eq.s32.totalorder %s129, 0
    %s132 = sadd.s32 %s131, 1
    %s133 = scalar_select %p130, %s131, %s132
    %p136 = pneg %p130
    %p137 = scmp.eq.s32.totalorder %s11, 1
    %p138 = por %p136, %p137
    %p139 = scmp.ne.s32.totalorder %s131, %s134
    %p140 = scmp.eq.s32.totalorder %s11, 0
    %p141 = por %p139, %p140
    %p142 = scmp.ne.s32.totalorder %s131, %s134
    %p143 = scmp.eq.s32.totalorder %s16, 1
    %p144 = por %p142, %p143
    %p145 = scmp.ne.s32.totalorder %s134, %s135
    %p146 = scmp.eq.s32.totalorder %s16, 0
    %p147 = por %p145, %p146
    %p148 = scmp.ne.s32.totalorder %s134, %s135
    %p149 = scmp.eq.s32.totalorder %s17, 1
    %p150 = por %p148, %p149
    %p152 = scmp.ne.s32.totalorder %s135, %s151
    %p153 = scmp.eq.s32.totalorder %s17, 0
    %p154 = por %p152, %p153
    %p155 = scmp.le.s32.totalorder 1, %s11
    %p156 = scmp.lt.s32.totalorder %s11, 3
    %p157 = pnand %p155, %p156
    %p158 = pneg %p157
    // Predicated region
    $region9: #{conv2dt_forward.3} parent=5 // pred_check
      _
    $region10: #{conv2dt_forward.3} parent=5 // pred_check_branch
      %160 = sbr.rel (%p157) target = $region12
    $region11: #{conv2dt_forward.3} parent=5 // pred_region
      %s161 = ssub.s32 %s11, 1
      // Predicated region
      $region13: #{conv2dt_forward.3} parent=11 // pred_check
        %p162 = pneg %p58
      $region14: #{conv2dt_forward.3} parent=11 // pred_check_branch
        %164 = sbr.rel (%p162) target = $region16
      $region15: #{conv2dt_forward.3} parent=11 // pred_region
        _
      $region16: #{conv2dt_forward.3} parent=11 // pred_fallthru
        _
      // Predicated region
      $region17: #{conv2dt_forward.3} parent=11 // pred_check
        %p165 = pneg %p79
      $region18: #{conv2dt_forward.3} parent=11 // pred_check_branch
        %167 = sbr.rel (%p165) target = $region20
      $region19: #{conv2dt_forward.3} parent=11 // pred_region
        _
      $region20: #{conv2dt_forward.3} parent=11 // pred_fallthru
        _
      // Predicated region
      $region21: #{conv2dt_forward.3} parent=11 // pred_check
        %p168 = pneg %p100
      $region22: #{conv2dt_forward.3} parent=11 // pred_check_branch
        %170 = sbr.rel (%p168) target = $region24
      $region23: #{conv2dt_forward.3} parent=11 // pred_region
        _
      $region24: #{conv2dt_forward.3} parent=11 // pred_fallthru
        _
      // Predicated region
      $region25: #{conv2dt_forward.3} parent=11 // pred_check
        %p171 = pneg %p121
      $region26: #{conv2dt_forward.3} parent=11 // pred_check_branch
        %173 = sbr.rel (%p171) target = $region28
      $region27: #{conv2dt_forward.3} parent=11 // pred_region
        _
      $region28: #{conv2dt_forward.3} parent=11 // pred_fallthru
        _
    $region12: #{conv2dt_forward.3} parent=5 // pred_fallthru
      _
    %p174 = scmp.lt.s32.totalorder %s11, 2
    // Predicated region
    $region29: #{conv2dt_forward.3} parent=5 // pred_check
      %p175 = pneg %p174
    $region30: #{conv2dt_forward.3} parent=5 // pred_check_branch
      %177 = sbr.rel (%p175) target = $region32
    $region31: #{conv2dt_forward.3} parent=5 // pred_region
      // Predicated region
      $region33: #{conv2dt_forward.3} parent=31 // pred_check
        %p178 = pneg %p31
      $region34: #{conv2dt_forward.3} parent=31 // pred_check_branch
        %180 = sbr.rel (%p178) target = $region36
      $region35: #{conv2dt_forward.3} parent=31 // pred_region
        %p181 = scmp.lt.s32.totalorder %s11, 1
        %s182 = scalar_select %p181, %s11, 1
        %s183 = smul.addr %s182, 9
        %s184 = smul.addr %s183, 4
        %s185 = scalar_lea.vmem %s0, %s184
      $region36: #{conv2dt_forward.3} parent=31 // pred_fallthru
        _
    $region32: #{conv2dt_forward.3} parent=5 // pred_fallthru
      _
    %p186 = scmp.le.s32.totalorder 1, %s11
    %p187 = scmp.lt.s32.totalorder %s11, 3
    %p188 = pnand %p186, %p187
    %p189 = pneg %p188
    // Predicated region
    $region37: #{conv2dt_forward.3} parent=5 // pred_check
      _
    $region38: #{conv2dt_forward.3} parent=5 // pred_check_branch
      %191 = sbr.rel (%p188) target = $region40
    $region39: #{conv2dt_forward.3} parent=5 // pred_region
      %s192 = ssub.s32 %s11, 1
      %p193 = scmp.lt.s32.totalorder %s16, 1
      %s194 = scalar_select %p193, %s16, 1
      %s195 = smul.addr %s194, 9
      %s196 = smul.addr %s195, 4
      %s197 = scalar_lea.vmem %s0, %s196
      %p198 = pneg %p37
      %p199 = pneg %p34
      %p200 = pneg %p58
      %p201 = pneg %p55
      %p202 = pneg %p79
      %p203 = pneg %p76
      %p204 = pneg %p100
      %p205 = pneg %p97
      %p206 = pneg %p121
      %p207 = pneg %p118
      %p208 = pneg %p147
      %p209 = pneg %p144
      %p210 = scmp.lt.s32.totalorder %s16, 1
      %s211 = scalar_select %p210, %s16, 1
      %s212 = smul.addr %s211, 16
      %s213 = smul.addr %s212, 8
      %s214 = scalar_lea.vmem %s5, %s213
      %p215 = scmp.lt.s32.totalorder %s16, 1
      %s216 = scalar_select %p215, %s16, 1
      %s217 = smul.addr %s216, 9
      %s218 = smul.addr %s217, 4
      %s219 = scalar_lea.vmem %s0, %s218
      %p220 = scmp.lt.s32.totalorder %s16, 1
      %s221 = scalar_select %p220, %s16, 1
      %s222 = smul.addr %s221, 16
      %s223 = smul.addr %s222, 8
      %s224 = scalar_lea.vmem %s5, %s223
      %v226 = vld [vmem:[%s2] sm:$0xff]
      %v227 = vld [vmem:[%s219] sm:$0xff]
      %v228 = vld [vmem:[%s219 + $0x8] sm:$0xff]
      %v229 = vld [vmem:[%s219 + $0x10] sm:$0xff]
      %v230 = vld [vmem:[%s219 + $0x18] sm:$0xff]
      %v232 = vcombine.high %v226, %v226
      %v234 = vunpack.c.l.s4 1966171168
      %v235 = vunpack.c.0.s8 %v234
      %v236 = vlaneseq
      %v237 = vshrl.u32 %v236, 7
      %v238 = vsub.s32 %v235, %v237
      %v239 = vrot.slane %v226, %v238
      %v241 = vunpack.c.l.s4 1966171168
      %v242 = vunpack.c.0.s8 %v241
      %v243 = vlaneseq
      %v244 = vshrl.u32 %v243, 7
      %v245 = vsub.s32 %v242, %v244
      %v246 = vrot.slane %v232, %v245
      %v247 = vcombine.high %v239, %v239
      %v248 = vcombine.high %v246, %v246
      %v250 = vunpack.c.l.s4 1966171168
      %v251 = vunpack.c.0.s8 %v250
      %v252 = vlaneseq
      %v253 = vshrl.u32 %v252, 7
      %v254 = vsub.s32 %v251, %v253
      %v255 = vrot.slane %v239, %v254
      %v257 = vunpack.c.l.s4 1966171168
      %v258 = vunpack.c.0.s8 %v257
      %v259 = vlaneseq
      %v260 = vshrl.u32 %v259, 7
      %v261 = vsub.s32 %v258, %v260
      %v262 = vrot.slane %v246, %v261
      %v264 = vunpack.c.l.s4 1966171168
      %v265 = vunpack.c.0.s8 %v264
      %v266 = vlaneseq
      %v267 = vshrl.u32 %v266, 7
      %v268 = vsub.s32 %v265, %v267
      %v269 = vrot.slane %v247, %v268
      %v271 = vunpack.c.l.s4 1966171168
      %v272 = vunpack.c.0.s8 %v271
      %v273 = vlaneseq
      %v274 = vshrl.u32 %v273, 7
      %v275 = vsub.s32 %v272, %v274
      %v276 = vrot.slane %v248, %v275
      %v277 = vcombine.high %v255, %v255
      %v278 = vcombine.high %v262, %v262
      %v279 = vcombine.high %v269, %v269
      %v280 = vcombine.high %v276, %v276
      %v282 = vpack.i.b16 %v255, %v255
      %v284 = vlaneseq
      %v285 = vshrl.u32 %v284, 7
      %v286 = vsub.s32 0, %v285
      %v287 = vrot.slane %v282, %v286
      %v289 = vpack.i.b16 %v269, %v269
      %v291 = vlaneseq
      %v292 = vshrl.u32 %v291, 7
      %v293 = vsub.s32 0, %v292
      %v294 = vrot.slane %v289, %v293
      %v296 = vpack.i.b16 %v277, %v277
      %v298 = vlaneseq
      %v299 = vshrl.u32 %v298, 7
      %v300 = vsub.s32 0, %v299
      %v301 = vrot.slane %v296, %v300
      %v303 = vpack.i.b16 %v279, %v279
      %v305 = vlaneseq
      %v306 = vshrl.u32 %v305, 7
      %v307 = vsub.s32 0, %v306
      %v308 = vrot.slane %v303, %v307
      %v310 = vpack.i.b16 %v262, %v262
      %v312 = vlaneseq
      %v313 = vshrl.u32 %v312, 7
      %v314 = vsub.s32 0, %v313
      %v315 = vrot.slane %v310, %v314
      %v317 = vpack.i.b16 %v276, %v276
      %v319 = vlaneseq
      %v320 = vshrl.u32 %v319, 7
      %v321 = vsub.s32 0, %v320
      %v322 = vrot.slane %v317, %v321
      %v324 = vpack.i.b16 %v278, %v278
      %v326 = vlaneseq
      %v327 = vshrl.u32 %v326, 7
      %v328 = vsub.s32 0, %v327
      %v329 = vrot.slane %v324, %v328
      %v331 = vpack.i.b16 %v280, %v280
      %v333 = vlaneseq
      %v334 = vshrl.u32 %v333, 7
      %v335 = vsub.s32 0, %v334
      %v336 = vrot.slane %v331, %v335
      %v345 = vunpack.c.l.b16 %v287
      %v346 = vunpack.c.l.b16 %v294
      %v347 = vunpack.c.l.b16 %v301
      %v348 = vunpack.c.l.b16 %v308
      %v349 = vunpack.c.l.b16 %v315
      %v350 = vunpack.c.l.b16 %v322
      %v351 = vunpack.c.l.b16 %v329
      %v352 = vunpack.c.l.b16 %v336
      %v353 = vpack.c.b16 %v346, %v345
      %v354 = vpack.c.b16 %v348, %v347
      %v355 = vpack.c.b16 %v350, %v349
      %v356 = vpack.c.b16 %v352, %v351
      %v361 = vmul.bf16 %v227, %v353
      %v362 = vmul.bf16 %v228, %v354
      %v363 = vmul.bf16 %v229, %v355
      %v364 = vmul.bf16 %v230, %v356
      %v365 = vld [vmem:[%s1] sm:$0xf]
      %v366 = vld [vmem:[%s1 + $0x4] sm:$0x3]
      %v367 = vld [vmem:[%s219 + $0x20] sm:$0xf]
      %s368 = scalar_lea.vmem %s1, 8
      %v369 = vld [vmem:[%s368] sm:$0xf]
      %v370 = vld [vmem:[%s368 + $0x4] sm:$0x3]
      %v373 = vunpack.c.l.b16 %v369
      %v374 = vunpack.c.l.b16 %v370
      %v375 = vpack.c.b16 %v374, %v373
      %v381 = vunpack.c.l.b16 %v227
      %v382 = vunpack.c.h.b16 %v227
      %v383 = vunpack.c.l.b16 %v228
      %v384 = vunpack.c.h.b16 %v228
      %v385 = vunpack.c.l.b16 %v229
      %v386 = vunpack.c.h.b16 %v229
      %v387 = vunpack.c.l.b16 %v230
      %v388 = vunpack.c.h.b16 %v230
      %v389 = vunpack.c.l.b16 %v367
      %v390 = vpack.c.b16 %v381, %v381
      %v391 = vpack.c.b16 %v382, %v382
      %v392 = vpack.c.b16 %v383, %v383
      %v393 = vpack.c.b16 %v384, %v384
      %v394 = vpack.c.b16 %v385, %v385
      %v395 = vpack.c.b16 %v386, %v386
      %v396 = vpack.c.b16 %v387, %v387
      %v397 = vpack.c.b16 %v388, %v388
      %v398 = vpack.c.b16 %v389, %v389
      %399 = vrot.lane.b32.xlu0 %v390, 127
      %v400 = vpop.permute.xlu0 %399
      %401 = vrot.lane.b32.xlu0 %v391, 127
      %v402 = vpop.permute.xlu0 %401
      %403 = vrot.lane.b32.xlu0 %v392, 127
      %v404 = vpop.permute.xlu0 %403
      %405 = vrot.lane.b32.xlu0 %v393, 127
      %v406 = vpop.permute.xlu0 %405
      %407 = vrot.lane.b32.xlu0 %v394, 127
      %v408 = vpop.permute.xlu0 %407
      %409 = vrot.lane.b32.xlu0 %v395, 127
      %v410 = vpop.permute.xlu0 %409
      %411 = vrot.lane.b32.xlu0 %v396, 127
      %v412 = vpop.permute.xlu0 %411
      %413 = vrot.lane.b32.xlu0 %v397, 127
      %v414 = vpop.permute.xlu0 %413
      %415 = vrot.lane.b32.xlu0 %v398, 127
      %v416 = vpop.permute.xlu0 %415
      %vm417 = vcmask 1039360
      %v418 = vsel %vm417, %v400, %v402
      %v419 = vsel %vm417, %v402, %v404
      %v420 = vsel %vm417, %v404, %v406
      %v421 = vsel %vm417, %v406, %v408
      %v422 = vsel %vm417, %v408, %v410
      %v423 = vsel %vm417, %v410, %v412
      %v424 = vsel %vm417, %v412, %v414
      %v425 = vsel %vm417, %v414, %v416
      %vm426 = vcmask 64512
      %v428 = vsel %vm426, %v375, 0
      %vm430 = vcmask 1043456
      %v432 = vsel %vm430, %v418, 0
      %v435 = vsel %vm430, %v419, 0
      %v438 = vsel %vm430, %v420, 0
      %v441 = vsel %vm430, %v421, 0
      %v444 = vsel %vm430, %v422, 0
      %v447 = vsel %vm430, %v423, 0
      %v450 = vsel %vm430, %v424, 0
      %v453 = vsel %vm430, %v425, 0
      %455 = vmatprep.subr.bf16.mxu0 %v435
      %456 = vmatpush1.bf16.msra.mxu0 %v432
      %457 = vmatprep.subr.bf16.mxu0 0
      %458 = vmatpush1.bf16.msra.mxu0 0
      %459 = vmatprep.subr.bf16.mxu0 0
      %460 = vmatpush1.bf16.msra.mxu0 0
      %461 = vmatprep.subr.bf16.mxu0 0
      %462 = vmatpush1.bf16.msra.mxu0 0
      %463 = vmatprep.subr.bf16.mxu0 0
      %464 = vmatpush1.bf16.msra.mxu0 0
      %465 = vmatprep.subr.bf16.mxu0 0
      %466 = vmatpush1.bf16.msra.mxu0 0
      %467 = vmatprep.subr.bf16.mxu0 0
      %468 = vmatpush1.bf16.msra.mxu0 0
      %469 = vmatprep.subr.bf16.mxu0 0
      %470 = vmatpush1.bf16.msra.mxu0 0
      %471 = vmatprep.subr.bf16.mxu0 0
      %472 = vmatpush1.bf16.msra.mxu0 0
      %473 = vmatprep.subr.bf16.mxu0 0
      %474 = vmatpush1.bf16.msra.mxu0 0
      %475 = vmatprep.subr.bf16.mxu0 0
      %476 = vmatpush1.bf16.msra.mxu0 0
      %477 = vmatprep.subr.bf16.mxu0 0
      %478 = vmatpush1.bf16.msra.mxu0 0
      %479 = vmatprep.subr.bf16.mxu0 0
      %480 = vmatpush1.bf16.msra.mxu0 0
      %481 = vmatprep.subr.bf16.mxu0 0
      %482 = vmatpush1.bf16.msra.mxu0 0
      %483 = vmatprep.subr.bf16.mxu0 0
      %484 = vmatpush1.bf16.msra.mxu0 0
      %485 = vmatprep.subr.bf16.mxu0 0
      %486 = vmatpush1.bf16.msra.mxu0 0
      %487 = vmatprep.mubr.bf16.mxu0 0
      %488 = vmatmul.mubr.bf16.gmra.mrb[0].mxu0 %v428
      %v489 = vpop.f32.mrb[0].mxu0
      %v490 = vadd.f32 0.0, %v489
      %v491 = vpop.f32.mrb[0].mxu0
      %v492 = vadd.f32 0.0, %v491
      %v493 = vpop.f32.mrb[0].mxu0
      %v494 = vadd.f32 0.0, %v493
      %v495 = vpop.f32.mrb[0].mxu0
      %v496 = vadd.f32 0.0, %v495
      %497 = vdwg.mxu0
      %498 = vmatprep.subr.bf16.mxu0 %v441
      %499 = vmatpush1.bf16.msra.mxu0 %v438
      %500 = vmatprep.subr.bf16.mxu0 0
      %501 = vmatpush1.bf16.msra.mxu0 0
      %502 = vmatprep.subr.bf16.mxu0 0
      %503 = vmatpush1.bf16.msra.mxu0 0
      %504 = vmatprep.subr.bf16.mxu0 0
      %505 = vmatpush1.bf16.msra.mxu0 0
      %506 = vmatprep.subr.bf16.mxu0 0
      %507 = vmatpush1.bf16.msra.mxu0 0
      %508 = vmatprep.subr.bf16.mxu0 0
      %509 = vmatpush1.bf16.msra.mxu0 0
      %510 = vmatprep.subr.bf16.mxu0 0
      %511 = vmatpush1.bf16.msra.mxu0 0
      %512 = vmatprep.subr.bf16.mxu0 0
      %513 = vmatpush1.bf16.msra.mxu0 0
      %514 = vmatprep.subr.bf16.mxu0 0
      %515 = vmatpush1.bf16.msra.mxu0 0
      %516 = vmatprep.subr.bf16.mxu0 0
      %517 = vmatpush1.bf16.msra.mxu0 0
      %518 = vmatprep.subr.bf16.mxu0 0
      %519 = vmatpush1.bf16.msra.mxu0 0
      %520 = vmatprep.subr.bf16.mxu0 0
      %521 = vmatpush1.bf16.msra.mxu0 0
      %522 = vmatprep.subr.bf16.mxu0 0
      %523 = vmatpush1.bf16.msra.mxu0 0
      %524 = vmatprep.subr.bf16.mxu0 0
      %525 = vmatpush1.bf16.msra.mxu0 0
      %526 = vmatprep.subr.bf16.mxu0 0
      %527 = vmatpush1.bf16.msra.mxu0 0
      %528 = vmatprep.subr.bf16.mxu0 0
      %529 = vmatpush1.bf16.msra.mxu0 0
      %530 = vmatprep.mubr.bf16.mxu0 0
      %531 = vmatmul.mubr.bf16.gmra.mrb[0].mxu0 %v428
      %v532 = vpop.f32.mrb[0].mxu0
      %v533 = vadd.f32 0.0, %v532
      %v534 = vpop.f32.mrb[0].mxu0
      %v535 = vadd.f32 0.0, %v534
      %v536 = vpop.f32.mrb[0].mxu0
      %v537 = vadd.f32 0.0, %v536
      %v538 = vpop.f32.mrb[0].mxu0
      %v539 = vadd.f32 0.0, %v538
      %540 = vdwg.mxu0
      %541 = vmatprep.subr.bf16.mxu0 %v447
      %542 = vmatpush1.bf16.msra.mxu0 %v444
      %543 = vmatprep.subr.bf16.mxu0 0
      %544 = vmatpush1.bf16.msra.mxu0 0
      %545 = vmatprep.subr.bf16.mxu0 0
      %546 = vmatpush1.bf16.msra.mxu0 0
      %547 = vmatprep.subr.bf16.mxu0 0
      %548 = vmatpush1.bf16.msra.mxu0 0
      %549 = vmatprep.subr.bf16.mxu0 0
      %550 = vmatpush1.bf16.msra.mxu0 0
      %551 = vmatprep.subr.bf16.mxu0 0
      %552 = vmatpush1.bf16.msra.mxu0 0
      %553 = vmatprep.subr.bf16.mxu0 0
      %554 = vmatpush1.bf16.msra.mxu0 0
      %555 = vmatprep.subr.bf16.mxu0 0
      %556 = vmatpush1.bf16.msra.mxu0 0
      %557 = vmatprep.subr.bf16.mxu0 0
      %558 = vmatpush1.bf16.msra.mxu0 0
      %559 = vmatprep.subr.bf16.mxu0 0
      %560 = vmatpush1.bf16.msra.mxu0 0
      %561 = vmatprep.subr.bf16.mxu0 0
      %562 = vmatpush1.bf16.msra.mxu0 0
      %563 = vmatprep.subr.bf16.mxu0 0
      %564 = vmatpush1.bf16.msra.mxu0 0
      %565 = vmatprep.subr.bf16.mxu0 0
      %566 = vmatpush1.bf16.msra.mxu0 0
      %567 = vmatprep.subr.bf16.mxu0 0
      %568 = vmatpush1.bf16.msra.mxu0 0
      %569 = vmatprep.subr.bf16.mxu0 0
      %570 = vmatpush1.bf16.msra.mxu0 0
      %571 = vmatprep.subr.bf16.mxu0 0
      %572 = vmatpush1.bf16.msra.mxu0 0
      %573 = vmatprep.mubr.bf16.mxu0 0
      %574 = vmatmul.mubr.bf16.gmra.mrb[0].mxu0 %v428
      %v575 = vpop.f32.mrb[0].mxu0
      %v576 = vadd.f32 0.0, %v575
      %v577 = vpop.f32.mrb[0].mxu0
      %v578 = vadd.f32 0.0, %v577
      %v579 = vpop.f32.mrb[0].mxu0
      %v580 = vadd.f32 0.0, %v579
      %v581 = vpop.f32.mrb[0].mxu0
      %v582 = vadd.f32 0.0, %v581
      %583 = vdwg.mxu0
      %584 = vmatprep.subr.bf16.mxu0 %v453
      %585 = vmatpush1.bf16.msra.mxu0 %v450
      %586 = vmatprep.subr.bf16.mxu0 0
      %587 = vmatpush1.bf16.msra.mxu0 0
      %588 = vmatprep.subr.bf16.mxu0 0
      %589 = vmatpush1.bf16.msra.mxu0 0
      %590 = vmatprep.subr.bf16.mxu0 0
      %591 = vmatpush1.bf16.msra.mxu0 0
      %592 = vmatprep.subr.bf16.mxu0 0
      %593 = vmatpush1.bf16.msra.mxu0 0
      %594 = vmatprep.subr.bf16.mxu0 0
      %595 = vmatpush1.bf16.msra.mxu0 0
      %596 = vmatprep.subr.bf16.mxu0 0
      %597 = vmatpush1.bf16.msra.mxu0 0
      %598 = vmatprep.subr.bf16.mxu0 0
      %599 = vmatpush1.bf16.msra.mxu0 0
      %600 = vmatprep.subr.bf16.mxu0 0
      %601 = vmatpush1.bf16.msra.mxu0 0
      %602 = vmatprep.subr.bf16.mxu0 0
      %603 = vmatpush1.bf16.msra.mxu0 0
      %604 = vmatprep.subr.bf16.mxu0 0
      %605 = vmatpush1.bf16.msra.mxu0 0
      %606 = vmatprep.subr.bf16.mxu0 0
      %607 = vmatpush1.bf16.msra.mxu0 0
      %608 = vmatprep.subr.bf16.mxu0 0
      %609 = vmatpush1.bf16.msra.mxu0 0
      %610 = vmatprep.subr.bf16.mxu0 0
      %611 = vmatpush1.bf16.msra.mxu0 0
      %612 = vmatprep.subr.bf16.mxu0 0
      %613 = vmatpush1.bf16.msra.mxu0 0
      %614 = vmatprep.subr.bf16.mxu0 0
      %615 = vmatpush1.bf16.msra.mxu0 0
      %616 = vmatprep.mubr.bf16.mxu0 0
      %617 = vmatmul.mubr.bf16.gmra.mrb[0].mxu0 %v428
      %v618 = vpop.f32.mrb[0].mxu0
      %v619 = vadd.f32 0.0, %v618
      %v620 = vpop.f32.mrb[0].mxu0
      %v621 = vadd.f32 0.0, %v620
      %v622 = vpop.f32.mrb[0].mxu0
      %v623 = vadd.f32 0.0, %v622
      %v624 = vpop.f32.mrb[0].mxu0
      %v625 = vadd.f32 0.0, %v624
      %626 = vdwg.mxu0
      %v629 = vunpack.c.l.b16 %v365
      %v630 = vunpack.c.l.b16 %v366
      %v631 = vpack.c.b16 %v630, %v629
      %v636 = vunpack.c.l.b16 %v361
      %v637 = vunpack.c.h.b16 %v361
      %v638 = vunpack.c.l.b16 %v362
      %v639 = vunpack.c.h.b16 %v362
      %v640 = vunpack.c.l.b16 %v363
      %v641 = vunpack.c.h.b16 %v363
      %v642 = vunpack.c.l.b16 %v364
      %v643 = vunpack.c.h.b16 %v364
      %v644 = vpack.c.b16 %v636, %v636
      %v645 = vpack.c.b16 %v637, %v637
      %v646 = vpack.c.b16 %v638, %v638
      %v647 = vpack.c.b16 %v639, %v639
      %v648 = vpack.c.b16 %v640, %v640
      %v649 = vpack.c.b16 %v641, %v641
      %v650 = vpack.c.b16 %v642, %v642
      %v651 = vpack.c.b16 %v643, %v643
      %v653 = vsel %vm426, %v631, 0
      %v656 = vsel %vm430, %v644, 0
      %v659 = vsel %vm430, %v645, 0
      %v662 = vsel %vm430, %v646, 0
      %v665 = vsel %vm430, %v647, 0
      %v668 = vsel %vm430, %v648, 0
      %v671 = vsel %vm430, %v649, 0
      %v674 = vsel %vm430, %v650, 0
      %v677 = vsel %vm430, %v651, 0
      %679 = vmatprep.subr.bf16.mxu0 %v659
      %680 = vmatpush1.bf16.msra.mxu0 %v656
      %681 = vmatprep.subr.bf16.mxu0 0
      %682 = vmatpush1.bf16.msra.mxu0 0
      %683 = vmatprep.subr.bf16.mxu0 0
      %684 = vmatpush1.bf16.msra.mxu0 0
      %685 = vmatprep.subr.bf16.mxu0 0
      %686 = vmatpush1.bf16.msra.mxu0 0
      %687 = vmatprep.subr.bf16.mxu0 0
      %688 = vmatpush1.bf16.msra.mxu0 0
      %689 = vmatprep.subr.bf16.mxu0 0
      %690 = vmatpush1.bf16.msra.mxu0 0
      %691 = vmatprep.subr.bf16.mxu0 0
      %692 = vmatpush1.bf16.msra.mxu0 0
      %693 = vmatprep.subr.bf16.mxu0 0
      %694 = vmatpush1.bf16.msra.mxu0 0
      %695 = vmatprep.subr.bf16.mxu0 0
      %696 = vmatpush1.bf16.msra.mxu0 0
      %697 = vmatprep.subr.bf16.mxu0 0
      %698 = vmatpush1.bf16.msra.mxu0 0
      %699 = vmatprep.subr.bf16.mxu0 0
      %700 = vmatpush1.bf16.msra.mxu0 0
      %701 = vmatprep.subr.bf16.mxu0 0
      %702 = vmatpush1.bf16.msra.mxu0 0
      %703 = vmatprep.subr.bf16.mxu0 0
      %704 = vmatpush1.bf16.msra.mxu0 0
      %705 = vmatprep.subr.bf16.mxu0 0
      %706 = vmatpush1.bf16.msra.mxu0 0
      %707 = vmatprep.subr.bf16.mxu0 0
      %708 = vmatpush1.bf16.msra.mxu0 0
      %709 = vmatprep.subr.bf16.mxu0 0
      %710 = vmatpush1.bf16.msra.mxu0 0
      %711 = vmatprep.mubr.bf16.mxu0 0
      %712 = vmatmul.mubr.bf16.gmra.mrb[0].mxu0 %v653
      %v713 = vpop.f32.mrb[0].mxu0
      %v714 = vadd.f32 %v490, %v713
      %v715 = vpop.f32.mrb[0].mxu0
      %v716 = vadd.f32 %v492, %v715
      %v717 = vpop.f32.mrb[0].mxu0
      %v718 = vadd.f32 %v494, %v717
      %v719 = vpop.f32.mrb[0].mxu0
      %v720 = vadd.f32 %v496, %v719
      %721 = vdwg.mxu0
      %722 = vmatprep.subr.bf16.mxu0 %v665
      %723 = vmatpush1.bf16.msra.mxu0 %v662
      %724 = vmatprep.subr.bf16.mxu0 0
      %725 = vmatpush1.bf16.msra.mxu0 0
      %726 = vmatprep.subr.bf16.mxu0 0
      %727 = vmatpush1.bf16.msra.mxu0 0
      %728 = vmatprep.subr.bf16.mxu0 0
      %729 = vmatpush1.bf16.msra.mxu0 0
      %730 = vmatprep.subr.bf16.mxu0 0
      %731 = vmatpush1.bf16.msra.mxu0 0
      %732 = vmatprep.subr.bf16.mxu0 0
      %733 = vmatpush1.bf16.msra.mxu0 0
      %734 = vmatprep.subr.bf16.mxu0 0
      %735 = vmatpush1.bf16.msra.mxu0 0
      %736 = vmatprep.subr.bf16.mxu0 0
      %737 = vmatpush1.bf16.msra.mxu0 0
      %738 = vmatprep.subr.bf16.mxu0 0
      %739 = vmatpush1.bf16.msra.mxu0 0
      %740 = vmatprep.subr.bf16.mxu0 0
      %741 = vmatpush1.bf16.msra.mxu0 0
      %742 = vmatprep.subr.bf16.mxu0 0
      %743 = vmatpush1.bf16.msra.mxu0 0
      %744 = vmatprep.subr.bf16.mxu0 0
      %745 = vmatpush1.bf16.msra.mxu0 0
      %746 = vmatprep.subr.bf16.mxu0 0
      %747 = vmatpush1.bf16.msra.mxu0 0
      %748 = vmatprep.subr.bf16.mxu0 0
      %749 = vmatpush1.bf16.msra.mxu0 0
      %750 = vmatprep.subr.bf16.mxu0 0
      %751 = vmatpush1.bf16.msra.mxu0 0
      %752 = vmatprep.subr.bf16.mxu0 0
      %753 = vmatpush1.bf16.msra.mxu0 0
      %754 = vmatprep.mubr.bf16.mxu0 0
      %755 = vmatmul.mubr.bf16.gmra.mrb[0].mxu0 %v653
      %v756 = vpop.f32.mrb[0].mxu0
      %v757 = vadd.f32 %v533, %v756
      %v758 = vpop.f32.mrb[0].mxu0
      %v759 = vadd.f32 %v535, %v758
      %v760 = vpop.f32.mrb[0].mxu0
      %v761 = vadd.f32 %v537, %v760
      %v762 = vpop.f32.mrb[0].mxu0
      %v763 = vadd.f32 %v539, %v762
      %764 = vdwg.mxu0
      %765 = vmatprep.subr.bf16.mxu0 %v671
      %766 = vmatpush1.bf16.msra.mxu0 %v668
      %767 = vmatprep.subr.bf16.mxu0 0
      %768 = vmatpush1.bf16.msra.mxu0 0
      %769 = vmatprep.subr.bf16.mxu0 0
      %770 = vmatpush1.bf16.msra.mxu0 0
      %771 = vmatprep.subr.bf16.mxu0 0
      %772 = vmatpush1.bf16.msra.mxu0 0
      %773 = vmatprep.subr.bf16.mxu0 0
      %774 = vmatpush1.bf16.msra.mxu0 0
      %775 = vmatprep.subr.bf16.mxu0 0
      %776 = vmatpush1.bf16.msra.mxu0 0
      %777 = vmatprep.subr.bf16.mxu0 0
      %778 = vmatpush1.bf16.msra.mxu0 0
      %779 = vmatprep.subr.bf16.mxu0 0
      %780 = vmatpush1.bf16.msra.mxu0 0
      %781 = vmatprep.subr.bf16.mxu0 0
      %782 = vmatpush1.bf16.msra.mxu0 0
      %783 = vmatprep.subr.bf16.mxu0 0
      %784 = vmatpush1.bf16.msra.mxu0 0
      %785 = vmatprep.subr.bf16.mxu0 0
      %786 = vmatpush1.bf16.msra.mxu0 0
      %787 = vmatprep.subr.bf16.mxu0 0
      %788 = vmatpush1.bf16.msra.mxu0 0
      %789 = vmatprep.subr.bf16.mxu0 0
      %790 = vmatpush1.bf16.msra.mxu0 0
      %791 = vmatprep.subr.bf16.mxu0 0
      %792 = vmatpush1.bf16.msra.mxu0 0
      %793 = vmatprep.subr.bf16.mxu0 0
      %794 = vmatpush1.bf16.msra.mxu0 0
      %795 = vmatprep.subr.bf16.mxu0 0
      %796 = vmatpush1.bf16.msra.mxu0 0
      %797 = vmatprep.mubr.bf16.mxu0 0
      %798 = vmatmul.mubr.bf16.gmra.mrb[0].mxu0 %v653
      %v799 = vpop.f32.mrb[0].mxu0
      %v800 = vadd.f32 %v576, %v799
      %v801 = vpop.f32.mrb[0].mxu0
      %v802 = vadd.f32 %v578, %v801
      %v803 = vpop.f32.mrb[0].mxu0
      %v804 = vadd.f32 %v580, %v803
      %v805 = vpop.f32.mrb[0].mxu0
      %v806 = vadd.f32 %v582, %v805
      %807 = vdwg.mxu0
      %808 = vmatprep.subr.bf16.mxu0 %v677
      %809 = vmatpush1.bf16.msra.mxu0 %v674
      %810 = vmatprep.subr.bf16.mxu0 0
      %811 = vmatpush1.bf16.msra.mxu0 0
      %812 = vmatprep.subr.bf16.mxu0 0
      %813 = vmatpush1.bf16.msra.mxu0 0
      %814 = vmatprep.subr.bf16.mxu0 0
      %815 = vmatpush1.bf16.msra.mxu0 0
      %816 = vmatprep.subr.bf16.mxu0 0
      %817 = vmatpush1.bf16.msra.mxu0 0
      %818 = vmatprep.subr.bf16.mxu0 0
      %819 = vmatpush1.bf16.msra.mxu0 0
      %820 = vmatprep.subr.bf16.mxu0 0
      %821 = vmatpush1.bf16.msra.mxu0 0
      %822 = vmatprep.subr.bf16.mxu0 0
      %823 = vmatpush1.bf16.msra.mxu0 0
      %824 = vmatprep.subr.bf16.mxu0 0
      %825 = vmatpush1.bf16.msra.mxu0 0
      %826 = vmatprep.subr.bf16.mxu0 0
      %827 = vmatpush1.bf16.msra.mxu0 0
      %828 = vmatprep.subr.bf16.mxu0 0
      %829 = vmatpush1.bf16.msra.mxu0 0
      %830 = vmatprep.subr.bf16.mxu0 0
      %831 = vmatpush1.bf16.msra.mxu0 0
      %832 = vmatprep.subr.bf16.mxu0 0
      %833 = vmatpush1.bf16.msra.mxu0 0
      %834 = vmatprep.subr.bf16.mxu0 0
      %835 = vmatpush1.bf16.msra.mxu0 0
      %836 = vmatprep.subr.bf16.mxu0 0
      %837 = vmatpush1.bf16.msra.mxu0 0
      %838 = vmatprep.subr.bf16.mxu0 0
      %839 = vmatpush1.bf16.msra.mxu0 0
      %840 = vmatprep.mubr.bf16.mxu0 0
      %841 = vmatmul.mubr.bf16.gmra.mrb[0].mxu0 %v653
      %v842 = vpop.f32.mrb[0].mxu0
      %v843 = vadd.f32 %v619, %v842
      %v844 = vpop.f32.mrb[0].mxu0
      %v845 = vadd.f32 %v621, %v844
      %v846 = vpop.f32.mrb[0].mxu0
      %v847 = vadd.f32 %v623, %v846
      %v848 = vpop.f32.mrb[0].mxu0
      %v849 = vadd.f32 %v625, %v848
      %850 = vdwg.mxu0
      %v851 = vshrl.u32 %v255, 16
      %v852 = vpack.i.b16 %v851, %v851
      %v854 = vlaneseq
      %v855 = vshrl.u32 %v854, 7
      %v856 = vsub.s32 0, %v855
      %v857 = vrot.slane %v852, %v856
      %v858 = vshrl.u32 %v269, 16
      %v859 = vpack.i.b16 %v858, %v858
      %v861 = vlaneseq
      %v862 = vshrl.u32 %v861, 7
      %v863 = vsub.s32 0, %v862
      %v864 = vrot.slane %v859, %v863
      %v865 = vshrl.u32 %v277, 16
      %v866 = vpack.i.b16 %v865, %v865
      %v868 = vlaneseq
      %v869 = vshrl.u32 %v868, 7
      %v870 = vsub.s32 0, %v869
      %v871 = vrot.slane %v866, %v870
      %v872 = vshrl.u32 %v279, 16
      %v873 = vpack.i.b16 %v872, %v872
      %v875 = vlaneseq
      %v876 = vshrl.u32 %v875, 7
      %v877 = vsub.s32 0, %v876
      %v878 = vrot.slane %v873, %v877
      %v879 = vshrl.u32 %v262, 16
      %v880 = vpack.i.b16 %v879, %v879
      %v882 = vlaneseq
      %v883 = vshrl.u32 %v882, 7
      %v884 = vsub.s32 0, %v883
      %v885 = vrot.slane %v880, %v884
      %v886 = vshrl.u32 %v276, 16
      %v887 = vpack.i.b16 %v886, %v886
      %v889 = vlaneseq
      %v890 = vshrl.u32 %v889, 7
      %v891 = vsub.s32 0, %v890
      %v892 = vrot.slane %v887, %v891
      %v893 = vshrl.u32 %v278, 16
      %v894 = vpack.i.b16 %v893, %v893
      %v896 = vlaneseq
      %v897 = vshrl.u32 %v896, 7
      %v898 = vsub.s32 0, %v897
      %v899 = vrot.slane %v894, %v898
      %v900 = vshrl.u32 %v280, 16
      %v901 = vpack.i.b16 %v900, %v900
      %v903 = vlaneseq
      %v904 = vshrl.u32 %v903, 7
      %v905 = vsub.s32 0, %v904
      %v906 = vrot.slane %v901, %v905
      %v915 = vunpack.c.l.b16 %v857
      %v916 = vunpack.c.l.b16 %v864
      %v917 = vunpack.c.l.b16 %v871
      %v918 = vunpack.c.l.b16 %v878
      %v919 = vunpack.c.l.b16 %v885
      %v920 = vunpack.c.l.b16 %v892
      %v921 = vunpack.c.l.b16 %v899
      %v922 = vunpack.c.l.b16 %v906
      %v923 = vpack.c.b16 %v916, %v915
      %v924 = vpack.c.b16 %v918, %v917
      %v925 = vpack.c.b16 %v920, %v919
      %v926 = vpack.c.b16 %v922, %v921
      %927 = vrot.lane.b32.xlu0 %v923, 2
      %v928 = vpop.permute.xlu0 %927
      %929 = vrot.lane.b32.xlu0 %v924, 2
      %v930 = vpop.permute.xlu0 %929
      %931 = vrot.lane.b32.xlu0 %v925, 2
      %v932 = vpop.permute.xlu0 %931
      %933 = vrot.lane.b32.xlu0 %v926, 2
      %v934 = vpop.permute.xlu0 %933
      %v935 = vrot.slane %v928, 4
      %v936 = vrot.slane %v930, 4
      %v937 = vrot.slane %v932, 4
      %v938 = vrot.slane %v934, 4
      %vm939 = vcmask 15360
      %v940 = vsel %vm939, %v935, %v928
      %vm941 = vcmask 1043456
      %v942 = vsel %vm941, %v935, %v936
      %v943 = vsel %vm939, %v942, %v930
      %v944 = vsel %vm941, %v936, %v937
      %v945 = vsel %vm939, %v944, %v932
      %v946 = vsel %vm941, %v937, %v938
      %v947 = vsel %vm939, %v946, %v934
      %v953 = vmul.bf16 %v227, %v940
      %v954 = vmul.bf16 %v228, %v943
      %v955 = vmul.bf16 %v229, %v945
      %v956 = vmul.bf16 %v230, %v947
      %v957 = vmul.bf16 %v367, %v938
      %s958 = scalar_lea.vmem %s1, 16
      %v959 = vld [vmem:[%s958] sm:$0xf]
      %v960 = vld [vmem:[%s958 + $0x4] sm:$0x3]
      %v963 = vunpack.c.l.b16 %v959
      %v964 = vunpack.c.l.b16 %v960
      %v965 = vpack.c.b16 %v964, %v963
      %v971 = vunpack.c.l.b16 %v953
      %v972 = vunpack.c.h.b16 %v953
      %v973 = vunpack.c.l.b16 %v954
      %v974 = vunpack.c.h.b16 %v954
      %v975 = vunpack.c.l.b16 %v955
      %v976 = vunpack.c.h.b16 %v955
      %v977 = vunpack.c.l.b16 %v956
      %v978 = vunpack.c.h.b16 %v956
      %v979 = vunpack.c.l.b16 %v957
      %v980 = vpack.c.b16 %v971, %v971
      %v981 = vpack.c.b16 %v972, %v972
      %v982 = vpack.c.b16 %v973, %v973
      %v983 = vpack.c.b16 %v974, %v974
      %v984 = vpack.c.b16 %v975, %v975
      %v985 = vpack.c.b16 %v976, %v976
      %v986 = vpack.c.b16 %v977, %v977
      %v987 = vpack.c.b16 %v978, %v978
      %v988 = vpack.c.b16 %v979, %v979
      %989 = vrot.lane.b32.xlu0 %v980, 126
      %v990 = vpop.permute.xlu0 %989
      %991 = vrot.lane.b32.xlu0 %v981, 126
      %v992 = vpop.permute.xlu0 %991
      %993 = vrot.lane.b32.xlu0 %v982, 126
      %v994 = vpop.permute.xlu0 %993
      %995 = vrot.lane.b32.xlu0 %v983, 126
      %v996 = vpop.permute.xlu0 %995
      %997 = vrot.lane.b32.xlu0 %v984, 126
      %v998 = vpop.permute.xlu0 %997
      %999 = vrot.lane.b32.xlu0 %v985, 126
      %v1000 = vpop.permute.xlu0 %999
      %1001 = vrot.lane.b32.xlu0 %v986, 126
      %v1002 = vpop.permute.xlu0 %1001
      %1003 = vrot.lane.b32.xlu0 %v987, 126
      %v1004 = vpop.permute.xlu0 %1003
      %1005 = vrot.lane.b32.xlu0 %v988, 126
      %v1006 = vpop.permute.xlu0 %1005
      %vm1007 = vcmask 1031168
      %v1008 = vsel %vm1007, %v990, %v992
      %v1009 = vsel %vm1007, %v992, %v994
      %v1010 = vsel %vm1007, %v994, %v996
      %v1011 = vsel %vm1007, %v996, %v998
      %v1012 = vsel %vm1007, %v998, %v1000
      %v1013 = vsel %vm1007, %v1000, %v1002
      %v1014 = vsel %vm1007, %v1002, %v1004
      %v1015 = vsel %vm1007, %v1004, %v1006
      %v1017 = vsel %vm426, %v965, 0
      %v1020 = vsel %vm430, %v1008, 0
      %v1023 = vsel %vm430, %v1009, 0
      %v1026 = vsel %vm430, %v1010, 0
      %v1029 = vsel %vm430, %v1011, 0
      %v1032 = vsel %vm430, %v1012, 0
      %v1035 = vsel %vm430, %v1013, 0
      %v1038 = vsel %vm430, %v1014, 0
      %v1041 = vsel %vm430, %v1015, 0
      %1043 = vmatprep.subr.bf16.mxu0 %v1023
      %1044 = vmatpush1.bf16.msra.mxu0 %v1020
      %1045 = vmatprep.subr.bf16.mxu0 0
      %1046 = vmatpush1.bf16.msra.mxu0 0
      %1047 = vmatprep.subr.bf16.mxu0 0
      %1048 = vmatpush1.bf16.msra.mxu0 0
      %1049 = vmatprep.subr.bf16.mxu0 0
      %1050 = vmatpush1.bf16.msra.mxu0 0
      %1051 = vmatprep.subr.bf16.mxu0 0
      %1052 = vmatpush1.bf16.msra.mxu0 0
      %1053 = vmatprep.subr.bf16.mxu0 0
      %1054 = vmatpush1.bf16.msra.mxu0 0
      %1055 = vmatprep.subr.bf16.mxu0 0
      %1056 = vmatpush1.bf16.msra.mxu0 0
      %1057 = vmatprep.subr.bf16.mxu0 0
      %1058 = vmatpush1.bf16.msra.mxu0 0
      %1059 = vmatprep.subr.bf16.mxu0 0
      %1060 = vmatpush1.bf16.msra.mxu0 0
      %1061 = vmatprep.subr.bf16.mxu0 0
      %1062 = vmatpush1.bf16.msra.mxu0 0
      %1063 = vmatprep.subr.bf16.mxu0 0
      %1064 = vmatpush1.bf16.msra.mxu0 0
      %1065 = vmatprep.subr.bf16.mxu0 0
      %1066 = vmatpush1.bf16.msra.mxu0 0
      %1067 = vmatprep.subr.bf16.mxu0 0
      %1068 = vmatpush1.bf16.msra.mxu0 0
      %1069 = vmatprep.subr.bf16.mxu0 0
      %1070 = vmatpush1.bf16.msra.mxu0 0
      %1071 = vmatprep.subr.bf16.mxu0 0
      %1072 = vmatpush1.bf16.msra.mxu0 0
      %1073 = vmatprep.subr.bf16.mxu0 0
      %1074 = vmatpush1.bf16.msra.mxu0 0
      %1075 = vmatprep.mubr.bf16.mxu0 0
      %1076 = vmatmul.mubr.bf16.gmra.mrb[0].mxu0 %v1017
      %v1077 = vpop.f32.mrb[0].mxu0
      %v1078 = vadd.f32 0.0, %v1077
      %v1079 = vpop.f32.mrb[0].mxu0
      %v1080 = vadd.f32 0.0, %v1079
      %v1081 = vpop.f32.mrb[0].mxu0
      %v1082 = vadd.f32 0.0, %v1081
      %v1083 = vpop.f32.mrb[0].mxu0
      %v1084 = vadd.f32 0.0, %v1083
      %1085 = vdwg.mxu0
      %1086 = vmatprep.subr.bf16.mxu0 %v1029
      %1087 = vmatpush1.bf16.msra.mxu0 %v1026
      %1088 = vmatprep.subr.bf16.mxu0 0
      %1089 = vmatpush1.bf16.msra.mxu0 0
      %1090 = vmatprep.subr.bf16.mxu0 0
      %1091 = vmatpush1.bf16.msra.mxu0 0
      %1092 = vmatprep.subr.bf16.mxu0 0
      %1093 = vmatpush1.bf16.msra.mxu0 0
      %1094 = vmatprep.subr.bf16.mxu0 0
      %1095 = vmatpush1.bf16.msra.mxu0 0
      %1096 = vmatprep.subr.bf16.mxu0 0
      %1097 = vmatpush1.bf16.msra.mxu0 0
      %1098 = vmatprep.subr.bf16.mxu0 0
      %1099 = vmatpush1.bf16.msra.mxu0 0
      %1100 = vmatprep.subr.bf16.mxu0 0
      %1101 = vmatpush1.bf16.msra.mxu0 0
      %1102 = vmatprep.subr.bf16.mxu0 0
      %1103 = vmatpush1.bf16.msra.mxu0 0
      %1104 = vmatprep.subr.bf16.mxu0 0
      %1105 = vmatpush1.bf16.msra.mxu0 0
      %1106 = vmatprep.subr.bf16.mxu0 0
      %1107 = vmatpush1.bf16.msra.mxu0 0
      %1108 = vmatprep.subr.bf16.mxu0 0
      %1109 = vmatpush1.bf16.msra.mxu0 0
      %1110 = vmatprep.subr.bf16.mxu0 0
      %1111 = vmatpush1.bf16.msra.mxu0 0
      %1112 = vmatprep.subr.bf16.mxu0 0
      %1113 = vmatpush1.bf16.msra.mxu0 0
      %1114 = vmatprep.subr.bf16.mxu0 0
      %1115 = vmatpush1.bf16.msra.mxu0 0
      %1116 = vmatprep.subr.bf16.mxu0 0
      %1117 = vmatpush1.bf16.msra.mxu0 0
      %1118 = vmatprep.mubr.bf16.mxu0 0
      %1119 = vmatmul.mubr.bf16.gmra.mrb[0].mxu0 %v1017
      %v1120 = vpop.f32.mrb[0].mxu0
      %v1121 = vadd.f32 0.0, %v1120
      %v1122 = vpop.f32.mrb[0].mxu0
      %v1123 = vadd.f32 0.0, %v1122
      %v1124 = vpop.f32.mrb[0].mxu0
      %v1125 = vadd.f32 0.0, %v1124
      %v1126 = vpop.f32.mrb[0].mxu0
      %v1127 = vadd.f32 0.0, %v1126
      %1128 = vdwg.mxu0
      %1129 = vmatprep.subr.bf16.mxu0 %v1035
      %1130 = vmatpush1.bf16.msra.mxu0 %v1032
      %1131 = vmatprep.subr.bf16.mxu0 0
      %1132 = vmatpush1.bf16.msra.mxu0 0
      %1133 = vmatprep.subr.bf16.mxu0 0
      %1134 = vmatpush1.bf16.msra.mxu0 0
      %1135 = vmatprep.subr.bf16.mxu0 0
      %1136 = vmatpush1.bf16.msra.mxu0 0
      %1137 = vmatprep.subr.bf16.mxu0 0
      %1138 = vmatpush1.bf16.msra.mxu0 0
      %1139 = vmatprep.subr.bf16.mxu0 0
      %1140 = vmatpush1.bf16.msra.mxu0 0
      %1141 = vmatprep.subr.bf16.mxu0 0
      %1142 = vmatpush1.bf16.msra.mxu0 0
      %1143 = vmatprep.subr.bf16.mxu0 0
      %1144 = vmatpush1.bf16.msra.mxu0 0
      %1145 = vmatprep.subr.bf16.mxu0 0
      %1146 = vmatpush1.bf16.msra.mxu0 0
      %1147 = vmatprep.subr.bf16.mxu0 0
      %1148 = vmatpush1.bf16.msra.mxu0 0
      %1149 = vmatprep.subr.bf16.mxu0 0
      %1150 = vmatpush1.bf16.msra.mxu0 0
      %1151 = vmatprep.subr.bf16.mxu0 0
      %1152 = vmatpush1.bf16.msra.mxu0 0
      %1153 = vmatprep.subr.bf16.mxu0 0
      %1154 = vmatpush1.bf16.msra.mxu0 0
      %1155 = vmatprep.subr.bf16.mxu0 0
      %1156 = vmatpush1.bf16.msra.mxu0 0
      %1157 = vmatprep.subr.bf16.mxu0 0
      %1158 = vmatpush1.bf16.msra.mxu0 0
      %1159 = vmatprep.subr.bf16.mxu0 0
      %1160 = vmatpush1.bf16.msra.mxu0 0
      %1161 = vmatprep.mubr.bf16.mxu0 0
      %1162 = vmatmul.mubr.bf16.gmra.mrb[0].mxu0 %v1017
      %v1163 = vpop.f32.mrb[0].mxu0
      %v1164 = vadd.f32 0.0, %v1163
      %v1165 = vpop.f32.mrb[0].mxu0
      %v1166 = vadd.f32 0.0, %v1165
      %v1167 = vpop.f32.mrb[0].mxu0
      %v1168 = vadd.f32 0.0, %v1167
      %v1169 = vpop.f32.mrb[0].mxu0
      %v1170 = vadd.f32 0.0, %v1169
      %1171 = vdwg.mxu0
      %1172 = vmatprep.subr.bf16.mxu0 %v1041
      %1173 = vmatpush1.bf16.msra.mxu0 %v1038
      %1174 = vmatprep.subr.bf16.mxu0 0
      %1175 = vmatpush1.bf16.msra.mxu0 0
      %1176 = vmatprep.subr.bf16.mxu0 0
      %1177 = vmatpush1.bf16.msra.mxu0 0
      %1178 = vmatprep.subr.bf16.mxu0 0
      %1179 = vmatpush1.bf16.msra.mxu0 0
      %1180 = vmatprep.subr.bf16.mxu0 0
      %1181 = vmatpush1.bf16.msra.mxu0 0
      %1182 = vmatprep.subr.bf16.mxu0 0
      %1183 = vmatpush1.bf16.msra.mxu0 0
      %1184 = vmatprep.subr.bf16.mxu0 0
      %1185 = vmatpush1.bf16.msra.mxu0 0
      %1186 = vmatprep.subr.bf16.mxu0 0
      %1187 = vmatpush1.bf16.msra.mxu0 0
      %1188 = vmatprep.subr.bf16.mxu0 0
      %1189 = vmatpush1.bf16.msra.mxu0 0
      %1190 = vmatprep.subr.bf16.mxu0 0
      %1191 = vmatpush1.bf16.msra.mxu0 0
      %1192 = vmatprep.subr.bf16.mxu0 0
      %1193 = vmatpush1.bf16.msra.mxu0 0
      %1194 = vmatprep.subr.bf16.mxu0 0
      %1195 = vmatpush1.bf16.msra.mxu0 0
      %1196 = vmatprep.subr.bf16.mxu0 0
      %1197 = vmatpush1.bf16.msra.mxu0 0
      %1198 = vmatprep.subr.bf16.mxu0 0
      %1199 = vmatpush1.bf16.msra.mxu0 0
      %1200 = vmatprep.subr.bf16.mxu0 0
      %1201 = vmatpush1.bf16.msra.mxu0 0
      %1202 = vmatprep.subr.bf16.mxu0 0
      %1203 = vmatpush1.bf16.msra.mxu0 0
      %1204 = vmatprep.mubr.bf16.mxu0 0
      %1205 = vmatmul.mubr.bf16.gmra.mrb[0].mxu0 %v1017
      %v1206 = vpop.f32.mrb[0].mxu0
      %v1207 = vadd.f32 0.0, %v1206
      %v1208 = vpop.f32.mrb[0].mxu0
      %v1209 = vadd.f32 0.0, %v1208
      %v1210 = vpop.f32.mrb[0].mxu0
      %v1211 = vadd.f32 0.0, %v1210
      %v1212 = vpop.f32.mrb[0].mxu0
      %v1213 = vadd.f32 0.0, %v1212
      %1214 = vdwg.mxu0
      %v1215 = vadd.f32 %v714, %v1078
      %v1216 = vadd.f32 %v716, %v1080
      %v1217 = vadd.f32 %v757, %v1121
      %v1218 = vadd.f32 %v759, %v1123
      %v1219 = vadd.f32 %v800, %v1164
      %v1220 = vadd.f32 %v802, %v1166
      %v1221 = vadd.f32 %v843, %v1207
      %v1222 = vadd.f32 %v845, %v1209
      %v1223 = vadd.f32 %v718, %v1082
      %v1224 = vadd.f32 %v720, %v1084
      %v1225 = vadd.f32 %v761, %v1125
      %v1226 = vadd.f32 %v763, %v1127
      %v1227 = vadd.f32 %v804, %v1168
      %v1228 = vadd.f32 %v806, %v1170
      %v1229 = vadd.f32 %v847, %v1211
      %v1230 = vadd.f32 %v849, %v1213
      %v1231 = vld [vmem:[%s219] sm:$0xff]
      %v1232 = vld [vmem:[%s219 + $0x8] sm:$0xff]
      %v1233 = vld [vmem:[%s219 + $0x10] sm:$0xff]
      %v1234 = vld [vmem:[%s219 + $0x18] sm:$0xff]
      %v1235 = vld [vmem:[%s219 + $0x20] sm:$0xf]
      %1236 = vrot.lane.b32.xlu0 %v353, 32
      %v1237 = vpop.permute.xlu0 %1236
      %1238 = vrot.lane.b32.xlu0 %v354, 32
      %v1239 = vpop.permute.xlu0 %1238
      %1240 = vrot.lane.b32.xlu0 %v355, 32
      %v1241 = vpop.permute.xlu0 %1240
      %1242 = vrot.lane.b32.xlu0 %v356, 32
      %v1243 = vpop.permute.xlu0 %1242
      %v1244 = vrot.slane %v1237, 4
      %v1245 = vrot.slane %v1239, 4
      %v1246 = vrot.slane %v1241, 4
      %v1247 = vrot.slane %v1243, 4
      %vm1248 = vcmask 261120
      %v1249 = vsel %vm1248, %v1244, %v1237
      %v1250 = vsel %vm941, %v1244, %v1245
      %v1251 = vsel %vm1248, %v1250, %v1239
      %v1252 = vsel %vm941, %v1245, %v1246
      %v1253 = vsel %vm1248, %v1252, %v1241
      %v1254 = vsel %vm941, %v1246, %v1247
      %v1255 = vsel %vm1248, %v1254, %v1243
      %v1261 = vmul.bf16 %v1231, %v1249
      %v1262 = vmul.bf16 %v1232, %v1251
      %v1263 = vmul.bf16 %v1233, %v1253
      %v1264 = vmul.bf16 %v1234, %v1255
      %v1265 = vmul.bf16 %v1235, %v1247
      %s1266 = scalar_lea.vmem %s1, 24
      %v1267 = vld [vmem:[%s1266] sm:$0xf]
      %v1268 = vld [vmem:[%s1266 + $0x4] sm:$0x3]
      %v1271 = vunpack.c.l.b16 %v1267
      %v1272 = vunpack.c.l.b16 %v1268
      %v1273 = vpack.c.b16 %v1272, %v1271
      %v1279 = vunpack.c.l.b16 %v1261
      %v1280 = vunpack.c.h.b16 %v1261
      %v1281 = vunpack.c.l.b16 %v1262
      %v1282 = vunpack.c.h.b16 %v1262
      %v1283 = vunpack.c.l.b16 %v1263
      %v1284 = vunpack.c.h.b16 %v1263
      %v1285 = vunpack.c.l.b16 %v1264
      %v1286 = vunpack.c.h.b16 %v1264
      %v1287 = vunpack.c.l.b16 %v1265
      %v1288 = vpack.c.b16 %v1279, %v1279
      %v1289 = vpack.c.b16 %v1280, %v1280
      %v1290 = vpack.c.b16 %v1281, %v1281
      %v1291 = vpack.c.b16 %v1282, %v1282
      %v1292 = vpack.c.b16 %v1283, %v1283
      %v1293 = vpack.c.b16 %v1284, %v1284
      %v1294 = vpack.c.b16 %v1285, %v1285
      %v1295 = vpack.c.b16 %v1286, %v1286
      %v1296 = vpack.c.b16 %v1287, %v1287
      %1297 = vrot.lane.b32.xlu0 %v1288, 96
      %v1298 = vpop.permute.xlu0 %1297
      %1299 = vrot.lane.b32.xlu0 %v1289, 96
      %v1300 = vpop.permute.xlu0 %1299
      %1301 = vrot.lane.b32.xlu0 %v1290, 96
      %v1302 = vpop.permute.xlu0 %1301
      %1303 = vrot.lane.b32.xlu0 %v1291, 96
      %v1304 = vpop.permute.xlu0 %1303
      %1305 = vrot.lane.b32.xlu0 %v1292, 96
      %v1306 = vpop.permute.xlu0 %1305
      %1307 = vrot.lane.b32.xlu0 %v1293, 96
      %v1308 = vpop.permute.xlu0 %1307
      %1309 = vrot.lane.b32.xlu0 %v1294, 96
      %v1310 = vpop.permute.xlu0 %1309
      %1311 = vrot.lane.b32.xlu0 %v1295, 96
      %v1312 = vpop.permute.xlu0 %1311
      %1313 = vrot.lane.b32.xlu0 %v1296, 96
      %v1314 = vpop.permute.xlu0 %1313
      %vm1315 = vcmask 785408
      %v1316 = vsel %vm1315, %v1298, %v1300
      %v1317 = vsel %vm1315, %v1300, %v1302
      %v1318 = vsel %vm1315, %v1302, %v1304
      %v1319 = vsel %vm1315, %v1304, %v1306
      %v1320 = vsel %vm1315, %v1306, %v1308
      %v1321 = vsel %vm1315, %v1308, %v1310
      %v1322 = vsel %vm1315, %v1310, %v1312
      %v1323 = vsel %vm1315, %v1312, %v1314
      %v1325 = vsel %vm426, %v1273, 0
      %v1328 = vsel %vm430, %v1316, 0
      %v1331 = vsel %vm430, %v1317, 0
      %v1334 = vsel %vm430, %v1318, 0
      %v1337 = vsel %vm430, %v1319, 0
      %v1340 = vsel %vm430, %v1320, 0
      %v1343 = vsel %vm430, %v1321, 0
      %v1346 = vsel %vm430, %v1322, 0
      %v1349 = vsel %vm430, %v1323, 0
      %1351 = vmatprep.subr.bf16.mxu0 %v1331
      %1352 = vmatpush1.bf16.msra.mxu0 %v1328
      %1353 = vmatprep.subr.bf16.mxu0 0
      %1354 = vmatpush1.bf16.msra.mxu0 0
      %1355 = vmatprep.subr.bf16.mxu0 0
      %1356 = vmatpush1.bf16.msra.mxu0 0
      %1357 = vmatprep.subr.bf16.mxu0 0
      %1358 = vmatpush1.bf16.msra.mxu0 0
      %1359 = vmatprep.subr.bf16.mxu0 0
      %1360 = vmatpush1.bf16.msra.mxu0 0
      %1361 = vmatprep.subr.bf16.mxu0 0
      %1362 = vmatpush1.bf16.msra.mxu0 0
      %1363 = vmatprep.subr.bf16.mxu0 0
      %1364 = vmatpush1.bf16.msra.mxu0 0
      %1365 = vmatprep.subr.bf16.mxu0 0
      %1366 = vmatpush1.bf16.msra.mxu0 0
      %1367 = vmatprep.subr.bf16.mxu0 0
      %1368 = vmatpush1.bf16.msra.mxu0 0
      %1369 = vmatprep.subr.bf16.mxu0 0
      %1370 = vmatpush1.bf16.msra.mxu0 0
      %1371 = vmatprep.subr.bf16.mxu0 0
      %1372 = vmatpush1.bf16.msra.mxu0 0
      %1373 = vmatprep.subr.bf16.mxu0 0
      %1374 = vmatpush1.bf16.msra.mxu0 0
      %1375 = vmatprep.subr.bf16.mxu0 0
      %1376 = vmatpush1.bf16.msra.mxu0 0
      %1377 = vmatprep.subr.bf16.mxu0 0
      %1378 = vmatpush1.bf16.msra.mxu0 0
      %1379 = vmatprep.subr.bf16.mxu0 0
      %1380 = vmatpush1.bf16.msra.mxu0 0
      %1381 = vmatprep.subr.bf16.mxu0 0
      %1382 = vmatpush1.bf16.msra.mxu0 0
      %1383 = vmatprep.mubr.bf16.mxu0 0
      %1384 = vmatmul.mubr.bf16.gmra.mrb[0].mxu0 %v1325
      %v1385 = vpop.f32.mrb[0].mxu0
      %v1386 = vadd.f32 0.0, %v1385
      %v1387 = vpop.f32.mrb[0].mxu0
      %v1388 = vadd.f32 0.0, %v1387
      %v1389 = vpop.f32.mrb[0].mxu0
      %v1390 = vadd.f32 0.0, %v1389
      %v1391 = vpop.f32.mrb[0].mxu0
      %v1392 = vadd.f32 0.0, %v1391
      %1393 = vdwg.mxu0
      %1394 = vmatprep.subr.bf16.mxu0 %v1337
      %1395 = vmatpush1.bf16.msra.mxu0 %v1334
      %1396 = vmatprep.subr.bf16.mxu0 0
      %1397 = vmatpush1.bf16.msra.mxu0 0
      %1398 = vmatprep.subr.bf16.mxu0 0
      %1399 = vmatpush1.bf16.msra.mxu0 0
      %1400 = vmatprep.subr.bf16.mxu0 0
      %1401 = vmatpush1.bf16.msra.mxu0 0
      %1402 = vmatprep.subr.bf16.mxu0 0
      %1403 = vmatpush1.bf16.msra.mxu0 0
      %1404 = vmatprep.subr.bf16.mxu0 0
      %1405 = vmatpush1.bf16.msra.mxu0 0
      %1406 = vmatprep.subr.bf16.mxu0 0
      %1407 = vmatpush1.bf16.msra.mxu0 0
      %1408 = vmatprep.subr.bf16.mxu0 0
      %1409 = vmatpush1.bf16.msra.mxu0 0
      %1410 = vmatprep.subr.bf16.mxu0 0
      %1411 = vmatpush1.bf16.msra.mxu0 0
      %1412 = vmatprep.subr.bf16.mxu0 0
      %1413 = vmatpush1.bf16.msra.mxu0 0
      %1414 = vmatprep.subr.bf16.mxu0 0
      %1415 = vmatpush1.bf16.msra.mxu0 0
      %1416 = vmatprep.subr.bf16.mxu0 0
      %1417 = vmatpush1.bf16.msra.mxu0 0
      %1418 = vmatprep.subr.bf16.mxu0 0
      %1419 = vmatpush1.bf16.msra.mxu0 0
      %1420 = vmatprep.subr.bf16.mxu0 0
      %1421 = vmatpush1.bf16.msra.mxu0 0
      %1422 = vmatprep.subr.bf16.mxu0 0
      %1423 = vmatpush1.bf16.msra.mxu0 0
      %1424 = vmatprep.subr.bf16.mxu0 0
      %1425 = vmatpush1.bf16.msra.mxu0 0
      %1426 = vmatprep.mubr.bf16.mxu0 0
      %1427 = vmatmul.mubr.bf16.gmra.mrb[0].mxu0 %v1325
      %v1428 = vpop.f32.mrb[0].mxu0
      %v1429 = vadd.f32 0.0, %v1428
      %v1430 = vpop.f32.mrb[0].mxu0
      %v1431 = vadd.f32 0.0, %v1430
      %v1432 = vpop.f32.mrb[0].mxu0
      %v1433 = vadd.f32 0.0, %v1432
      %v1434 = vpop.f32.mrb[0].mxu0
      %v1435 = vadd.f32 0.0, %v1434
      %1436 = vdwg.mxu0
      %1437 = vmatprep.subr.bf16.mxu0 %v1343
      %1438 = vmatpush1.bf16.msra.mxu0 %v1340
      %1439 = vmatprep.subr.bf16.mxu0 0
      %1440 = vmatpush1.bf16.msra.mxu0 0
      %1441 = vmatprep.subr.bf16.mxu0 0
      %1442 = vmatpush1.bf16.msra.mxu0 0
      %1443 = vmatprep.subr.bf16.mxu0 0
      %1444 = vmatpush1.bf16.msra.mxu0 0
      %1445 = vmatprep.subr.bf16.mxu0 0
      %1446 = vmatpush1.bf16.msra.mxu0 0
      %1447 = vmatprep.subr.bf16.mxu0 0
      %1448 = vmatpush1.bf16.msra.mxu0 0
      %1449 = vmatprep.subr.bf16.mxu0 0
      %1450 = vmatpush1.bf16.msra.mxu0 0
      %1451 = vmatprep.subr.bf16.mxu0 0
      %1452 = vmatpush1.bf16.msra.mxu0 0
      %1453 = vmatprep.subr.bf16.mxu0 0
      %1454 = vmatpush1.bf16.msra.mxu0 0
      %1455 = vmatprep.subr.bf16.mxu0 0
      %1456 = vmatpush1.bf16.msra.mxu0 0
      %1457 = vmatprep.subr.bf16.mxu0 0
      %1458 = vmatpush1.bf16.msra.mxu0 0
      %1459 = vmatprep.subr.bf16.mxu0 0
      %1460 = vmatpush1.bf16.msra.mxu0 0
      %1461 = vmatprep.subr.bf16.mxu0 0
      %1462 = vmatpush1.bf16.msra.mxu0 0
      %1463 = vmatprep.subr.bf16.mxu0 0
      %1464 = vmatpush1.bf16.msra.mxu0 0
      %1465 = vmatprep.subr.bf16.mxu0 0
      %1466 = vmatpush1.bf16.msra.mxu0 0
      %1467 = vmatprep.subr.bf16.mxu0 0
      %1468 = vmatpush1.bf16.msra.mxu0 0
      %1469 = vmatprep.mubr.bf16.mxu0 0
      %1470 = vmatmul.mubr.bf16.gmra.mrb[0].mxu0 %v1325
      %v1471 = vpop.f32.mrb[0].mxu0
      %v1472 = vadd.f32 0.0, %v1471
      %v1473 = vpop.f32.mrb[0].mxu0
      %v1474 = vadd.f32 0.0, %v1473
      %v1475 = vpop.f32.mrb[0].mxu0
      %v1476 = vadd.f32 0.0, %v1475
      %v1477 = vpop.f32.mrb[0].mxu0
      %v1478 = vadd.f32 0.0, %v1477
      %1479 = vdwg.mxu0
      %1480 = vmatprep.subr.bf16.mxu0 %v1349
      %1481 = vmatpush1.bf16.msra.mxu0 %v1346
      %1482 = vmatprep.subr.bf16.mxu0 0
      %1483 = vmatpush1.bf16.msra.mxu0 0
      %1484 = vmatprep.subr.bf16.mxu0 0
      %1485 = vmatpush1.bf16.msra.mxu0 0
      %1486 = vmatprep.subr.bf16.mxu0 0
      %1487 = vmatpush1.bf16.msra.mxu0 0
      %1488 = vmatprep.subr.bf16.mxu0 0
      %1489 = vmatpush1.bf16.msra.mxu0 0
      %1490 = vmatprep.subr.bf16.mxu0 0
      %1491 = vmatpush1.bf16.msra.mxu0 0
      %1492 = vmatprep.subr.bf16.mxu0 0
      %1493 = vmatpush1.bf16.msra.mxu0 0
      %1494 = vmatprep.subr.bf16.mxu0 0
      %1495 = vmatpush1.bf16.msra.mxu0 0
      %1496 = vmatprep.subr.bf16.mxu0 0
      %1497 = vmatpush1.bf16.msra.mxu0 0
      %1498 = vmatprep.subr.bf16.mxu0 0
      %1499 = vmatpush1.bf16.msra.mxu0 0
      %1500 = vmatprep.subr.bf16.mxu0 0
      %1501 = vmatpush1.bf16.msra.mxu0 0
      %1502 = vmatprep.subr.bf16.mxu0 0
      %1503 = vmatpush1.bf16.msra.mxu0 0
      %1504 = vmatprep.subr.bf16.mxu0 0
      %1505 = vmatpush1.bf16.msra.mxu0 0
      %1506 = vmatprep.subr.bf16.mxu0 0
      %1507 = vmatpush1.bf16.msra.mxu0 0
      %1508 = vmatprep.subr.bf16.mxu0 0
      %1509 = vmatpush1.bf16.msra.mxu0 0
      %1510 = vmatprep.subr.bf16.mxu0 0
      %1511 = vmatpush1.bf16.msra.mxu0 0
      %1512 = vmatprep.mubr.bf16.mxu0 0
      %1513 = vmatmul.mubr.bf16.gmra.mrb[0].mxu0 %v1325
      %v1514 = vpop.f32.mrb[0].mxu0
      %v1515 = vadd.f32 0.0, %v1514
      %v1516 = vpop.f32.mrb[0].mxu0
      %v1517 = vadd.f32 0.0, %v1516
      %v1518 = vpop.f32.mrb[0].mxu0
      %v1519 = vadd.f32 0.0, %v1518
      %v1520 = vpop.f32.mrb[0].mxu0
      %v1521 = vadd.f32 0.0, %v1520
      %1522 = vdwg.mxu0
      %v1523 = vadd.f32 %v1215, %v1386
      %v1524 = vadd.f32 %v1216, %v1388
      %v1525 = vadd.f32 %v1217, %v1429
      %v1526 = vadd.f32 %v1218, %v1431
      %v1527 = vadd.f32 %v1219, %v1472
      %v1528 = vadd.f32 %v1220, %v1474
      %v1529 = vadd.f32 %v1221, %v1515
      %v1530 = vadd.f32 %v1222, %v1517
      %v1531 = vadd.f32 %v1223, %v1390
      %v1532 = vadd.f32 %v1224, %v1392
      %v1533 = vadd.f32 %v1225, %v1433
      %v1534 = vadd.f32 %v1226, %v1435
      %v1535 = vadd.f32 %v1227, %v1476
      %v1536 = vadd.f32 %v1228, %v1478
      %v1537 = vadd.f32 %v1229, %v1519
      %v1538 = vadd.f32 %v1230, %v1521
      %s1539 = scalar_lea.vmem %s1, 32
      %v1540 = vld [vmem:[%s1539] sm:$0xf]
      %v1541 = vld [vmem:[%s1539 + $0x4] sm:$0x3]
      %v1544 = vunpack.c.l.b16 %v1540
      %v1545 = vunpack.c.l.b16 %v1541
      %v1546 = vpack.c.b16 %v1545, %v1544
      %v1552 = vunpack.c.l.b16 %v1231
      %v1553 = vunpack.c.h.b16 %v1231
      %v1554 = vunpack.c.l.b16 %v1232
      %v1555 = vunpack.c.h.b16 %v1232
      %v1556 = vunpack.c.l.b16 %v1233
      %v1557 = vunpack.c.h.b16 %v1233
      %v1558 = vunpack.c.l.b16 %v1234
      %v1559 = vunpack.c.h.b16 %v1234
      %v1560 = vunpack.c.l.b16 %v1235
      %v1561 = vpack.c.b16 %v1552, %v1552
      %v1562 = vpack.c.b16 %v1553, %v1553
      %v1563 = vpack.c.b16 %v1554, %v1554
      %v1564 = vpack.c.b16 %v1555, %v1555
      %v1565 = vpack.c.b16 %v1556, %v1556
      %v1566 = vpack.c.b16 %v1557, %v1557
      %v1567 = vpack.c.b16 %v1558, %v1558
      %v1568 = vpack.c.b16 %v1559, %v1559
      %v1569 = vpack.c.b16 %v1560, %v1560
      %1570 = vrot.lane.b32.xlu0 %v1561, 95
      %v1571 = vpop.permute.xlu0 %1570
      %1572 = vrot.lane.b32.xlu0 %v1562, 95
      %v1573 = vpop.permute.xlu0 %1572
      %1574 = vrot.lane.b32.xlu0 %v1563, 95
      %v1575 = vpop.permute.xlu0 %1574
      %1576 = vrot.lane.b32.xlu0 %v1564, 95
      %v1577 = vpop.permute.xlu0 %1576
      %1578 = vrot.lane.b32.xlu0 %v1565, 95
      %v1579 = vpop.permute.xlu0 %1578
      %1580 = vrot.lane.b32.xlu0 %v1566, 95
      %v1581 = vpop.permute.xlu0 %1580
      %1582 = vrot.lane.b32.xlu0 %v1567, 95
      %v1583 = vpop.permute.xlu0 %1582
      %1584 = vrot.lane.b32.xlu0 %v1568, 95
      %v1585 = vpop.permute.xlu0 %1584
      %1586 = vrot.lane.b32.xlu0 %v1569, 95
      %v1587 = vpop.permute.xlu0 %1586
      %vm1588 = vcmask 777216
      %v1589 = vsel %vm1588, %v1571, %v1573
      %v1590 = vsel %vm1588, %v1573, %v1575
      %v1591 = vsel %vm1588, %v1575, %v1577
      %v1592 = vsel %vm1588, %v1577, %v1579
      %v1593 = vsel %vm1588, %v1579, %v1581
      %v1594 = vsel %vm1588, %v1581, %v1583
      %v1595 = vsel %vm1588, %v1583, %v1585
      %v1596 = vsel %vm1588, %v1585, %v1587
      %v1598 = vsel %vm426, %v1546, 0
      %v1601 = vsel %vm430, %v1589, 0
      %v1604 = vsel %vm430, %v1590, 0
      %v1607 = vsel %vm430, %v1591, 0
      %v1610 = vsel %vm430, %v1592, 0
      %v1613 = vsel %vm430, %v1593, 0
      %v1616 = vsel %vm430, %v1594, 0
      %v1619 = vsel %vm430, %v1595, 0
      %v1622 = vsel %vm430, %v1596, 0
      %1624 = vmatprep.subr.bf16.mxu0 %v1604
      %1625 = vmatpush1.bf16.msra.mxu0 %v1601
      %1626 = vmatprep.subr.bf16.mxu0 0
      %1627 = vmatpush1.bf16.msra.mxu0 0
      %1628 = vmatprep.subr.bf16.mxu0 0
      %1629 = vmatpush1.bf16.msra.mxu0 0
      %1630 = vmatprep.subr.bf16.mxu0 0
      %1631 = vmatpush1.bf16.msra.mxu0 0
      %1632 = vmatprep.subr.bf16.mxu0 0
      %1633 = vmatpush1.bf16.msra.mxu0 0
      %1634 = vmatprep.subr.bf16.mxu0 0
      %1635 = vmatpush1.bf16.msra.mxu0 0
      %1636 = vmatprep.subr.bf16.mxu0 0
      %1637 = vmatpush1.bf16.msra.mxu0 0
      %1638 = vmatprep.subr.bf16.mxu0 0
      %1639 = vmatpush1.bf16.msra.mxu0 0
      %1640 = vmatprep.subr.bf16.mxu0 0
      %1641 = vmatpush1.bf16.msra.mxu0 0
      %1642 = vmatprep.subr.bf16.mxu0 0
      %1643 = vmatpush1.bf16.msra.mxu0 0
      %1644 = vmatprep.subr.bf16.mxu0 0
      %1645 = vmatpush1.bf16.msra.mxu0 0
      %1646 = vmatprep.subr.bf16.mxu0 0
      %1647 = vmatpush1.bf16.msra.mxu0 0
      %1648 = vmatprep.subr.bf16.mxu0 0
      %1649 = vmatpush1.bf16.msra.mxu0 0
      %1650 = vmatprep.subr.bf16.mxu0 0
      %1651 = vmatpush1.bf16.msra.mxu0 0
      %1652 = vmatprep.subr.bf16.mxu0 0
      %1653 = vmatpush1.bf16.msra.mxu0 0
      %1654 = vmatprep.subr.bf16.mxu0 0
      %1655 = vmatpush1.bf16.msra.mxu0 0
      %1656 = vmatprep.mubr.bf16.mxu0 0
      %1657 = vmatmul.mubr.bf16.gmra.mrb[0].mxu0 %v1598
      %v1658 = vpop.f32.mrb[0].mxu0
      %v1659 = vadd.f32 0.0, %v1658
      %v1660 = vpop.f32.mrb[0].mxu0
      %v1661 = vadd.f32 0.0, %v1660
      %v1662 = vpop.f32.mrb[0].mxu0
      %v1663 = vadd.f32 0.0, %v1662
      %v1664 = vpop.f32.mrb[0].mxu0
      %v1665 = vadd.f32 0.0, %v1664
      %1666 = vdwg.mxu0
      %1667 = vmatprep.subr.bf16.mxu0 %v1610
      %1668 = vmatpush1.bf16.msra.mxu0 %v1607
      %1669 = vmatprep.subr.bf16.mxu0 0
      %1670 = vmatpush1.bf16.msra.mxu0 0
      %1671 = vmatprep.subr.bf16.mxu0 0
      %1672 = vmatpush1.bf16.msra.mxu0 0
      %1673 = vmatprep.subr.bf16.mxu0 0
      %1674 = vmatpush1.bf16.msra.mxu0 0
      %1675 = vmatprep.subr.bf16.mxu0 0
      %1676 = vmatpush1.bf16.msra.mxu0 0
      %1677 = vmatprep.subr.bf16.mxu0 0
      %1678 = vmatpush1.bf16.msra.mxu0 0
      %1679 = vmatprep.subr.bf16.mxu0 0
      %1680 = vmatpush1.bf16.msra.mxu0 0
      %1681 = vmatprep.subr.bf16.mxu0 0
      %1682 = vmatpush1.bf16.msra.mxu0 0
      %1683 = vmatprep.subr.bf16.mxu0 0
      %1684 = vmatpush1.bf16.msra.mxu0 0
      %1685 = vmatprep.subr.bf16.mxu0 0
      %1686 = vmatpush1.bf16.msra.mxu0 0
      %1687 = vmatprep.subr.bf16.mxu0 0
      %1688 = vmatpush1.bf16.msra.mxu0 0
      %1689 = vmatprep.subr.bf16.mxu0 0
      %1690 = vmatpush1.bf16.msra.mxu0 0
      %1691 = vmatprep.subr.bf16.mxu0 0
      %1692 = vmatpush1.bf16.msra.mxu0 0
      %1693 = vmatprep.subr.bf16.mxu0 0
      %1694 = vmatpush1.bf16.msra.mxu0 0
      %1695 = vmatprep.subr.bf16.mxu0 0
      %1696 = vmatpush1.bf16.msra.mxu0 0
      %1697 = vmatprep.subr.bf16.mxu0 0
      %1698 = vmatpush1.bf16.msra.mxu0 0
      %1699 = vmatprep.mubr.bf16.mxu0 0
      %1700 = vmatmul.mubr.bf16.gmra.mrb[0].mxu0 %v1598
      %v1701 = vpop.f32.mrb[0].mxu0
      %v1702 = vadd.f32 0.0, %v1701
      %v1703 = vpop.f32.mrb[0].mxu0
      %v1704 = vadd.f32 0.0, %v1703
      %v1705 = vpop.f32.mrb[0].mxu0
      %v1706 = vadd.f32 0.0, %v1705
      %v1707 = vpop.f32.mrb[0].mxu0
      %v1708 = vadd.f32 0.0, %v1707
      %1709 = vdwg.mxu0
      %1710 = vmatprep.subr.bf16.mxu0 %v1616
      %1711 = vmatpush1.bf16.msra.mxu0 %v1613
      %1712 = vmatprep.subr.bf16.mxu0 0
      %1713 = vmatpush1.bf16.msra.mxu0 0
      %1714 = vmatprep.subr.bf16.mxu0 0
      %1715 = vmatpush1.bf16.msra.mxu0 0
      %1716 = vmatprep.subr.bf16.mxu0 0
      %1717 = vmatpush1.bf16.msra.mxu0 0
      %1718 = vmatprep.subr.bf16.mxu0 0
      %1719 = vmatpush1.bf16.msra.mxu0 0
      %1720 = vmatprep.subr.bf16.mxu0 0
      %1721 = vmatpush1.bf16.msra.mxu0 0
      %1722 = vmatprep.subr.bf16.mxu0 0
      %1723 = vmatpush1.bf16.msra.mxu0 0
      %1724 = vmatprep.subr.bf16.mxu0 0
      %1725 = vmatpush1.bf16.msra.mxu0 0
      %1726 = vmatprep.subr.bf16.mxu0 0
      %1727 = vmatpush1.bf16.msra.mxu0 0
      %1728 = vmatprep.subr.bf16.mxu0 0
      %1729 = vmatpush1.bf16.msra.mxu0 0
      %1730 = vmatprep.subr.bf16.mxu0 0
      %1731 = vmatpush1.bf16.msra.mxu0 0
      %1732 = vmatprep.subr.bf16.mxu0 0
      %1733 = vmatpush1.bf16.msra.mxu0 0
      %1734 = vmatprep.subr.bf16.mxu0 0
      %1735 = vmatpush1.bf16.msra.mxu0 0
      %1736 = vmatprep.subr.bf16.mxu0 0
      %1737 = vmatpush1.bf16.msra.mxu0 0
      %1738 = vmatprep.subr.bf16.mxu0 0
      %1739 = vmatpush1.bf16.msra.mxu0 0
      %1740 = vmatprep.subr.bf16.mxu0 0
      %1741 = vmatpush1.bf16.msra.mxu0 0
      %1742 = vmatprep.mubr.bf16.mxu0 0
      %1743 = vmatmul.mubr.bf16.gmra.mrb[0].mxu0 %v1598
      %v1744 = vpop.f32.mrb[0].mxu0
      %v1745 = vadd.f32 0.0, %v1744
      %v1746 = vpop.f32.mrb[0].mxu0
      %v1747 = vadd.f32 0.0, %v1746
      %v1748 = vpop.f32.mrb[0].mxu0
      %v1749 = vadd.f32 0.0, %v1748
      %v1750 = vpop.f32.mrb[0].mxu0
      %v1751 = vadd.f32 0.0, %v1750
      %1752 = vdwg.mxu0
      %1753 = vmatprep.subr.bf16.mxu0 %v1622
      %1754 = vmatpush1.bf16.msra.mxu0 %v1619
      %1755 = vmatprep.subr.bf16.mxu0 0
      %1756 = vmatpush1.bf16.msra.mxu0 0
      %1757 = vmatprep.subr.bf16.mxu0 0
      %1758 = vmatpush1.bf16.msra.mxu0 0
      %1759 = vmatprep.subr.bf16.mxu0 0
      %1760 = vmatpush1.bf16.msra.mxu0 0
      %1761 = vmatprep.subr.bf16.mxu0 0
      %1762 = vmatpush1.bf16.msra.mxu0 0
      %1763 = vmatprep.subr.bf16.mxu0 0
      %1764 = vmatpush1.bf16.msra.mxu0 0
      %1765 = vmatprep.subr.bf16.mxu0 0
      %1766 = vmatpush1.bf16.msra.mxu0 0
      %1767 = vmatprep.subr.bf16.mxu0 0
      %1768 = vmatpush1.bf16.msra.mxu0 0
      %1769 = vmatprep.subr.bf16.mxu0 0
      %1770 = vmatpush1.bf16.msra.mxu0 0
      %1771 = vmatprep.subr.bf16.mxu0 0
      %1772 = vmatpush1.bf16.msra.mxu0 0
      %1773 = vmatprep.subr.bf16.mxu0 0
      %1774 = vmatpush1.bf16.msra.mxu0 0
      %1775 = vmatprep.subr.bf16.mxu0 0
      %1776 = vmatpush1.bf16.msra.mxu0 0
      %1777 = vmatprep.subr.bf16.mxu0 0
      %1778 = vmatpush1.bf16.msra.mxu0 0
      %1779 = vmatprep.subr.bf16.mxu0 0
      %1780 = vmatpush1.bf16.msra.mxu0 0
      %1781 = vmatprep.subr.bf16.mxu0 0
      %1782 = vmatpush1.bf16.msra.mxu0 0
      %1783 = vmatprep.subr.bf16.mxu0 0
      %1784 = vmatpush1.bf16.msra.mxu0 0
      %1785 = vmatprep.mubr.bf16.mxu0 0
      %1786 = vmatmul.mubr.bf16.gmra.mrb[0].mxu0 %v1598
      %v1787 = vpop.f32.mrb[0].mxu0
      %v1788 = vadd.f32 0.0, %v1787
      %v1789 = vpop.f32.mrb[0].mxu0
      %v1790 = vadd.f32 0.0, %v1789
      %v1791 = vpop.f32.mrb[0].mxu0
      %v1792 = vadd.f32 0.0, %v1791
      %v1793 = vpop.f32.mrb[0].mxu0
      %v1794 = vadd.f32 0.0, %v1793
      %1795 = vdwg.mxu0
      %v1796 = vadd.f32 %v1523, %v1659
      %v1797 = vadd.f32 %v1524, %v1661
      %v1798 = vadd.f32 %v1525, %v1702
      %v1799 = vadd.f32 %v1526, %v1704
      %v1800 = vadd.f32 %v1527, %v1745
      %v1801 = vadd.f32 %v1528, %v1747
      %v1802 = vadd.f32 %v1529, %v1788
      %v1803 = vadd.f32 %v1530, %v1790
      %v1804 = vadd.f32 %v1531, %v1663
      %v1805 = vadd.f32 %v1532, %v1665
      %v1806 = vadd.f32 %v1533, %v1706
      %v1807 = vadd.f32 %v1534, %v1708
      %v1808 = vadd.f32 %v1535, %v1749
      %v1809 = vadd.f32 %v1536, %v1751
      %v1810 = vadd.f32 %v1537, %v1792
      %v1811 = vadd.f32 %v1538, %v1794
      %1812 = vrot.lane.b32.xlu0 %v923, 34
      %v1813 = vpop.permute.xlu0 %1812
      %1814 = vrot.lane.b32.xlu0 %v924, 34
      %v1815 = vpop.permute.xlu0 %1814
      %1816 = vrot.lane.b32.xlu0 %v925, 34
      %v1817 = vpop.permute.xlu0 %1816
      %1818 = vrot.lane.b32.xlu0 %v926, 34
      %v1819 = vpop.permute.xlu0 %1818
      %v1820 = vrot.slane %v1813, 4
      %v1821 = vrot.slane %v1815, 4
      %v1822 = vrot.slane %v1817, 4
      %v1823 = vrot.slane %v1819, 4
      %vm1824 = vcmask 277504
      %v1825 = vsel %vm1824, %v1820, %v1813
      %v1826 = vsel %vm941, %v1820, %v1821
      %v1827 = vsel %vm1824, %v1826, %v1815
      %v1828 = vsel %vm941, %v1821, %v1822
      %v1829 = vsel %vm1824, %v1828, %v1817
      %v1830 = vsel %vm941, %v1822, %v1823
      %v1831 = vsel %vm1824, %v1830, %v1819
      %v1837 = vmul.bf16 %v1231, %v1825
      %v1838 = vmul.bf16 %v1232, %v1827
      %v1839 = vmul.bf16 %v1233, %v1829
      %v1840 = vmul.bf16 %v1234, %v1831
      %v1841 = vmul.bf16 %v1235, %v1823
      %s1842 = scalar_lea.vmem %s1, 40
      %v1843 = vld [vmem:[%s1842] sm:$0xf]
      %v1844 = vld [vmem:[%s1842 + $0x4] sm:$0x3]
      %v1847 = vunpack.c.l.b16 %v1843
      %v1848 = vunpack.c.l.b16 %v1844
      %v1849 = vpack.c.b16 %v1848, %v1847
      %v1855 = vunpack.c.l.b16 %v1837
      %v1856 = vunpack.c.h.b16 %v1837
      %v1857 = vunpack.c.l.b16 %v1838
      %v1858 = vunpack.c.h.b16 %v1838
      %v1859 = vunpack.c.l.b16 %v1839
      %v1860 = vunpack.c.h.b16 %v1839
      %v1861 = vunpack.c.l.b16 %v1840
      %v1862 = vunpack.c.h.b16 %v1840
      %v1863 = vunpack.c.l.b16 %v1841
      %v1864 = vpack.c.b16 %v1855, %v1855
      %v1865 = vpack.c.b16 %v1856, %v1856
      %v1866 = vpack.c.b16 %v1857, %v1857
      %v1867 = vpack.c.b16 %v1858, %v1858
      %v1868 = vpack.c.b16 %v1859, %v1859
      %v1869 = vpack.c.b16 %v1860, %v1860
      %v1870 = vpack.c.b16 %v1861, %v1861
      %v1871 = vpack.c.b16 %v1862, %v1862
      %v1872 = vpack.c.b16 %v1863, %v1863
      %1873 = vrot.lane.b32.xlu0 %v1864, 94
      %v1874 = vpop.permute.xlu0 %1873
      %1875 = vrot.lane.b32.xlu0 %v1865, 94
      %v1876 = vpop.permute.xlu0 %1875
      %1877 = vrot.lane.b32.xlu0 %v1866, 94
      %v1878 = vpop.permute.xlu0 %1877
      %1879 = vrot.lane.b32.xlu0 %v1867, 94
      %v1880 = vpop.permute.xlu0 %1879
      %1881 = vrot.lane.b32.xlu0 %v1868, 94
      %v1882 = vpop.permute.xlu0 %1881
      %1883 = vrot.lane.b32.xlu0 %v1869, 94
      %v1884 = vpop.permute.xlu0 %1883
      %1885 = vrot.lane.b32.xlu0 %v1870, 94
      %v1886 = vpop.permute.xlu0 %1885
      %1887 = vrot.lane.b32.xlu0 %v1871, 94
      %v1888 = vpop.permute.xlu0 %1887
      %1889 = vrot.lane.b32.xlu0 %v1872, 94
      %v1890 = vpop.permute.xlu0 %1889
      %vm1891 = vcmask 769024
      %v1892 = vsel %vm1891, %v1874, %v1876
      %v1893 = vsel %vm1891, %v1876, %v1878
      %v1894 = vsel %vm1891, %v1878, %v1880
      %v1895 = vsel %vm1891, %v1880, %v1882
      %v1896 = vsel %vm1891, %v1882, %v1884
      %v1897 = vsel %vm1891, %v1884, %v1886
      %v1898 = vsel %vm1891, %v1886, %v1888
      %v1899 = vsel %vm1891, %v1888, %v1890
      %v1901 = vsel %vm426, %v1849, 0
      %v1904 = vsel %vm430, %v1892, 0
      %v1907 = vsel %vm430, %v1893, 0
      %v1910 = vsel %vm430, %v1894, 0
      %v1913 = vsel %vm430, %v1895, 0
      %v1916 = vsel %vm430, %v1896, 0
      %v1919 = vsel %vm430, %v1897, 0
      %v1922 = vsel %vm430, %v1898, 0
      %v1925 = vsel %vm430, %v1899, 0
      %1927 = vmatprep.subr.bf16.mxu0 %v1907
      %1928 = vmatpush1.bf16.msra.mxu0 %v1904
      %1929 = vmatprep.subr.bf16.mxu0 0
      %1930 = vmatpush1.bf16.msra.mxu0 0
      %1931 = vmatprep.subr.bf16.mxu0 0
      %1932 = vmatpush1.bf16.msra.mxu0 0
      %1933 = vmatprep.subr.bf16.mxu0 0
      %1934 = vmatpush1.bf16.msra.mxu0 0
      %1935 = vmatprep.subr.bf16.mxu0 0
      %1936 = vmatpush1.bf16.msra.mxu0 0
      %1937 = vmatprep.subr.bf16.mxu0 0
      %1938 = vmatpush1.bf16.msra.mxu0 0
      %1939 = vmatprep.subr.bf16.mxu0 0
      %1940 = vmatpush1.bf16.msra.mxu0 0
      %1941 = vmatprep.subr.bf16.mxu0 0
      %1942 = vmatpush1.bf16.msra.mxu0 0
      %1943 = vmatprep.subr.bf16.mxu0 0
      %1944 = vmatpush1.bf16.msra.mxu0 0
      %1945 = vmatprep.subr.bf16.mxu0 0
      %1946 = vmatpush1.bf16.msra.mxu0 0
      %1947 = vmatprep.subr.bf16.mxu0 0
      %1948 = vmatpush1.bf16.msra.mxu0 0
      %1949 = vmatprep.subr.bf16.mxu0 0
      %1950 = vmatpush1.bf16.msra.mxu0 0
      %1951 = vmatprep.subr.bf16.mxu0 0
      %1952 = vmatpush1.bf16.msra.mxu0 0
      %1953 = vmatprep.subr.bf16.mxu0 0
      %1954 = vmatpush1.bf16.msra.mxu0 0
      %1955 = vmatprep.subr.bf16.mxu0 0
      %1956 = vmatpush1.bf16.msra.mxu0 0
      %1957 = vmatprep.subr.bf16.mxu0 0
      %1958 = vmatpush1.bf16.msra.mxu0 0
      %1959 = vmatprep.mubr.bf16.mxu0 0
      %1960 = vmatmul.mubr.bf16.gmra.mrb[0].mxu0 %v1901
      %v1961 = vpop.f32.mrb[0].mxu0
      %v1962 = vadd.f32 0.0, %v1961
      %v1963 = vpop.f32.mrb[0].mxu0
      %v1964 = vadd.f32 0.0, %v1963
      %v1965 = vpop.f32.mrb[0].mxu0
      %v1966 = vadd.f32 0.0, %v1965
      %v1967 = vpop.f32.mrb[0].mxu0
      %v1968 = vadd.f32 0.0, %v1967
      %1969 = vdwg.mxu0
      %1970 = vmatprep.subr.bf16.mxu0 %v1913
      %1971 = vmatpush1.bf16.msra.mxu0 %v1910
      %1972 = vmatprep.subr.bf16.mxu0 0
      %1973 = vmatpush1.bf16.msra.mxu0 0
      %1974 = vmatprep.subr.bf16.mxu0 0
      %1975 = vmatpush1.bf16.msra.mxu0 0
      %1976 = vmatprep.subr.bf16.mxu0 0
      %1977 = vmatpush1.bf16.msra.mxu0 0
      %1978 = vmatprep.subr.bf16.mxu0 0
      %1979 = vmatpush1.bf16.msra.mxu0 0
      %1980 = vmatprep.subr.bf16.mxu0 0
      %1981 = vmatpush1.bf16.msra.mxu0 0
      %1982 = vmatprep.subr.bf16.mxu0 0
      %1983 = vmatpush1.bf16.msra.mxu0 0
      %1984 = vmatprep.subr.bf16.mxu0 0
      %1985 = vmatpush1.bf16.msra.mxu0 0
      %1986 = vmatprep.subr.bf16.mxu0 0
      %1987 = vmatpush1.bf16.msra.mxu0 0
      %1988 = vmatprep.subr.bf16.mxu0 0
      %1989 = vmatpush1.bf16.msra.mxu0 0
      %1990 = vmatprep.subr.bf16.mxu0 0
      %1991 = vmatpush1.bf16.msra.mxu0 0
      %1992 = vmatprep.subr.bf16.mxu0 0
      %1993 = vmatpush1.bf16.msra.mxu0 0
      %1994 = vmatprep.subr.bf16.mxu0 0
      %1995 = vmatpush1.bf16.msra.mxu0 0
      %1996 = vmatprep.subr.bf16.mxu0 0
      %1997 = vmatpush1.bf16.msra.mxu0 0
      %1998 = vmatprep.subr.bf16.mxu0 0
      %1999 = vmatpush1.bf16.msra.mxu0 0
      %2000 = vmatprep.subr.bf16.mxu0 0
      %2001 = vmatpush1.bf16.msra.mxu0 0
      %2002 = vmatprep.mubr.bf16.mxu0 0
      %2003 = vmatmul.mubr.bf16.gmra.mrb[0].mxu0 %v1901
      %v2004 = vpop.f32.mrb[0].mxu0
      %v2005 = vadd.f32 0.0, %v2004
      %v2006 = vpop.f32.mrb[0].mxu0
      %v2007 = vadd.f32 0.0, %v2006
      %v2008 = vpop.f32.mrb[0].mxu0
      %v2009 = vadd.f32 0.0, %v2008
      %v2010 = vpop.f32.mrb[0].mxu0
      %v2011 = vadd.f32 0.0, %v2010
      %2012 = vdwg.mxu0
      %2013 = vmatprep.subr.bf16.mxu0 %v1919
      %2014 = vmatpush1.bf16.msra.mxu0 %v1916
      %2015 = vmatprep.subr.bf16.mxu0 0
      %2016 = vmatpush1.bf16.msra.mxu0 0
      %2017 = vmatprep.subr.bf16.mxu0 0
      %2018 = vmatpush1.bf16.msra.mxu0 0
      %2019 = vmatprep.subr.bf16.mxu0 0
      %2020 = vmatpush1.bf16.msra.mxu0 0
      %2021 = vmatprep.subr.bf16.mxu0 0
      %2022 = vmatpush1.bf16.msra.mxu0 0
      %2023 = vmatprep.subr.bf16.mxu0 0
      %2024 = vmatpush1.bf16.msra.mxu0 0
      %2025 = vmatprep.subr.bf16.mxu0 0
      %2026 = vmatpush1.bf16.msra.mxu0 0
      %2027 = vmatprep.subr.bf16.mxu0 0
      %2028 = vmatpush1.bf16.msra.mxu0 0
      %2029 = vmatprep.subr.bf16.mxu0 0
      %2030 = vmatpush1.bf16.msra.mxu0 0
      %2031 = vmatprep.subr.bf16.mxu0 0
      %2032 = vmatpush1.bf16.msra.mxu0 0
      %2033 = vmatprep.subr.bf16.mxu0 0
      %2034 = vmatpush1.bf16.msra.mxu0 0
      %2035 = vmatprep.subr.bf16.mxu0 0
      %2036 = vmatpush1.bf16.msra.mxu0 0
      %2037 = vmatprep.subr.bf16.mxu0 0
      %2038 = vmatpush1.bf16.msra.mxu0 0
      %2039 = vmatprep.subr.bf16.mxu0 0
      %2040 = vmatpush1.bf16.msra.mxu0 0
      %2041 = vmatprep.subr.bf16.mxu0 0
      %2042 = vmatpush1.bf16.msra.mxu0 0
      %2043 = vmatprep.subr.bf16.mxu0 0
      %2044 = vmatpush1.bf16.msra.mxu0 0
      %2045 = vmatprep.mubr.bf16.mxu0 0
      %2046 = vmatmul.mubr.bf16.gmra.mrb[0].mxu0 %v1901
      %v2047 = vpop.f32.mrb[0].mxu0
      %v2048 = vadd.f32 0.0, %v2047
      %v2049 = vpop.f32.mrb[0].mxu0
      %v2050 = vadd.f32 0.0, %v2049
      %v2051 = vpop.f32.mrb[0].mxu0
      %v2052 = vadd.f32 0.0, %v2051
      %v2053 = vpop.f32.mrb[0].mxu0
      %v2054 = vadd.f32 0.0, %v2053
      %2055 = vdwg.mxu0
      %2056 = vmatprep.subr.bf16.mxu0 %v1925
      %2057 = vmatpush1.bf16.msra.mxu0 %v1922
      %2058 = vmatprep.subr.bf16.mxu0 0
      %2059 = vmatpush1.bf16.msra.mxu0 0
      %2060 = vmatprep.subr.bf16.mxu0 0
      %2061 = vmatpush1.bf16.msra.mxu0 0
      %2062 = vmatprep.subr.bf16.mxu0 0
      %2063 = vmatpush1.bf16.msra.mxu0 0
      %2064 = vmatprep.subr.bf16.mxu0 0
      %2065 = vmatpush1.bf16.msra.mxu0 0
      %2066 = vmatprep.subr.bf16.mxu0 0
      %2067 = vmatpush1.bf16.msra.mxu0 0
      %2068 = vmatprep.subr.bf16.mxu0 0
      %2069 = vmatpush1.bf16.msra.mxu0 0
      %2070 = vmatprep.subr.bf16.mxu0 0
      %2071 = vmatpush1.bf16.msra.mxu0 0
      %2072 = vmatprep.subr.bf16.mxu0 0
      %2073 = vmatpush1.bf16.msra.mxu0 0
      %2074 = vmatprep.subr.bf16.mxu0 0
      %2075 = vmatpush1.bf16.msra.mxu0 0
      %2076 = vmatprep.subr.bf16.mxu0 0
      %2077 = vmatpush1.bf16.msra.mxu0 0
      %2078 = vmatprep.subr.bf16.mxu0 0
      %2079 = vmatpush1.bf16.msra.mxu0 0
      %2080 = vmatprep.subr.bf16.mxu0 0
      %2081 = vmatpush1.bf16.msra.mxu0 0
      %2082 = vmatprep.subr.bf16.mxu0 0
      %2083 = vmatpush1.bf16.msra.mxu0 0
      %2084 = vmatprep.subr.bf16.mxu0 0
      %2085 = vmatpush1.bf16.msra.mxu0 0
      %2086 = vmatprep.subr.bf16.mxu0 0
      %2087 = vmatpush1.bf16.msra.mxu0 0
      %2088 = vmatprep.mubr.bf16.mxu0 0
      %2089 = vmatmul.mubr.bf16.gmra.mrb[0].mxu0 %v1901
      %v2090 = vpop.f32.mrb[0].mxu0
      %v2091 = vadd.f32 0.0, %v2090
      %v2092 = vpop.f32.mrb[0].mxu0
      %v2093 = vadd.f32 0.0, %v2092
      %v2094 = vpop.f32.mrb[0].mxu0
      %v2095 = vadd.f32 0.0, %v2094
      %v2096 = vpop.f32.mrb[0].mxu0
      %v2097 = vadd.f32 0.0, %v2096
      %2098 = vdwg.mxu0
      %v2099 = vadd.f32 %v1796, %v1962
      %v2100 = vadd.f32 %v1797, %v1964
      %v2101 = vadd.f32 %v1798, %v2005
      %v2102 = vadd.f32 %v1799, %v2007
      %v2103 = vadd.f32 %v1800, %v2048
      %v2104 = vadd.f32 %v1801, %v2050
      %v2105 = vadd.f32 %v1802, %v2091
      %v2106 = vadd.f32 %v1803, %v2093
      %v2107 = vadd.f32 %v1804, %v1966
      %v2108 = vadd.f32 %v1805, %v1968
      %v2109 = vadd.f32 %v1806, %v2009
      %v2110 = vadd.f32 %v1807, %v2011
      %v2111 = vadd.f32 %v1808, %v2052
      %v2112 = vadd.f32 %v1809, %v2054
      %v2113 = vadd.f32 %v1810, %v2095
      %v2114 = vadd.f32 %v1811, %v2097
      %2115 = vrot.lane.b32.xlu0 %v353, 64
      %v2116 = vpop.permute.xlu0 %2115
      %2117 = vrot.lane.b32.xlu0 %v354, 64
      %v2118 = vpop.permute.xlu0 %2117
      %2119 = vrot.lane.b32.xlu0 %v355, 64
      %v2120 = vpop.permute.xlu0 %2119
      %2121 = vrot.lane.b32.xlu0 %v356, 64
      %v2122 = vpop.permute.xlu0 %2121
      %v2123 = vrot.slane %v2116, 4
      %v2124 = vrot.slane %v2118, 4
      %v2125 = vrot.slane %v2120, 4
      %v2126 = vrot.slane %v2122, 4
      %vm2127 = vcmask 523264
      %v2128 = vsel %vm2127, %v2123, %v2116
      %v2129 = vsel %vm941, %v2123, %v2124
      %v2130 = vsel %vm2127, %v2129, %v2118
      %v2131 = vsel %vm941, %v2124, %v2125
      %v2132 = vsel %vm2127, %v2131, %v2120
      %v2133 = vsel %vm941, %v2125, %v2126
      %v2134 = vsel %vm2127, %v2133, %v2122
      %v2140 = vmul.bf16 %v1231, %v2128
      %v2141 = vmul.bf16 %v1232, %v2130
      %v2142 = vmul.bf16 %v1233, %v2132
      %v2143 = vmul.bf16 %v1234, %v2134
      %v2144 = vmul.bf16 %v1235, %v2126
      %s2145 = scalar_lea.vmem %s1, 48
      %v2146 = vld [vmem:[%s2145] sm:$0xf]
      %v2147 = vld [vmem:[%s2145 + $0x4] sm:$0x3]
      %v2150 = vunpack.c.l.b16 %v2146
      %v2151 = vunpack.c.l.b16 %v2147
      %v2152 = vpack.c.b16 %v2151, %v2150
      %v2158 = vunpack.c.l.b16 %v2140
      %v2159 = vunpack.c.h.b16 %v2140
      %v2160 = vunpack.c.l.b16 %v2141
      %v2161 = vunpack.c.h.b16 %v2141
      %v2162 = vunpack.c.l.b16 %v2142
      %v2163 = vunpack.c.h.b16 %v2142
      %v2164 = vunpack.c.l.b16 %v2143
      %v2165 = vunpack.c.h.b16 %v2143
      %v2166 = vunpack.c.l.b16 %v2144
      %v2167 = vpack.c.b16 %v2158, %v2158
      %v2168 = vpack.c.b16 %v2159, %v2159
      %v2169 = vpack.c.b16 %v2160, %v2160
      %v2170 = vpack.c.b16 %v2161, %v2161
      %v2171 = vpack.c.b16 %v2162, %v2162
      %v2172 = vpack.c.b16 %v2163, %v2163
      %v2173 = vpack.c.b16 %v2164, %v2164
      %v2174 = vpack.c.b16 %v2165, %v2165
      %v2175 = vpack.c.b16 %v2166, %v2166
      %2176 = vrot.lane.b32.xlu0 %v2167, 64
      %v2177 = vpop.permute.xlu0 %2176
      %2178 = vrot.lane.b32.xlu0 %v2168, 64
      %v2179 = vpop.permute.xlu0 %2178
      %2180 = vrot.lane.b32.xlu0 %v2169, 64
      %v2181 = vpop.permute.xlu0 %2180
      %2182 = vrot.lane.b32.xlu0 %v2170, 64
      %v2183 = vpop.permute.xlu0 %2182
      %2184 = vrot.lane.b32.xlu0 %v2171, 64
      %v2185 = vpop.permute.xlu0 %2184
      %2186 = vrot.lane.b32.xlu0 %v2172, 64
      %v2187 = vpop.permute.xlu0 %2186
      %2188 = vrot.lane.b32.xlu0 %v2173, 64
      %v2189 = vpop.permute.xlu0 %2188
      %2190 = vrot.lane.b32.xlu0 %v2174, 64
      %v2191 = vpop.permute.xlu0 %2190
      %2192 = vrot.lane.b32.xlu0 %v2175, 64
      %v2193 = vpop.permute.xlu0 %2192
      %v2194 = vsel %vm2127, %v2177, %v2179
      %v2195 = vsel %vm2127, %v2179, %v2181
      %v2196 = vsel %vm2127, %v2181, %v2183
      %v2197 = vsel %vm2127, %v2183, %v2185
      %v2198 = vsel %vm2127, %v2185, %v2187
      %v2199 = vsel %vm2127, %v2187, %v2189
      %v2200 = vsel %vm2127, %v2189, %v2191
      %v2201 = vsel %vm2127, %v2191, %v2193
      %v2203 = vsel %vm426, %v2152, 0
      %v2206 = vsel %vm430, %v2194, 0
      %v2209 = vsel %vm430, %v2195, 0
      %v2212 = vsel %vm430, %v2196, 0
      %v2215 = vsel %vm430, %v2197, 0
      %v2218 = vsel %vm430, %v2198, 0
      %v2221 = vsel %vm430, %v2199, 0
      %v2224 = vsel %vm430, %v2200, 0
      %v2227 = vsel %vm430, %v2201, 0
      %2229 = vmatprep.subr.bf16.mxu0 %v2209
      %2230 = vmatpush1.bf16.msra.mxu0 %v2206
      %2231 = vmatprep.subr.bf16.mxu0 0
      %2232 = vmatpush1.bf16.msra.mxu0 0
      %2233 = vmatprep.subr.bf16.mxu0 0
      %2234 = vmatpush1.bf16.msra.mxu0 0
      %2235 = vmatprep.subr.bf16.mxu0 0
      %2236 = vmatpush1.bf16.msra.mxu0 0
      %2237 = vmatprep.subr.bf16.mxu0 0
      %2238 = vmatpush1.bf16.msra.mxu0 0
      %2239 = vmatprep.subr.bf16.mxu0 0
      %2240 = vmatpush1.bf16.msra.mxu0 0
      %2241 = vmatprep.subr.bf16.mxu0 0
      %2242 = vmatpush1.bf16.msra.mxu0 0
      %2243 = vmatprep.subr.bf16.mxu0 0
      %2244 = vmatpush1.bf16.msra.mxu0 0
      %2245 = vmatprep.subr.bf16.mxu0 0
      %2246 = vmatpush1.bf16.msra.mxu0 0
      %2247 = vmatprep.subr.bf16.mxu0 0
      %2248 = vmatpush1.bf16.msra.mxu0 0
      %2249 = vmatprep.subr.bf16.mxu0 0
      %2250 = vmatpush1.bf16.msra.mxu0 0
      %2251 = vmatprep.subr.bf16.mxu0 0
      %2252 = vmatpush1.bf16.msra.mxu0 0
      %2253 = vmatprep.subr.bf16.mxu0 0
      %2254 = vmatpush1.bf16.msra.mxu0 0
      %2255 = vmatprep.subr.bf16.mxu0 0
      %2256 = vmatpush1.bf16.msra.mxu0 0
      %2257 = vmatprep.subr.bf16.mxu0 0
      %2258 = vmatpush1.bf16.msra.mxu0 0
      %2259 = vmatprep.subr.bf16.mxu0 0
      %2260 = vmatpush1.bf16.msra.mxu0 0
      %2261 = vmatprep.mubr.bf16.mxu0 0
      %2262 = vmatmul.mubr.bf16.gmra.mrb[0].mxu0 %v2203
      %v2263 = vpop.f32.mrb[0].mxu0
      %v2264 = vadd.f32 0.0, %v2263
      %v2265 = vpop.f32.mrb[0].mxu0
      %v2266 = vadd.f32 0.0, %v2265
      %v2267 = vpop.f32.mrb[0].mxu0
      %v2268 = vadd.f32 0.0, %v2267
      %v2269 = vpop.f32.mrb[0].mxu0
      %v2270 = vadd.f32 0.0, %v2269
      %2271 = vdwg.mxu0
      %2272 = vmatprep.subr.bf16.mxu0 %v2215
      %2273 = vmatpush1.bf16.msra.mxu0 %v2212
      %2274 = vmatprep.subr.bf16.mxu0 0
      %2275 = vmatpush1.bf16.msra.mxu0 0
      %2276 = vmatprep.subr.bf16.mxu0 0
      %2277 = vmatpush1.bf16.msra.mxu0 0
      %2278 = vmatprep.subr.bf16.mxu0 0
      %2279 = vmatpush1.bf16.msra.mxu0 0
      %2280 = vmatprep.subr.bf16.mxu0 0
      %2281 = vmatpush1.bf16.msra.mxu0 0
      %2282 = vmatprep.subr.bf16.mxu0 0
      %2283 = vmatpush1.bf16.msra.mxu0 0
      %2284 = vmatprep.subr.bf16.mxu0 0
      %2285 = vmatpush1.bf16.msra.mxu0 0
      %2286 = vmatprep.subr.bf16.mxu0 0
      %2287 = vmatpush1.bf16.msra.mxu0 0
      %2288 = vmatprep.subr.bf16.mxu0 0
      %2289 = vmatpush1.bf16.msra.mxu0 0
      %2290 = vmatprep.subr.bf16.mxu0 0
      %2291 = vmatpush1.bf16.msra.mxu0 0
      %2292 = vmatprep.subr.bf16.mxu0 0
      %2293 = vmatpush1.bf16.msra.mxu0 0
      %2294 = vmatprep.subr.bf16.mxu0 0
      %2295 = vmatpush1.bf16.msra.mxu0 0
      %2296 = vmatprep.subr.bf16.mxu0 0
      %2297 = vmatpush1.bf16.msra.mxu0 0
      %2298 = vmatprep.subr.bf16.mxu0 0
      %2299 = vmatpush1.bf16.msra.mxu0 0
      %2300 = vmatprep.subr.bf16.mxu0 0
      %2301 = vmatpush1.bf16.msra.mxu0 0
      %2302 = vmatprep.subr.bf16.mxu0 0
      %2303 = vmatpush1.bf16.msra.mxu0 0
      %2304 = vmatprep.mubr.bf16.mxu0 0
      %2305 = vmatmul.mubr.bf16.gmra.mrb[0].mxu0 %v2203
      %v2306 = vpop.f32.mrb[0].mxu0
      %v2307 = vadd.f32 0.0, %v2306
      %v2308 = vpop.f32.mrb[0].mxu0
      %v2309 = vadd.f32 0.0, %v2308
      %v2310 = vpop.f32.mrb[0].mxu0
      %v2311 = vadd.f32 0.0, %v2310
      %v2312 = vpop.f32.mrb[0].mxu0
      %v2313 = vadd.f32 0.0, %v2312
      %2314 = vdwg.mxu0
      %2315 = vmatprep.subr.bf16.mxu0 %v2221
      %2316 = vmatpush1.bf16.msra.mxu0 %v2218
      %2317 = vmatprep.subr.bf16.mxu0 0
      %2318 = vmatpush1.bf16.msra.mxu0 0
      %2319 = vmatprep.subr.bf16.mxu0 0
      %2320 = vmatpush1.bf16.msra.mxu0 0
      %2321 = vmatprep.subr.bf16.mxu0 0
      %2322 = vmatpush1.bf16.msra.mxu0 0
      %2323 = vmatprep.subr.bf16.mxu0 0
      %2324 = vmatpush1.bf16.msra.mxu0 0
      %2325 = vmatprep.subr.bf16.mxu0 0
      %2326 = vmatpush1.bf16.msra.mxu0 0
      %2327 = vmatprep.subr.bf16.mxu0 0
      %2328 = vmatpush1.bf16.msra.mxu0 0
      %2329 = vmatprep.subr.bf16.mxu0 0
      %2330 = vmatpush1.bf16.msra.mxu0 0
      %2331 = vmatprep.subr.bf16.mxu0 0
      %2332 = vmatpush1.bf16.msra.mxu0 0
      %2333 = vmatprep.subr.bf16.mxu0 0
      %2334 = vmatpush1.bf16.msra.mxu0 0
      %2335 = vmatprep.subr.bf16.mxu0 0
      %2336 = vmatpush1.bf16.msra.mxu0 0
      %2337 = vmatprep.subr.bf16.mxu0 0
      %2338 = vmatpush1.bf16.msra.mxu0 0
      %2339 = vmatprep.subr.bf16.mxu0 0
      %2340 = vmatpush1.bf16.msra.mxu0 0
      %2341 = vmatprep.subr.bf16.mxu0 0
      %2342 = vmatpush1.bf16.msra.mxu0 0
      %2343 = vmatprep.subr.bf16.mxu0 0
      %2344 = vmatpush1.bf16.msra.mxu0 0
      %2345 = vmatprep.subr.bf16.mxu0 0
      %2346 = vmatpush1.bf16.msra.mxu0 0
      %2347 = vmatprep.mubr.bf16.mxu0 0
      %2348 = vmatmul.mubr.bf16.gmra.mrb[0].mxu0 %v2203
      %v2349 = vpop.f32.mrb[0].mxu0
      %v2350 = vadd.f32 0.0, %v2349
      %v2351 = vpop.f32.mrb[0].mxu0
      %v2352 = vadd.f32 0.0, %v2351
      %v2353 = vpop.f32.mrb[0].mxu0
      %v2354 = vadd.f32 0.0, %v2353
      %v2355 = vpop.f32.mrb[0].mxu0
      %v2356 = vadd.f32 0.0, %v2355
      %2357 = vdwg.mxu0
      %2358 = vmatprep.subr.bf16.mxu0 %v2227
      %2359 = vmatpush1.bf16.msra.mxu0 %v2224
      %2360 = vmatprep.subr.bf16.mxu0 0
      %2361 = vmatpush1.bf16.msra.mxu0 0
      %2362 = vmatprep.subr.bf16.mxu0 0
      %2363 = vmatpush1.bf16.msra.mxu0 0
      %2364 = vmatprep.subr.bf16.mxu0 0
      %2365 = vmatpush1.bf16.msra.mxu0 0
      %2366 = vmatprep.subr.bf16.mxu0 0
      %2367 = vmatpush1.bf16.msra.mxu0 0
      %2368 = vmatprep.subr.bf16.mxu0 0
      %2369 = vmatpush1.bf16.msra.mxu0 0
      %2370 = vmatprep.subr.bf16.mxu0 0
      %2371 = vmatpush1.bf16.msra.mxu0 0
      %2372 = vmatprep.subr.bf16.mxu0 0
      %2373 = vmatpush1.bf16.msra.mxu0 0
      %2374 = vmatprep.subr.bf16.mxu0 0
      %2375 = vmatpush1.bf16.msra.mxu0 0
      %2376 = vmatprep.subr.bf16.mxu0 0
      %2377 = vmatpush1.bf16.msra.mxu0 0
      %2378 = vmatprep.subr.bf16.mxu0 0
      %2379 = vmatpush1.bf16.msra.mxu0 0
      %2380 = vmatprep.subr.bf16.mxu0 0
      %2381 = vmatpush1.bf16.msra.mxu0 0
      %2382 = vmatprep.subr.bf16.mxu0 0
      %2383 = vmatpush1.bf16.msra.mxu0 0
      %2384 = vmatprep.subr.bf16.mxu0 0
      %2385 = vmatpush1.bf16.msra.mxu0 0
      %2386 = vmatprep.subr.bf16.mxu0 0
      %2387 = vmatpush1.bf16.msra.mxu0 0
      %2388 = vmatprep.subr.bf16.mxu0 0
      %2389 = vmatpush1.bf16.msra.mxu0 0
      %2390 = vmatprep.mubr.bf16.mxu0 0
      %2391 = vmatmul.mubr.bf16.gmra.mrb[0].mxu0 %v2203
      %v2392 = vpop.f32.mrb[0].mxu0
      %v2393 = vadd.f32 0.0, %v2392
      %v2394 = vpop.f32.mrb[0].mxu0
      %v2395 = vadd.f32 0.0, %v2394
      %v2396 = vpop.f32.mrb[0].mxu0
      %v2397 = vadd.f32 0.0, %v2396
      %v2398 = vpop.f32.mrb[0].mxu0
      %v2399 = vadd.f32 0.0, %v2398
      %2400 = vdwg.mxu0
      %v2401 = vadd.f32 %v2099, %v2264
      %v2402 = vadd.f32 %v2100, %v2266
      %v2403 = vadd.f32 %v2101, %v2307
      %v2404 = vadd.f32 %v2102, %v2309
      %v2405 = vadd.f32 %v2103, %v2350
      %v2406 = vadd.f32 %v2104, %v2352
      %v2407 = vadd.f32 %v2105, %v2393
      %v2408 = vadd.f32 %v2106, %v2395
      %v2409 = vadd.f32 %v2107, %v2268
      %v2410 = vadd.f32 %v2108, %v2270
      %v2411 = vadd.f32 %v2109, %v2311
      %v2412 = vadd.f32 %v2110, %v2313
      %v2413 = vadd.f32 %v2111, %v2354
      %v2414 = vadd.f32 %v2112, %v2356
      %v2415 = vadd.f32 %v2113, %v2397
      %v2416 = vadd.f32 %v2114, %v2399
      %s2417 = scalar_lea.vmem %s1, 56
      %v2418 = vld [vmem:[%s2417] sm:$0xf]
      %v2419 = vld [vmem:[%s2417 + $0x4] sm:$0x3]
      %v2422 = vunpack.c.l.b16 %v2418
      %v2423 = vunpack.c.l.b16 %v2419
      %v2424 = vpack.c.b16 %v2423, %v2422
      %2425 = vrot.lane.b32.xlu0 %v1561, 63
      %v2426 = vpop.permute.xlu0 %2425
      %2427 = vrot.lane.b32.xlu0 %v1562, 63
      %v2428 = vpop.permute.xlu0 %2427
      %2429 = vrot.lane.b32.xlu0 %v1563, 63
      %v2430 = vpop.permute.xlu0 %2429
      %2431 = vrot.lane.b32.xlu0 %v1564, 63
      %v2432 = vpop.permute.xlu0 %2431
      %2433 = vrot.lane.b32.xlu0 %v1565, 63
      %v2434 = vpop.permute.xlu0 %2433
      %2435 = vrot.lane.b32.xlu0 %v1566, 63
      %v2436 = vpop.permute.xlu0 %2435
      %2437 = vrot.lane.b32.xlu0 %v1567, 63
      %v2438 = vpop.permute.xlu0 %2437
      %2439 = vrot.lane.b32.xlu0 %v1568, 63
      %v2440 = vpop.permute.xlu0 %2439
      %2441 = vrot.lane.b32.xlu0 %v1569, 63
      %v2442 = vpop.permute.xlu0 %2441
      %vm2443 = vcmask 515072
      %v2444 = vsel %vm2443, %v2426, %v2428
      %v2445 = vsel %vm2443, %v2428, %v2430
      %v2446 = vsel %vm2443, %v2430, %v2432
      %v2447 = vsel %vm2443, %v2432, %v2434
      %v2448 = vsel %vm2443, %v2434, %v2436
      %v2449 = vsel %vm2443, %v2436, %v2438
      %v2450 = vsel %vm2443, %v2438, %v2440
      %v2451 = vsel %vm2443, %v2440, %v2442
      %v2453 = vsel %vm426, %v2424, 0
      %v2456 = vsel %vm430, %v2444, 0
      %v2459 = vsel %vm430, %v2445, 0
      %v2462 = vsel %vm430, %v2446, 0
      %v2465 = vsel %vm430, %v2447, 0
      %v2468 = vsel %vm430, %v2448, 0
      %v2471 = vsel %vm430, %v2449, 0
      %v2474 = vsel %vm430, %v2450, 0
      %v2477 = vsel %vm430, %v2451, 0
      %2479 = vmatprep.subr.bf16.mxu0 %v2459
      %2480 = vmatpush1.bf16.msra.mxu0 %v2456
      %2481 = vmatprep.subr.bf16.mxu0 0
      %2482 = vmatpush1.bf16.msra.mxu0 0
      %2483 = vmatprep.subr.bf16.mxu0 0
      %2484 = vmatpush1.bf16.msra.mxu0 0
      %2485 = vmatprep.subr.bf16.mxu0 0
      %2486 = vmatpush1.bf16.msra.mxu0 0
      %2487 = vmatprep.subr.bf16.mxu0 0
      %2488 = vmatpush1.bf16.msra.mxu0 0
      %2489 = vmatprep.subr.bf16.mxu0 0
      %2490 = vmatpush1.bf16.msra.mxu0 0
      %2491 = vmatprep.subr.bf16.mxu0 0
      %2492 = vmatpush1.bf16.msra.mxu0 0
      %2493 = vmatprep.subr.bf16.mxu0 0
      %2494 = vmatpush1.bf16.msra.mxu0 0
      %2495 = vmatprep.subr.bf16.mxu0 0
      %2496 = vmatpush1.bf16.msra.mxu0 0
      %2497 = vmatprep.subr.bf16.mxu0 0
      %2498 = vmatpush1.bf16.msra.mxu0 0
      %2499 = vmatprep.subr.bf16.mxu0 0
      %2500 = vmatpush1.bf16.msra.mxu0 0
      %2501 = vmatprep.subr.bf16.mxu0 0
      %2502 = vmatpush1.bf16.msra.mxu0 0
      %2503 = vmatprep.subr.bf16.mxu0 0
      %2504 = vmatpush1.bf16.msra.mxu0 0
      %2505 = vmatprep.subr.bf16.mxu0 0
      %2506 = vmatpush1.bf16.msra.mxu0 0
      %2507 = vmatprep.subr.bf16.mxu0 0
      %2508 = vmatpush1.bf16.msra.mxu0 0
      %2509 = vmatprep.subr.bf16.mxu0 0
      %2510 = vmatpush1.bf16.msra.mxu0 0
      %2511 = vmatprep.mubr.bf16.mxu0 0
      %2512 = vmatmul.mubr.bf16.gmra.mrb[0].mxu0 %v2453
      %v2513 = vpop.f32.mrb[0].mxu0
      %v2514 = vadd.f32 0.0, %v2513
      %v2515 = vpop.f32.mrb[0].mxu0
      %v2516 = vadd.f32 0.0, %v2515
      %v2517 = vpop.f32.mrb[0].mxu0
      %v2518 = vadd.f32 0.0, %v2517
      %v2519 = vpop.f32.mrb[0].mxu0
      %v2520 = vadd.f32 0.0, %v2519
      %2521 = vdwg.mxu0
      %2522 = vmatprep.subr.bf16.mxu0 %v2465
      %2523 = vmatpush1.bf16.msra.mxu0 %v2462
      %2524 = vmatprep.subr.bf16.mxu0 0
      %2525 = vmatpush1.bf16.msra.mxu0 0
      %2526 = vmatprep.subr.bf16.mxu0 0
      %2527 = vmatpush1.bf16.msra.mxu0 0
      %2528 = vmatprep.subr.bf16.mxu0 0
      %2529 = vmatpush1.bf16.msra.mxu0 0
      %2530 = vmatprep.subr.bf16.mxu0 0
      %2531 = vmatpush1.bf16.msra.mxu0 0
      %2532 = vmatprep.subr.bf16.mxu0 0
      %2533 = vmatpush1.bf16.msra.mxu0 0
      %2534 = vmatprep.subr.bf16.mxu0 0
      %2535 = vmatpush1.bf16.msra.mxu0 0
      %2536 = vmatprep.subr.bf16.mxu0 0
      %2537 = vmatpush1.bf16.msra.mxu0 0
      %2538 = vmatprep.subr.bf16.mxu0 0
      %2539 = vmatpush1.bf16.msra.mxu0 0
      %2540 = vmatprep.subr.bf16.mxu0 0
      %2541 = vmatpush1.bf16.msra.mxu0 0
      %2542 = vmatprep.subr.bf16.mxu0 0
      %2543 = vmatpush1.bf16.msra.mxu0 0
      %2544 = vmatprep.subr.bf16.mxu0 0
      %2545 = vmatpush1.bf16.msra.mxu0 0
      %2546 = vmatprep.subr.bf16.mxu0 0
      %2547 = vmatpush1.bf16.msra.mxu0 0
      %2548 = vmatprep.subr.bf16.mxu0 0
      %2549 = vmatpush1.bf16.msra.mxu0 0
      %2550 = vmatprep.subr.bf16.mxu0 0
      %2551 = vmatpush1.bf16.msra.mxu0 0
      %2552 = vmatprep.subr.bf16.mxu0 0
      %2553 = vmatpush1.bf16.msra.mxu0 0
      %2554 = vmatprep.mubr.bf16.mxu0 0
      %2555 = vmatmul.mubr.bf16.gmra.mrb[0].mxu0 %v2453
      %v2556 = vpop.f32.mrb[0].mxu0
      %v2557 = vadd.f32 0.0, %v2556
      %v2558 = vpop.f32.mrb[0].mxu0
      %v2559 = vadd.f32 0.0, %v2558
      %v2560 = vpop.f32.mrb[0].mxu0
      %v2561 = vadd.f32 0.0, %v2560
      %v2562 = vpop.f32.mrb[0].mxu0
      %v2563 = vadd.f32 0.0, %v2562
      %2564 = vdwg.mxu0
      %2565 = vmatprep.subr.bf16.mxu0 %v2471
      %2566 = vmatpush1.bf16.msra.mxu0 %v2468
      %2567 = vmatprep.subr.bf16.mxu0 0
      %2568 = vmatpush1.bf16.msra.mxu0 0
      %2569 = vmatprep.subr.bf16.mxu0 0
      %2570 = vmatpush1.bf16.msra.mxu0 0
      %2571 = vmatprep.subr.bf16.mxu0 0
      %2572 = vmatpush1.bf16.msra.mxu0 0
      %2573 = vmatprep.subr.bf16.mxu0 0
      %2574 = vmatpush1.bf16.msra.mxu0 0
      %2575 = vmatprep.subr.bf16.mxu0 0
      %2576 = vmatpush1.bf16.msra.mxu0 0
      %2577 = vmatprep.subr.bf16.mxu0 0
      %2578 = vmatpush1.bf16.msra.mxu0 0
      %2579 = vmatprep.subr.bf16.mxu0 0
      %2580 = vmatpush1.bf16.msra.mxu0 0
      %2581 = vmatprep.subr.bf16.mxu0 0
      %2582 = vmatpush1.bf16.msra.mxu0 0
      %2583 = vmatprep.subr.bf16.mxu0 0
      %2584 = vmatpush1.bf16.msra.mxu0 0
      %2585 = vmatprep.subr.bf16.mxu0 0
      %2586 = vmatpush1.bf16.msra.mxu0 0
      %2587 = vmatprep.subr.bf16.mxu0 0
      %2588 = vmatpush1.bf16.msra.mxu0 0
      %2589 = vmatprep.subr.bf16.mxu0 0
      %2590 = vmatpush1.bf16.msra.mxu0 0
      %2591 = vmatprep.subr.bf16.mxu0 0
      %2592 = vmatpush1.bf16.msra.mxu0 0
      %2593 = vmatprep.subr.bf16.mxu0 0
      %2594 = vmatpush1.bf16.msra.mxu0 0
      %2595 = vmatprep.subr.bf16.mxu0 0
      %2596 = vmatpush1.bf16.msra.mxu0 0
      %2597 = vmatprep.mubr.bf16.mxu0 0
      %2598 = vmatmul.mubr.bf16.gmra.mrb[0].mxu0 %v2453
      %v2599 = vpop.f32.mrb[0].mxu0
      %v2600 = vadd.f32 0.0, %v2599
      %v2601 = vpop.f32.mrb[0].mxu0
      %v2602 = vadd.f32 0.0, %v2601
      %v2603 = vpop.f32.mrb[0].mxu0
      %v2604 = vadd.f32 0.0, %v2603
      %v2605 = vpop.f32.mrb[0].mxu0
      %v2606 = vadd.f32 0.0, %v2605
      %2607 = vdwg.mxu0
      %2608 = vmatprep.subr.bf16.mxu0 %v2477
      %2609 = vmatpush1.bf16.msra.mxu0 %v2474
      %2610 = vmatprep.subr.bf16.mxu0 0
      %2611 = vmatpush1.bf16.msra.mxu0 0
      %2612 = vmatprep.subr.bf16.mxu0 0
      %2613 = vmatpush1.bf16.msra.mxu0 0
      %2614 = vmatprep.subr.bf16.mxu0 0
      %2615 = vmatpush1.bf16.msra.mxu0 0
      %2616 = vmatprep.subr.bf16.mxu0 0
      %2617 = vmatpush1.bf16.msra.mxu0 0
      %2618 = vmatprep.subr.bf16.mxu0 0
      %2619 = vmatpush1.bf16.msra.mxu0 0
      %2620 = vmatprep.subr.bf16.mxu0 0
      %2621 = vmatpush1.bf16.msra.mxu0 0
      %2622 = vmatprep.subr.bf16.mxu0 0
      %2623 = vmatpush1.bf16.msra.mxu0 0
      %2624 = vmatprep.subr.bf16.mxu0 0
      %2625 = vmatpush1.bf16.msra.mxu0 0
      %2626 = vmatprep.subr.bf16.mxu0 0
      %2627 = vmatpush1.bf16.msra.mxu0 0
      %2628 = vmatprep.subr.bf16.mxu0 0
      %2629 = vmatpush1.bf16.msra.mxu0 0
      %2630 = vmatprep.subr.bf16.mxu0 0
      %2631 = vmatpush1.bf16.msra.mxu0 0
      %2632 = vmatprep.subr.bf16.mxu0 0
      %2633 = vmatpush1.bf16.msra.mxu0 0
      %2634 = vmatprep.subr.bf16.mxu0 0
      %2635 = vmatpush1.bf16.msra.mxu0 0
      %2636 = vmatprep.subr.bf16.mxu0 0
      %2637 = vmatpush1.bf16.msra.mxu0 0
      %2638 = vmatprep.subr.bf16.mxu0 0
      %2639 = vmatpush1.bf16.msra.mxu0 0
      %2640 = vmatprep.mubr.bf16.mxu0 0
      %2641 = vmatmul.mubr.bf16.gmra.mrb[0].mxu0 %v2453
      %v2642 = vpop.f32.mrb[0].mxu0
      %v2643 = vadd.f32 0.0, %v2642
      %v2644 = vpop.f32.mrb[0].mxu0
      %v2645 = vadd.f32 0.0, %v2644
      %v2646 = vpop.f32.mrb[0].mxu0
      %v2647 = vadd.f32 0.0, %v2646
      %v2648 = vpop.f32.mrb[0].mxu0
      %v2649 = vadd.f32 0.0, %v2648
      %2650 = vdwg.mxu0
      %v2651 = vadd.f32 %v2401, %v2514
      %v2652 = vadd.f32 %v2402, %v2516
      %v2653 = vadd.f32 %v2403, %v2557
      %v2654 = vadd.f32 %v2404, %v2559
      %v2655 = vadd.f32 %v2405, %v2600
      %v2656 = vadd.f32 %v2406, %v2602
      %v2657 = vadd.f32 %v2407, %v2643
      %v2658 = vadd.f32 %v2408, %v2645
      %v2659 = vadd.f32 %v2409, %v2518
      %v2660 = vadd.f32 %v2410, %v2520
      %v2661 = vadd.f32 %v2411, %v2561
      %v2662 = vadd.f32 %v2412, %v2563
      %v2663 = vadd.f32 %v2413, %v2604
      %v2664 = vadd.f32 %v2414, %v2606
      %v2665 = vadd.f32 %v2415, %v2647
      %v2666 = vadd.f32 %v2416, %v2649
      %2667 = vrot.lane.b32.xlu0 %v923, 66
      %v2668 = vpop.permute.xlu0 %2667
      %2669 = vrot.lane.b32.xlu0 %v924, 66
      %v2670 = vpop.permute.xlu0 %2669
      %2671 = vrot.lane.b32.xlu0 %v925, 66
      %v2672 = vpop.permute.xlu0 %2671
      %2673 = vrot.lane.b32.xlu0 %v926, 66
      %v2674 = vpop.permute.xlu0 %2673
      %v2675 = vrot.slane %v2668, 4
      %v2676 = vrot.slane %v2670, 4
      %v2677 = vrot.slane %v2672, 4
      %v2678 = vrot.slane %v2674, 4
      %vm2679 = vcmask 539648
      %v2680 = vsel %vm2679, %v2675, %v2668
      %v2681 = vsel %vm941, %v2675, %v2676
      %v2682 = vsel %vm2679, %v2681, %v2670
      %v2683 = vsel %vm941, %v2676, %v2677
      %v2684 = vsel %vm2679, %v2683, %v2672
      %v2685 = vsel %vm941, %v2677, %v2678
      %v2686 = vsel %vm2679, %v2685, %v2674
      %v2692 = vmul.bf16 %v1231, %v2680
      %v2693 = vmul.bf16 %v1232, %v2682
      %v2694 = vmul.bf16 %v1233, %v2684
      %v2695 = vmul.bf16 %v1234, %v2686
      %v2696 = vmul.bf16 %v1235, %v2678
      %s2697 = scalar_lea.vmem %s1, 64
      %v2698 = vld [vmem:[%s2697] sm:$0xf]
      %v2699 = vld [vmem:[%s2697 + $0x4] sm:$0x3]
      %v2702 = vunpack.c.l.b16 %v2698
      %v2703 = vunpack.c.l.b16 %v2699
      %v2704 = vpack.c.b16 %v2703, %v2702
      %v2710 = vunpack.c.l.b16 %v2692
      %v2711 = vunpack.c.h.b16 %v2692
      %v2712 = vunpack.c.l.b16 %v2693
      %v2713 = vunpack.c.h.b16 %v2693
      %v2714 = vunpack.c.l.b16 %v2694
      %v2715 = vunpack.c.h.b16 %v2694
      %v2716 = vunpack.c.l.b16 %v2695
      %v2717 = vunpack.c.h.b16 %v2695
      %v2718 = vunpack.c.l.b16 %v2696
      %v2719 = vpack.c.b16 %v2710, %v2710
      %v2720 = vpack.c.b16 %v2711, %v2711
      %v2721 = vpack.c.b16 %v2712, %v2712
      %v2722 = vpack.c.b16 %v2713, %v2713
      %v2723 = vpack.c.b16 %v2714, %v2714
      %v2724 = vpack.c.b16 %v2715, %v2715
      %v2725 = vpack.c.b16 %v2716, %v2716
      %v2726 = vpack.c.b16 %v2717, %v2717
      %v2727 = vpack.c.b16 %v2718, %v2718
      %2728 = vrot.lane.b32.xlu0 %v2719, 62
      %v2729 = vpop.permute.xlu0 %2728
      %2730 = vrot.lane.b32.xlu0 %v2720, 62
      %v2731 = vpop.permute.xlu0 %2730
      %2732 = vrot.lane.b32.xlu0 %v2721, 62
      %v2733 = vpop.permute.xlu0 %2732
      %2734 = vrot.lane.b32.xlu0 %v2722, 62
      %v2735 = vpop.permute.xlu0 %2734
      %2736 = vrot.lane.b32.xlu0 %v2723, 62
      %v2737 = vpop.permute.xlu0 %2736
      %2738 = vrot.lane.b32.xlu0 %v2724, 62
      %v2739 = vpop.permute.xlu0 %2738
      %2740 = vrot.lane.b32.xlu0 %v2725, 62
      %v2741 = vpop.permute.xlu0 %2740
      %2742 = vrot.lane.b32.xlu0 %v2726, 62
      %v2743 = vpop.permute.xlu0 %2742
      %2744 = vrot.lane.b32.xlu0 %v2727, 62
      %v2745 = vpop.permute.xlu0 %2744
      %vm2746 = vcmask 506880
      %v2747 = vsel %vm2746, %v2729, %v2731
      %v2748 = vsel %vm2746, %v2731, %v2733
      %v2749 = vsel %vm2746, %v2733, %v2735
      %v2750 = vsel %vm2746, %v2735, %v2737
      %v2751 = vsel %vm2746, %v2737, %v2739
      %v2752 = vsel %vm2746, %v2739, %v2741
      %v2753 = vsel %vm2746, %v2741, %v2743
      %v2754 = vsel %vm2746, %v2743, %v2745
      %v2756 = vsel %vm426, %v2704, 0
      %v2759 = vsel %vm430, %v2747, 0
      %v2762 = vsel %vm430, %v2748, 0
      %v2765 = vsel %vm430, %v2749, 0
      %v2768 = vsel %vm430, %v2750, 0
      %v2771 = vsel %vm430, %v2751, 0
      %v2774 = vsel %vm430, %v2752, 0
      %v2777 = vsel %vm430, %v2753, 0
      %v2780 = vsel %vm430, %v2754, 0
      %2782 = vmatprep.subr.bf16.mxu0 %v2762
      %2783 = vmatpush1.bf16.msra.mxu0 %v2759
      %2784 = vmatprep.subr.bf16.mxu0 0
      %2785 = vmatpush1.bf16.msra.mxu0 0
      %2786 = vmatprep.subr.bf16.mxu0 0
      %2787 = vmatpush1.bf16.msra.mxu0 0
      %2788 = vmatprep.subr.bf16.mxu0 0
      %2789 = vmatpush1.bf16.msra.mxu0 0
      %2790 = vmatprep.subr.bf16.mxu0 0
      %2791 = vmatpush1.bf16.msra.mxu0 0
      %2792 = vmatprep.subr.bf16.mxu0 0
      %2793 = vmatpush1.bf16.msra.mxu0 0
      %2794 = vmatprep.subr.bf16.mxu0 0
      %2795 = vmatpush1.bf16.msra.mxu0 0
      %2796 = vmatprep.subr.bf16.mxu0 0
      %2797 = vmatpush1.bf16.msra.mxu0 0
      %2798 = vmatprep.subr.bf16.mxu0 0
      %2799 = vmatpush1.bf16.msra.mxu0 0
      %2800 = vmatprep.subr.bf16.mxu0 0
      %2801 = vmatpush1.bf16.msra.mxu0 0
      %2802 = vmatprep.subr.bf16.mxu0 0
      %2803 = vmatpush1.bf16.msra.mxu0 0
      %2804 = vmatprep.subr.bf16.mxu0 0
      %2805 = vmatpush1.bf16.msra.mxu0 0
      %2806 = vmatprep.subr.bf16.mxu0 0
      %2807 = vmatpush1.bf16.msra.mxu0 0
      %2808 = vmatprep.subr.bf16.mxu0 0
      %2809 = vmatpush1.bf16.msra.mxu0 0
      %2810 = vmatprep.subr.bf16.mxu0 0
      %2811 = vmatpush1.bf16.msra.mxu0 0
      %2812 = vmatprep.subr.bf16.mxu0 0
      %2813 = vmatpush1.bf16.msra.mxu0 0
      %2814 = vmatprep.mubr.bf16.mxu0 0
      %2815 = vmatmul.mubr.bf16.gmra.mrb[0].mxu0 %v2756
      %v2816 = vpop.f32.mrb[0].mxu0
      %v2817 = vadd.f32 0.0, %v2816
      %v2818 = vpop.f32.mrb[0].mxu0
      %v2819 = vadd.f32 0.0, %v2818
      %v2820 = vpop.f32.mrb[0].mxu0
      %v2821 = vadd.f32 0.0, %v2820
      %v2822 = vpop.f32.mrb[0].mxu0
      %v2823 = vadd.f32 0.0, %v2822
      %2824 = vdwg.mxu0
      %2825 = vmatprep.subr.bf16.mxu0 %v2768
      %2826 = vmatpush1.bf16.msra.mxu0 %v2765
      %2827 = vmatprep.subr.bf16.mxu0 0
      %2828 = vmatpush1.bf16.msra.mxu0 0
      %2829 = vmatprep.subr.bf16.mxu0 0
      %2830 = vmatpush1.bf16.msra.mxu0 0
      %2831 = vmatprep.subr.bf16.mxu0 0
      %2832 = vmatpush1.bf16.msra.mxu0 0
      %2833 = vmatprep.subr.bf16.mxu0 0
      %2834 = vmatpush1.bf16.msra.mxu0 0
      %2835 = vmatprep.subr.bf16.mxu0 0
      %2836 = vmatpush1.bf16.msra.mxu0 0
      %2837 = vmatprep.subr.bf16.mxu0 0
      %2838 = vmatpush1.bf16.msra.mxu0 0
      %2839 = vmatprep.subr.bf16.mxu0 0
      %2840 = vmatpush1.bf16.msra.mxu0 0
      %2841 = vmatprep.subr.bf16.mxu0 0
      %2842 = vmatpush1.bf16.msra.mxu0 0
      %2843 = vmatprep.subr.bf16.mxu0 0
      %2844 = vmatpush1.bf16.msra.mxu0 0
      %2845 = vmatprep.subr.bf16.mxu0 0
      %2846 = vmatpush1.bf16.msra.mxu0 0
      %2847 = vmatprep.subr.bf16.mxu0 0
      %2848 = vmatpush1.bf16.msra.mxu0 0
      %2849 = vmatprep.subr.bf16.mxu0 0
      %2850 = vmatpush1.bf16.msra.mxu0 0
      %2851 = vmatprep.subr.bf16.mxu0 0
      %2852 = vmatpush1.bf16.msra.mxu0 0
      %2853 = vmatprep.subr.bf16.mxu0 0
      %2854 = vmatpush1.bf16.msra.mxu0 0
      %2855 = vmatprep.subr.bf16.mxu0 0
      %2856 = vmatpush1.bf16.msra.mxu0 0
      %2857 = vmatprep.mubr.bf16.mxu0 0
      %2858 = vmatmul.mubr.bf16.gmra.mrb[0].mxu0 %v2756
      %v2859 = vpop.f32.mrb[0].mxu0
      %v2860 = vadd.f32 0.0, %v2859
      %v2861 = vpop.f32.mrb[0].mxu0
      %v2862 = vadd.f32 0.0, %v2861
      %v2863 = vpop.f32.mrb[0].mxu0
      %v2864 = vadd.f32 0.0, %v2863
      %v2865 = vpop.f32.mrb[0].mxu0
      %v2866 = vadd.f32 0.0, %v2865
      %2867 = vdwg.mxu0
      %2868 = vmatprep.subr.bf16.mxu0 %v2774
      %2869 = vmatpush1.bf16.msra.mxu0 %v2771
      %2870 = vmatprep.subr.bf16.mxu0 0
      %2871 = vmatpush1.bf16.msra.mxu0 0
      %2872 = vmatprep.subr.bf16.mxu0 0
      %2873 = vmatpush1.bf16.msra.mxu0 0
      %2874 = vmatprep.subr.bf16.mxu0 0
      %2875 = vmatpush1.bf16.msra.mxu0 0
      %2876 = vmatprep.subr.bf16.mxu0 0
      %2877 = vmatpush1.bf16.msra.mxu0 0
      %2878 = vmatprep.subr.bf16.mxu0 0
      %2879 = vmatpush1.bf16.msra.mxu0 0
      %2880 = vmatprep.subr.bf16.mxu0 0
      %2881 = vmatpush1.bf16.msra.mxu0 0
      %2882 = vmatprep.subr.bf16.mxu0 0
      %2883 = vmatpush1.bf16.msra.mxu0 0
      %2884 = vmatprep.subr.bf16.mxu0 0
      %2885 = vmatpush1.bf16.msra.mxu0 0
      %2886 = vmatprep.subr.bf16.mxu0 0
      %2887 = vmatpush1.bf16.msra.mxu0 0
      %2888 = vmatprep.subr.bf16.mxu0 0
      %2889 = vmatpush1.bf16.msra.mxu0 0
      %2890 = vmatprep.subr.bf16.mxu0 0
      %2891 = vmatpush1.bf16.msra.mxu0 0
      %2892 = vmatprep.subr.bf16.mxu0 0
      %2893 = vmatpush1.bf16.msra.mxu0 0
      %2894 = vmatprep.subr.bf16.mxu0 0
      %2895 = vmatpush1.bf16.msra.mxu0 0
      %2896 = vmatprep.subr.bf16.mxu0 0
      %2897 = vmatpush1.bf16.msra.mxu0 0
      %2898 = vmatprep.subr.bf16.mxu0 0
      %2899 = vmatpush1.bf16.msra.mxu0 0
      %2900 = vmatprep.mubr.bf16.mxu0 0
      %2901 = vmatmul.mubr.bf16.gmra.mrb[0].mxu0 %v2756
      %v2902 = vpop.f32.mrb[0].mxu0
      %v2903 = vadd.f32 0.0, %v2902
      %v2904 = vpop.f32.mrb[0].mxu0
      %v2905 = vadd.f32 0.0, %v2904
      %v2906 = vpop.f32.mrb[0].mxu0
      %v2907 = vadd.f32 0.0, %v2906
      %v2908 = vpop.f32.mrb[0].mxu0
      %v2909 = vadd.f32 0.0, %v2908
      %2910 = vdwg.mxu0
      %2911 = vmatprep.subr.bf16.mxu0 %v2780
      %2912 = vmatpush1.bf16.msra.mxu0 %v2777
      %2913 = vmatprep.subr.bf16.mxu0 0
      %2914 = vmatpush1.bf16.msra.mxu0 0
      %2915 = vmatprep.subr.bf16.mxu0 0
      %2916 = vmatpush1.bf16.msra.mxu0 0
      %2917 = vmatprep.subr.bf16.mxu0 0
      %2918 = vmatpush1.bf16.msra.mxu0 0
      %2919 = vmatprep.subr.bf16.mxu0 0
      %2920 = vmatpush1.bf16.msra.mxu0 0
      %2921 = vmatprep.subr.bf16.mxu0 0
      %2922 = vmatpush1.bf16.msra.mxu0 0
      %2923 = vmatprep.subr.bf16.mxu0 0
      %2924 = vmatpush1.bf16.msra.mxu0 0
      %2925 = vmatprep.subr.bf16.mxu0 0
      %2926 = vmatpush1.bf16.msra.mxu0 0
      %2927 = vmatprep.subr.bf16.mxu0 0
      %2928 = vmatpush1.bf16.msra.mxu0 0
      %2929 = vmatprep.subr.bf16.mxu0 0
      %2930 = vmatpush1.bf16.msra.mxu0 0
      %2931 = vmatprep.subr.bf16.mxu0 0
      %2932 = vmatpush1.bf16.msra.mxu0 0
      %2933 = vmatprep.subr.bf16.mxu0 0
      %2934 = vmatpush1.bf16.msra.mxu0 0
      %2935 = vmatprep.subr.bf16.mxu0 0
      %2936 = vmatpush1.bf16.msra.mxu0 0
      %2937 = vmatprep.subr.bf16.mxu0 0
      %2938 = vmatpush1.bf16.msra.mxu0 0
      %2939 = vmatprep.subr.bf16.mxu0 0
      %2940 = vmatpush1.bf16.msra.mxu0 0
      %2941 = vmatprep.subr.bf16.mxu0 0
      %2942 = vmatpush1.bf16.msra.mxu0 0
      %2943 = vmatprep.mubr.bf16.mxu0 0
      %2944 = vmatmul.mubr.bf16.gmra.mrb[0].mxu0 %v2756
      %v2945 = vpop.f32.mrb[0].mxu0
      %v2946 = vadd.f32 0.0, %v2945
      %v2947 = vpop.f32.mrb[0].mxu0
      %v2948 = vadd.f32 0.0, %v2947
      %v2949 = vpop.f32.mrb[0].mxu0
      %v2950 = vadd.f32 0.0, %v2949
      %v2951 = vpop.f32.mrb[0].mxu0
      %v2952 = vadd.f32 0.0, %v2951
      %2953 = vdwg.mxu0
      %v2954 = vadd.f32 %v2651, %v2817
      %v2955 = vadd.f32 %v2652, %v2819
      %v2956 = vadd.f32 %v2653, %v2860
      %v2957 = vadd.f32 %v2654, %v2862
      %v2958 = vadd.f32 %v2655, %v2903
      %v2959 = vadd.f32 %v2656, %v2905
      %v2960 = vadd.f32 %v2657, %v2946
      %v2961 = vadd.f32 %v2658, %v2948
      %v2962 = vadd.f32 %v2659, %v2821
      %v2963 = vadd.f32 %v2660, %v2823
      %v2964 = vadd.f32 %v2661, %v2864
      %v2965 = vadd.f32 %v2662, %v2866
      %v2966 = vadd.f32 %v2663, %v2907
      %v2967 = vadd.f32 %v2664, %v2909
      %v2968 = vadd.f32 %v2665, %v2950
      %v2969 = vadd.f32 %v2666, %v2952
      %v2970 = vld [vmem:[%s3] sm:$0xff]
      %v2971 = vld [vmem:[%s3 + $0x8] sm:$0x7]
      %2973 = vset.pattern.permute.xlu0 0
      %2974 = vperm.xlu0 %2973, %v2970
      %v2975 = vpop.permute.xlu0 %2974
      %2978 = vset.pattern.permute.xlu0 0
      %2979 = vperm.xlu0 %2978, %v2971
      %v2980 = vpop.permute.xlu0 %2979
      %v2982 = vmul.f32 %v2954, %v2975
      %v2983 = vmul.f32 %v2955, %v2975
      %v2984 = vmul.f32 %v2956, %v2975
      %v2985 = vmul.f32 %v2957, %v2975
      %v2986 = vmul.f32 %v2958, %v2975
      %v2987 = vmul.f32 %v2959, %v2975
      %v2988 = vmul.f32 %v2960, %v2975
      %v2989 = vmul.f32 %v2961, %v2975
      %v2990 = vmul.f32 %v2962, %v2980
      %v2991 = vmul.f32 %v2963, %v2980
      %v2992 = vmul.f32 %v2964, %v2980
      %v2993 = vmul.f32 %v2965, %v2980
      %v2994 = vmul.f32 %v2966, %v2980
      %v2995 = vmul.f32 %v2967, %v2980
      %v2996 = vmul.f32 %v2968, %v2980
      %v2997 = vmul.f32 %v2969, %v2980
      %v2998 = vld [vmem:[%s4] sm:$0xff]
      %v2999 = vld [vmem:[%s4 + $0x8] sm:$0x7]
      %3001 = vset.pattern.permute.xlu0 0
      %3002 = vperm.xlu0 %3001, %v2998
      %v3003 = vpop.permute.xlu0 %3002
      %3006 = vset.pattern.permute.xlu0 0
      %3007 = vperm.xlu0 %3006, %v2999
      %v3008 = vpop.permute.xlu0 %3007
      %v3010 = vadd.f32 %v2982, %v3003
      %v3011 = vadd.f32 %v2983, %v3003
      %v3012 = vadd.f32 %v2984, %v3003
      %v3013 = vadd.f32 %v2985, %v3003
      %v3014 = vadd.f32 %v2986, %v3003
      %v3015 = vadd.f32 %v2987, %v3003
      %v3016 = vadd.f32 %v2988, %v3003
      %v3017 = vadd.f32 %v2989, %v3003
      %v3018 = vadd.f32 %v2990, %v3008
      %v3019 = vadd.f32 %v2991, %v3008
      %v3020 = vadd.f32 %v2992, %v3008
      %v3021 = vadd.f32 %v2993, %v3008
      %v3022 = vadd.f32 %v2994, %v3008
      %v3023 = vadd.f32 %v2995, %v3008
      %v3024 = vadd.f32 %v2996, %v3008
      %v3025 = vadd.f32 %v2997, %v3008
      %v3026 = vmax.f32 %v3010, 0.0
      %v3027 = vmax.f32 %v3011, 0.0
      %v3028 = vmax.f32 %v3012, 0.0
      %v3029 = vmax.f32 %v3013, 0.0
      %v3030 = vmax.f32 %v3014, 0.0
      %v3031 = vmax.f32 %v3015, 0.0
      %v3032 = vmax.f32 %v3016, 0.0
      %v3033 = vmax.f32 %v3017, 0.0
      %v3034 = vmax.f32 %v3018, 0.0
      %v3035 = vmax.f32 %v3019, 0.0
      %v3036 = vmax.f32 %v3020, 0.0
      %v3037 = vmax.f32 %v3021, 0.0
      %v3038 = vmax.f32 %v3022, 0.0
      %v3039 = vmax.f32 %v3023, 0.0
      %v3040 = vmax.f32 %v3024, 0.0
      %v3041 = vmax.f32 %v3025, 0.0
      %3042 = vst [vmem:[%s224] sm:$0xff] %v3026
      %3043 = vst [vmem:[%s224 + $0x8] sm:$0xff] %v3027
      %3044 = vst [vmem:[%s224 + $0x10] sm:$0xff] %v3028
      %3045 = vst [vmem:[%s224 + $0x18] sm:$0xff] %v3029
      %3046 = vst [vmem:[%s224 + $0x20] sm:$0xff] %v3030
      %3047 = vst [vmem:[%s224 + $0x28] sm:$0xff] %v3031
      %3048 = vst [vmem:[%s224 + $0x30] sm:$0xff] %v3032
      %3049 = vst [vmem:[%s224 + $0x38] sm:$0xff] %v3033
      %3050 = vst [vmem:[%s224 + $0x40] sm:$0x7] %v3034
      %3051 = vst [vmem:[%s224 + $0x48] sm:$0x7] %v3035
      %3052 = vst [vmem:[%s224 + $0x50] sm:$0x7] %v3036
      %3053 = vst [vmem:[%s224 + $0x58] sm:$0x7] %v3037
      %3054 = vst [vmem:[%s224 + $0x60] sm:$0x7] %v3038
      %3055 = vst [vmem:[%s224 + $0x68] sm:$0x7] %v3039
      %3056 = vst [vmem:[%s224 + $0x70] sm:$0x7] %v3040
      %3057 = vst [vmem:[%s224 + $0x78] sm:$0x7] %v3041
      %p3058 = scmp.lt.s32.totalorder %s16, 1
      %s3059 = scalar_select %p3058, %s16, 1
      %s3060 = smul.addr %s3059, 16
      %s3061 = smul.addr %s3060, 8
      %s3062 = scalar_lea.vmem %s5, %s3061
      // Predicated region
      $region41: #{conv2dt_forward.3} parent=39 // pred_check
        %p3063 = pneg %p144
      $region42: #{conv2dt_forward.3} parent=39 // pred_check_branch
        %3065 = sbr.rel (%p3063) target = $region44
      $region43: #{conv2dt_forward.3} parent=39 // pred_region
        _
      $region44: #{conv2dt_forward.3} parent=39 // pred_fallthru
        _
    $region40: #{conv2dt_forward.3} parent=5 // pred_fallthru
      _
    %p3066 = scmp.le.s32.totalorder 2, %s11
    // Predicated region
    $region45: #{conv2dt_forward.3} parent=5 // pred_check
      %p3067 = pneg %p3066
    $region46: #{conv2dt_forward.3} parent=5 // pred_check_branch
      %3069 = sbr.rel (%p3067) target = $region48
    $region47: #{conv2dt_forward.3} parent=5 // pred_region
      %s3070 = ssub.s32 %s11, 2
      // Predicated region
      $region49: #{conv2dt_forward.3} parent=47 // pred_check
        %p3071 = pneg %p150
      $region50: #{conv2dt_forward.3} parent=47 // pred_check_branch
        %3073 = sbr.rel (%p3071) target = $region52
      $region51: #{conv2dt_forward.3} parent=47 // pred_region
        %p3074 = scmp.lt.s32.totalorder %s17, 1
        %s3075 = scalar_select %p3074, %s17, 1
        %s3076 = smul.addr %s3075, 16
        %s3077 = smul.addr %s3076, 8
        %s3078 = scalar_lea.vmem %s5, %s3077
      $region52: #{conv2dt_forward.3} parent=47 // pred_fallthru
        _
    $region48: #{conv2dt_forward.3} parent=5 // pred_fallthru
      _
  $region6: #{conv2dt_forward.3} parent=0 // loop_footer
    %s15 = sadd.s32 1, %s11
  $region7: #{conv2dt_forward.3} parent=0 // loop_footer_branch
    %10 = sbr.rel target = $region3
  $region8: #{conv2dt_forward.3} parent=0 // loop_exit
    _

</llo_original>
